<compile_context>
chip_gen: v7x
topology: tpu7x:2x2x1
jax: 0.10.0
libtpu: 0.0.40
codegen_flags: <defaults>
</compile_context>

<pallas_src>
import numpy as np
import jax
import jax.numpy as jnp
from jax import lax
from jax.experimental import pallas as pl
from jax.experimental.pallas import tpu as pltpu

NC_PAD = 128  # lane-padded number of classes for the final matmul / output


def _round8(n):
    return ((n + 7) // 8) * 8


def _geometry(H, W):
    """Row budgets for the flat (H*W-stride, C) representation of every stage."""
    h1, w1 = H - 6, W - 6            # conv1 7x7 VALID
    h2, w2 = h1 - 2, w1 - 2          # conv2 3x3 VALID
    h3, w3 = h2 // 2, w2 // 2        # maxpool 2x2/2
    h4, w4 = h3 - 2, w3 - 2          # conv3 3x3 VALID (dilation 2 on flat grid)
    hf, wf = h4 // 2, w4 // 2        # maxpool 2x2/2
    assert hf >= 1 and wf >= 1, "input spatially too small for BaseModel"
    # valid outputs of the last pool live at flat rows 4*(y*W + x)
    valid_rows = tuple(4 * (y * W + x) for y in range(hf) for x in range(wf))
    R5 = _round8(max(valid_rows) + 1)                 # pool2 output rows
    R4 = _round8(R5 + 2 * (W + 1))                    # conv3 output rows
    R3 = _round8(R4 + 2 * (2 * W + 2))                # pool1 output rows
    R2 = _round8(R3 + (W + 1))                        # conv2 output rows
    R1 = _round8(R2 + (2 * W + 2))                    # conv1 output rows
    RXW = _round8(R1 + 6 * W)                         # width-folded input rows
    return dict(R1=R1, R2=R2, R3=R3, R4=R4, R5=R5, RXW=RXW, valid_rows=valid_rows)


def _pick_b_tile(B, max_tile=8):
    """Images per grid step: amortize per-step overhead on single-TC chips,
    but keep >= 2 grid steps so v7x's two TensorCores both get work."""
    limit = min(max_tile, max(1, B // 2))
    for t in range(limit, 0, -1):
        if B % t == 0:
            return t
    return 1


def _make_kernel(W, geom, b_tile):
    """Fused per-tile kernel; all geometry is compile-time constant."""
    R1, R2, R3, R4, R5 = geom["R1"], geom["R2"], geom["R3"], geom["R4"], geom["R5"]
    inv_count = 1.0 / len(geom["valid_rows"])

    def conv_relu(a, w_r, b, rows_out, kw, dil):
        # a: (rows_in, C) bf16 flat activation; w_r: (KH, kw*C, Cout) bf16; b: (1, Cout) f32
        # One matmul per dh: the KW taps live in the contraction dim (K = kw*C),
        # built by concatenating shifted row-slices along the channel axis.
        kh = w_r.shape[0]
        acc = jnp.zeros((rows_out, w_r.shape[2]), jnp.float32)
        for dh in range(kh):
            base = dil * dh * W
            if kw == 1:
                lhs = a[base:base + rows_out, :]
            else:
                lhs = jnp.concatenate(
                    [a[base + dil * dw: base + dil * dw + rows_out, :]
                     for dw in range(kw)], axis=1)
            acc = acc + jnp.dot(lhs, w_r[dh], preferred_element_type=jnp.float32)
        return jnp.maximum(acc + b, 0.0).astype(jnp.bfloat16)   # single cast per stage

    def maxpool2(a, rows_out, dil):
        out = None
        for dy in range(2):
            for dx in range(2):
                s = dil * (dy * W + dx)
                piece = a[s:s + rows_out, :]
                out = piece if out is None else jnp.maximum(out, piece)
        return out

    def kernel(x_ref, sel_ref, w1_ref, b1_ref, w2_ref, b2_ref, w3_ref, b3_ref,
               wfc_ref, bfc_ref, o_ref):
        w1, w2, w3 = w1_ref[...], w2_ref[...], w3_ref[...]
        b1, b2, b3 = b1_ref[...], b2_ref[...], b3_ref[...]
        sel = sel_ref[...]

        feats = []
        for b in range(b_tile):
            x = x_ref[b]                                  # (RXW, 7*Cin) bf16, width-folded
            c1 = conv_relu(x, w1, b1, R1, 1, 1)           # 7 matmuls, K = 7*Cin
            c2 = conv_relu(c1, w2, b2, R2, 3, 1)          # 3 matmuls, K = 96
            p1 = maxpool2(c2, R3, 1)                      # maxpool 2x2
            # TODO(synk): nn.Dropout(0.25) is identity at inference; training-mode
            # masking (pltpu.prng_random_bits) is not implemented.
            c3 = conv_relu(p1, w3, b3, R4, 3, 2)          # 3 matmuls, K = 192 (dilation 2)
            p2 = maxpool2(c3, R5, 2)                      # maxpool 2x2 (dilation 2)
            # AdaptiveAvgPool2d((1,1)): one (1,R5)x(R5,128) 0/1-selection matmul.
            f = jnp.dot(sel, p2, preferred_element_type=jnp.float32) * inv_count
            feats.append(f)
        feats_t = jnp.concatenate(feats, axis=0)          # (b_tile, 128) f32

        logits = jnp.dot(feats_t.astype(jnp.bfloat16), wfc_ref[...],
                         preferred_element_type=jnp.float32) + bfc_ref[...]
        for b in range(b_tile):                           # lane-dense 128-wide stores
            o_ref[b] = logits[b:b + 1]

    return kernel


def base_model_forward(x_nchw, params, num_classes):
    B, C, H, W = x_nchw.shape
    assert num_classes <= NC_PAD
    assert C == params["w1"].shape[2]
    geom = _geometry(H, W)
    RXW, R5 = geom["RXW"], geom["R5"]
    K1 = 7 * C
    b_tile = _pick_b_tile(B)

    # NCHW -> NHWC -> flat (B, H*W, C), zero-padded; then host-side width im2col
    # (fold KW=7 into channels) so conv1's LHS arrives lane-denser and in bf16.
    x_flat = jnp.transpose(x_nchw, (0, 2, 3, 1)).reshape(B, H * W, C)
    pad_rows = max(H * W, RXW + 6)
    x_pad = jnp.pad(x_flat, ((0, 0), (0, pad_rows - H * W), (0, 0))).astype(jnp.bfloat16)
    x_wide = jnp.concatenate([x_pad[:, dw:dw + RXW, :] for dw in range(7)], axis=-1)

    # Fold KW into the contraction dim of the weights: (KH,KW,Cin,Cout) -> (KH, KW*Cin, Cout).
    w1r = params["w1"].reshape(7, 7 * C, 32)
    w2r = params["w2"].reshape(3, 3 * 32, 64)
    w3r = params["w3"].reshape(3, 3 * 64, 128)

    # 0/1 selection row for the adaptive average pool (valid pool2 positions).
    sel_np = np.zeros((1, R5), np.float32)
    sel_np[0, list(geom["valid_rows"])] = 1.0
    sel = jnp.asarray(sel_np, jnp.bfloat16)

    weights = (sel, w1r, params["b1"], w2r, params["b2"], w3r, params["b3"],
               params["w_fc"], params["b_fc"])

    def _rep_spec(a):  # full-array block, same block every grid step
        nd = a.ndim
        return pl.BlockSpec(a.shape, lambda i, _nd=nd: (0,) * _nd)

    kernel = _make_kernel(W, geom, b_tile)
    out = pl.pallas_call(
        kernel,
        grid=(B // b_tile,),
        in_specs=[pl.BlockSpec((b_tile, RXW, K1), lambda i: (i, 0, 0))]
                 + [_rep_spec(w) for w in weights],
        out_specs=pl.BlockSpec((b_tile, 1, NC_PAD), lambda i: (i, 0, 0)),
        out_shape=jax.ShapeDtypeStruct((B, 1, NC_PAD), jnp.float32),
        compiler_params=pltpu.CompilerParams(
            dimension_semantics=("parallel",),       # v7x: the two TCs split the batch
            vmem_limit_bytes=32 * 1024 * 1024,       # actual use ~1 MiB; generous headroom
        ),
    )(x_wide, *weights)
    return out[:, 0, :num_classes]                   # drop lane padding


# ---------------------------------------------------------------------------
# Deterministic parameters (no checkpoint).  Layout mapping from PyTorch:
#   Conv2d weight (Cout, Cin, KH, KW)  ->  ours (KH, KW, Cin, Cout)  [HWIO]
#   Linear weight (num_classes, 128)   ->  ours (128, NC_PAD), zero-padded cols
# ---------------------------------------------------------------------------

def init_params(key, num_classes):
    ks = jax.random.split(key, 8)

    def conv_w(k, kh, kw, cin, cout):
        fan_in = kh * kw * cin
        w = jax.random.normal(k, (kh, kw, cin, cout), jnp.float32)
        return (w * (2.0 / fan_in) ** 0.5).astype(jnp.bfloat16)

    w_fc = jnp.zeros((128, NC_PAD), jnp.float32).at[:, :num_classes].set(
        jax.random.normal(ks[6], (128, num_classes), jnp.float32) * (1.0 / 128) ** 0.5)
    b_fc = jnp.zeros((1, NC_PAD), jnp.float32).at[:, :num_classes].set(
        jax.random.normal(ks[7], (1, num_classes), jnp.float32) * 0.01)

    return dict(
        w1=conv_w(ks[0], 7, 7, 3, 32),
        b1=jax.random.normal(ks[1], (1, 32), jnp.float32) * 0.01,
        w2=conv_w(ks[2], 3, 3, 32, 64),
        b2=jax.random.normal(ks[3], (1, 64), jnp.float32) * 0.01,
        w3=conv_w(ks[4], 3, 3, 64, 128),
        b3=jax.random.normal(ks[5], (1, 128), jnp.float32) * 0.01,
        w_fc=w_fc.astype(jnp.bfloat16),
        b_fc=b_fc,
    )


# ---------------------------------------------------------------------------
# Pure-JAX reference of the same (eval-mode, bf16-matmul) forward pass.
# ---------------------------------------------------------------------------

def _reference_forward(x_nchw, params, num_classes):
    x = jnp.transpose(x_nchw, (0, 2, 3, 1)).astype(jnp.float32)  # NHWC

    def conv(h, w, b):
        y = lax.conv_general_dilated(
            h.astype(jnp.bfloat16), w, (1, 1), "VALID",
            dimension_numbers=("NHWC", "HWIO", "NHWC"),
            preferred_element_type=jnp.float32)
        return jnp.maximum(y + b.reshape(1, 1, 1, -1), 0.0)

    def maxpool(h):
        return lax.reduce_window(h, -jnp.inf, lax.max,
                                 (1, 2, 2, 1), (1, 2, 2, 1), "VALID")

    h = conv(x, params["w1"], params["b1"])
    h = conv(h, params["w2"], params["b2"])
    h = maxpool(h)                                   # dropout1: identity (eval)
    h = conv(h, params["w3"], params["b3"])
    h = maxpool(h)                                   # dropout2: identity (eval)
    feats = jnp.mean(h, axis=(1, 2))                 # AdaptiveAvgPool2d((1,1)) -> (B, 128)
    logits = jnp.dot(feats.astype(jnp.bfloat16), params["w_fc"],
                     preferred_element_type=jnp.float32) + params["b_fc"]
    return logits[:, :num_classes]


if __name__ == "__main__":
    num_classes = 18
    key = jax.random.PRNGKey(0)
    kx, kp, kx2 = jax.random.split(key, 3)
    params = init_params(kp, num_classes)
    fwd = jax.jit(base_model_forward, static_argnums=2)

    # Main test: PyTorch-style NCHW batch; 16x16 is the smallest supported spatial size.
    x = jax.random.normal(kx, (2, 3, 16, 16), jnp.float32)
    out = jax.block_until_ready(fwd(x, params, num_classes))
    assert out.shape == (2, num_classes), out.shape
    assert bool(jnp.all(jnp.isfinite(out)))
    ref = _reference_forward(x, params, num_classes)
    assert jnp.allclose(out, ref, rtol=1e-2, atol=1e-2), \
        float(jnp.max(jnp.abs(out - ref)))

    # Geometry check at a larger, non-square size (exercises hf*wf > 1 avg-pool path).
    x2 = jax.random.normal(kx2, (2, 3, 20, 28), jnp.float32)
    out2 = jax.block_until_ready(fwd(x2, params, num_classes))
    ref2 = _reference_forward(x2, params, num_classes)
    assert jnp.allclose(out2, ref2, rtol=1e-2, atol=1e-2), \
        float(jnp.max(jnp.abs(out2 - ref2)))

    print("KERNEL_OK")
</pallas_src>

<mosaic_0001>
module attributes {stable_mosaic.version = 11 : i64} {
  func.func @kernel(%arg0: i32, %arg1: memref<1x280x21xbf16, #tpu.memory_space<vmem>>, %arg2: memref<1x8xbf16, #tpu.memory_space<vmem>>, %arg3: memref<7x21x32xbf16, #tpu.memory_space<vmem>>, %arg4: memref<1x32xf32, #tpu.memory_space<vmem>>, %arg5: memref<3x96x64xbf16, #tpu.memory_space<vmem>>, %arg6: memref<1x64xf32, #tpu.memory_space<vmem>>, %arg7: memref<3x192x128xbf16, #tpu.memory_space<vmem>>, %arg8: memref<1x128xf32, #tpu.memory_space<vmem>>, %arg9: memref<128x128xbf16, #tpu.memory_space<vmem>>, %arg10: memref<1x128xf32, #tpu.memory_space<vmem>>, %arg11: memref<1x1x128xf32, #tpu.memory_space<vmem>>) attributes {dimension_semantics = [#tpu.dimension_semantics<parallel>], iteration_bounds = array<i64: 2>, scalar_prefetch = 0 : i64, scratch_operands = 0 : i64, tpu.core_type = #tpu.core_type<tc>, window_params = [{transform_indices = @transform_0, window_bounds = array<i64: 1, 280, 21>}, {pipeline_mode = #tpu.pipeline_mode<synchronous>, transform_indices = @transform_1, window_bounds = array<i64: 1, 8>}, {pipeline_mode = #tpu.pipeline_mode<synchronous>, transform_indices = @transform_2, window_bounds = array<i64: 7, 21, 32>}, {pipeline_mode = #tpu.pipeline_mode<synchronous>, transform_indices = @transform_3, window_bounds = array<i64: 1, 32>}, {pipeline_mode = #tpu.pipeline_mode<synchronous>, transform_indices = @transform_4, window_bounds = array<i64: 3, 96, 64>}, {pipeline_mode = #tpu.pipeline_mode<synchronous>, transform_indices = @transform_5, window_bounds = array<i64: 1, 64>}, {pipeline_mode = #tpu.pipeline_mode<synchronous>, transform_indices = @transform_6, window_bounds = array<i64: 3, 192, 128>}, {pipeline_mode = #tpu.pipeline_mode<synchronous>, transform_indices = @transform_7, window_bounds = array<i64: 1, 128>}, {pipeline_mode = #tpu.pipeline_mode<synchronous>, transform_indices = @transform_8, window_bounds = array<i64: 128, 128>}, {pipeline_mode = #tpu.pipeline_mode<synchronous>, transform_indices = @transform_9, window_bounds = array<i64: 1, 128>}, {transform_indices = @transform_10, window_bounds = array<i64: 1, 1, 128>}]} {
    %c0 = arith.constant 0 : index
    %c0_0 = arith.constant 0 : index
    %c0_1 = arith.constant 0 : index
    %0 = vector.load %arg3[%c0, %c0_0, %c0_1] : memref<7x21x32xbf16, #tpu.memory_space<vmem>>, vector<7x21x32xbf16>
    %c0_2 = arith.constant 0 : index
    %c0_3 = arith.constant 0 : index
    %c0_4 = arith.constant 0 : index
    %1 = vector.load %arg5[%c0_2, %c0_3, %c0_4] : memref<3x96x64xbf16, #tpu.memory_space<vmem>>, vector<3x96x64xbf16>
    %c0_5 = arith.constant 0 : index
    %c0_6 = arith.constant 0 : index
    %c0_7 = arith.constant 0 : index
    %2 = vector.load %arg7[%c0_5, %c0_6, %c0_7] : memref<3x192x128xbf16, #tpu.memory_space<vmem>>, vector<3x192x128xbf16>
    %c0_8 = arith.constant 0 : index
    %c0_9 = arith.constant 0 : index
    %3 = vector.load %arg4[%c0_8, %c0_9] : memref<1x32xf32, #tpu.memory_space<vmem>>, vector<1x32xf32>
    %c0_10 = arith.constant 0 : index
    %c0_11 = arith.constant 0 : index
    %4 = vector.load %arg6[%c0_10, %c0_11] : memref<1x64xf32, #tpu.memory_space<vmem>>, vector<1x64xf32>
    %c0_12 = arith.constant 0 : index
    %c0_13 = arith.constant 0 : index
    %5 = vector.load %arg8[%c0_12, %c0_13] : memref<1x128xf32, #tpu.memory_space<vmem>>, vector<1x128xf32>
    %c0_14 = arith.constant 0 : index
    %c0_15 = arith.constant 0 : index
    %6 = vector.load %arg2[%c0_14, %c0_15] : memref<1x8xbf16, #tpu.memory_space<vmem>>, vector<1x8xbf16>
    %c0_16 = arith.constant 0 : index
    %c0_17 = arith.constant 0 : index
    %c0_18 = arith.constant 0 : index
    %7 = vector.load %arg1[%c0_16, %c0_17, %c0_18] : memref<1x280x21xbf16, #tpu.memory_space<vmem>>, vector<1x280x21xbf16>
    %8 = vector.shape_cast %7 : vector<1x280x21xbf16> to vector<280x21xbf16>
    %cst = arith.constant 0.000000e+00 : f32
    %9 = vector.broadcast %cst : f32 to vector<184x32xf32>
    %10 = vector.extract_strided_slice %8 {offsets = [0, 0], sizes = [184, 21], strides = [1, 1]} : vector<280x21xbf16> to vector<184x21xbf16>
    %11 = vector.extract_strided_slice %0 {offsets = [0, 0, 0], sizes = [1, 21, 32], strides = [1, 1, 1]} : vector<7x21x32xbf16> to vector<1x21x32xbf16>
    %12 = vector.shape_cast %11 : vector<1x21x32xbf16> to vector<21x32xbf16>
    %cst_19 = arith.constant dense<0.000000e+00> : vector<184x32xf32>
    %13 = tpu.matmul %10, %12, %cst_19 {dimension_numbers = #tpu.dot_dimension_numbers<[1], [0], [0], [1], [0, 0, 1, 1], [], []>} : vector<184x21xbf16>, vector<21x32xbf16>, vector<184x32xf32> -> vector<184x32xf32>
    %14 = arith.addf %9, %13 : vector<184x32xf32>
    %15 = vector.extract_strided_slice %8 {offsets = [16, 0], sizes = [184, 21], strides = [1, 1]} : vector<280x21xbf16> to vector<184x21xbf16>
    %16 = vector.extract_strided_slice %0 {offsets = [1, 0, 0], sizes = [1, 21, 32], strides = [1, 1, 1]} : vector<7x21x32xbf16> to vector<1x21x32xbf16>
    %17 = vector.shape_cast %16 : vector<1x21x32xbf16> to vector<21x32xbf16>
    %cst_20 = arith.constant dense<0.000000e+00> : vector<184x32xf32>
    %18 = tpu.matmul %15, %17, %cst_20 {dimension_numbers = #tpu.dot_dimension_numbers<[1], [0], [0], [1], [0, 0, 1, 1], [], []>} : vector<184x21xbf16>, vector<21x32xbf16>, vector<184x32xf32> -> vector<184x32xf32>
    %19 = arith.addf %14, %18 : vector<184x32xf32>
    %20 = vector.extract_strided_slice %8 {offsets = [32, 0], sizes = [184, 21], strides = [1, 1]} : vector<280x21xbf16> to vector<184x21xbf16>
    %21 = vector.extract_strided_slice %0 {offsets = [2, 0, 0], sizes = [1, 21, 32], strides = [1, 1, 1]} : vector<7x21x32xbf16> to vector<1x21x32xbf16>
    %22 = vector.shape_cast %21 : vector<1x21x32xbf16> to vector<21x32xbf16>
    %cst_21 = arith.constant dense<0.000000e+00> : vector<184x32xf32>
    %23 = tpu.matmul %20, %22, %cst_21 {dimension_numbers = #tpu.dot_dimension_numbers<[1], [0], [0], [1], [0, 0, 1, 1], [], []>} : vector<184x21xbf16>, vector<21x32xbf16>, vector<184x32xf32> -> vector<184x32xf32>
    %24 = arith.addf %19, %23 : vector<184x32xf32>
    %25 = vector.extract_strided_slice %8 {offsets = [48, 0], sizes = [184, 21], strides = [1, 1]} : vector<280x21xbf16> to vector<184x21xbf16>
    %26 = vector.extract_strided_slice %0 {offsets = [3, 0, 0], sizes = [1, 21, 32], strides = [1, 1, 1]} : vector<7x21x32xbf16> to vector<1x21x32xbf16>
    %27 = vector.shape_cast %26 : vector<1x21x32xbf16> to vector<21x32xbf16>
    %cst_22 = arith.constant dense<0.000000e+00> : vector<184x32xf32>
    %28 = tpu.matmul %25, %27, %cst_22 {dimension_numbers = #tpu.dot_dimension_numbers<[1], [0], [0], [1], [0, 0, 1, 1], [], []>} : vector<184x21xbf16>, vector<21x32xbf16>, vector<184x32xf32> -> vector<184x32xf32>
    %29 = arith.addf %24, %28 : vector<184x32xf32>
    %30 = vector.extract_strided_slice %8 {offsets = [64, 0], sizes = [184, 21], strides = [1, 1]} : vector<280x21xbf16> to vector<184x21xbf16>
    %31 = vector.extract_strided_slice %0 {offsets = [4, 0, 0], sizes = [1, 21, 32], strides = [1, 1, 1]} : vector<7x21x32xbf16> to vector<1x21x32xbf16>
    %32 = vector.shape_cast %31 : vector<1x21x32xbf16> to vector<21x32xbf16>
    %cst_23 = arith.constant dense<0.000000e+00> : vector<184x32xf32>
    %33 = tpu.matmul %30, %32, %cst_23 {dimension_numbers = #tpu.dot_dimension_numbers<[1], [0], [0], [1], [0, 0, 1, 1], [], []>} : vector<184x21xbf16>, vector<21x32xbf16>, vector<184x32xf32> -> vector<184x32xf32>
    %34 = arith.addf %29, %33 : vector<184x32xf32>
    %35 = vector.extract_strided_slice %8 {offsets = [80, 0], sizes = [184, 21], strides = [1, 1]} : vector<280x21xbf16> to vector<184x21xbf16>
    %36 = vector.extract_strided_slice %0 {offsets = [5, 0, 0], sizes = [1, 21, 32], strides = [1, 1, 1]} : vector<7x21x32xbf16> to vector<1x21x32xbf16>
    %37 = vector.shape_cast %36 : vector<1x21x32xbf16> to vector<21x32xbf16>
    %cst_24 = arith.constant dense<0.000000e+00> : vector<184x32xf32>
    %38 = tpu.matmul %35, %37, %cst_24 {dimension_numbers = #tpu.dot_dimension_numbers<[1], [0], [0], [1], [0, 0, 1, 1], [], []>} : vector<184x21xbf16>, vector<21x32xbf16>, vector<184x32xf32> -> vector<184x32xf32>
    %39 = arith.addf %34, %38 : vector<184x32xf32>
    %40 = vector.extract_strided_slice %8 {offsets = [96, 0], sizes = [184, 21], strides = [1, 1]} : vector<280x21xbf16> to vector<184x21xbf16>
    %41 = vector.extract_strided_slice %0 {offsets = [6, 0, 0], sizes = [1, 21, 32], strides = [1, 1, 1]} : vector<7x21x32xbf16> to vector<1x21x32xbf16>
    %42 = vector.shape_cast %41 : vector<1x21x32xbf16> to vector<21x32xbf16>
    %cst_25 = arith.constant dense<0.000000e+00> : vector<184x32xf32>
    %43 = tpu.matmul %40, %42, %cst_25 {dimension_numbers = #tpu.dot_dimension_numbers<[1], [0], [0], [1], [0, 0, 1, 1], [], []>} : vector<184x21xbf16>, vector<21x32xbf16>, vector<184x32xf32> -> vector<184x32xf32>
    %44 = arith.addf %39, %43 : vector<184x32xf32>
    %45 = vector.broadcast %3 : vector<1x32xf32> to vector<184x32xf32>
    %46 = arith.addf %44, %45 : vector<184x32xf32>
    %cst_26 = arith.constant 0.000000e+00 : f32
    %47 = vector.broadcast %cst_26 : f32 to vector<184x32xf32>
    %48 = arith.maximumf %46, %47 : vector<184x32xf32>
    %49 = arith.truncf %48 : vector<184x32xf32> to vector<184x32xbf16>
    %cst_27 = arith.constant 0.000000e+00 : f32
    %50 = vector.broadcast %cst_27 : f32 to vector<144x64xf32>
    %51 = vector.extract_strided_slice %49 {offsets = [0, 0], sizes = [144, 32], strides = [1, 1]} : vector<184x32xbf16> to vector<144x32xbf16>
    %52 = vector.extract_strided_slice %49 {offsets = [1, 0], sizes = [144, 32], strides = [1, 1]} : vector<184x32xbf16> to vector<144x32xbf16>
    %53 = vector.extract_strided_slice %49 {offsets = [2, 0], sizes = [144, 32], strides = [1, 1]} : vector<184x32xbf16> to vector<144x32xbf16>
    %54 = tpu.concatenate %51, %52, %53 in 1 : vector<144x32xbf16>, vector<144x32xbf16>, vector<144x32xbf16> -> vector<144x96xbf16>
    %55 = vector.extract_strided_slice %1 {offsets = [0, 0, 0], sizes = [1, 96, 64], strides = [1, 1, 1]} : vector<3x96x64xbf16> to vector<1x96x64xbf16>
    %56 = vector.shape_cast %55 : vector<1x96x64xbf16> to vector<96x64xbf16>
    %cst_28 = arith.constant dense<0.000000e+00> : vector<144x64xf32>
    %57 = tpu.matmul %54, %56, %cst_28 {dimension_numbers = #tpu.dot_dimension_numbers<[1], [0], [0], [1], [0, 0, 1, 1], [], []>} : vector<144x96xbf16>, vector<96x64xbf16>, vector<144x64xf32> -> vector<144x64xf32>
    %58 = arith.addf %50, %57 : vector<144x64xf32>
    %59 = vector.extract_strided_slice %49 {offsets = [16, 0], sizes = [144, 32], strides = [1, 1]} : vector<184x32xbf16> to vector<144x32xbf16>
    %60 = vector.extract_strided_slice %49 {offsets = [17, 0], sizes = [144, 32], strides = [1, 1]} : vector<184x32xbf16> to vector<144x32xbf16>
    %61 = vector.extract_strided_slice %49 {offsets = [18, 0], sizes = [144, 32], strides = [1, 1]} : vector<184x32xbf16> to vector<144x32xbf16>
    %62 = tpu.concatenate %59, %60, %61 in 1 : vector<144x32xbf16>, vector<144x32xbf16>, vector<144x32xbf16> -> vector<144x96xbf16>
    %63 = vector.extract_strided_slice %1 {offsets = [1, 0, 0], sizes = [1, 96, 64], strides = [1, 1, 1]} : vector<3x96x64xbf16> to vector<1x96x64xbf16>
    %64 = vector.shape_cast %63 : vector<1x96x64xbf16> to vector<96x64xbf16>
    %cst_29 = arith.constant dense<0.000000e+00> : vector<144x64xf32>
    %65 = tpu.matmul %62, %64, %cst_29 {dimension_numbers = #tpu.dot_dimension_numbers<[1], [0], [0], [1], [0, 0, 1, 1], [], []>} : vector<144x96xbf16>, vector<96x64xbf16>, vector<144x64xf32> -> vector<144x64xf32>
    %66 = arith.addf %58, %65 : vector<144x64xf32>
    %67 = vector.extract_strided_slice %49 {offsets = [32, 0], sizes = [144, 32], strides = [1, 1]} : vector<184x32xbf16> to vector<144x32xbf16>
    %68 = vector.extract_strided_slice %49 {offsets = [33, 0], sizes = [144, 32], strides = [1, 1]} : vector<184x32xbf16> to vector<144x32xbf16>
    %69 = vector.extract_strided_slice %49 {offsets = [34, 0], sizes = [144, 32], strides = [1, 1]} : vector<184x32xbf16> to vector<144x32xbf16>
    %70 = tpu.concatenate %67, %68, %69 in 1 : vector<144x32xbf16>, vector<144x32xbf16>, vector<144x32xbf16> -> vector<144x96xbf16>
    %71 = vector.extract_strided_slice %1 {offsets = [2, 0, 0], sizes = [1, 96, 64], strides = [1, 1, 1]} : vector<3x96x64xbf16> to vector<1x96x64xbf16>
    %72 = vector.shape_cast %71 : vector<1x96x64xbf16> to vector<96x64xbf16>
    %cst_30 = arith.constant dense<0.000000e+00> : vector<144x64xf32>
    %73 = tpu.matmul %70, %72, %cst_30 {dimension_numbers = #tpu.dot_dimension_numbers<[1], [0], [0], [1], [0, 0, 1, 1], [], []>} : vector<144x96xbf16>, vector<96x64xbf16>, vector<144x64xf32> -> vector<144x64xf32>
    %74 = arith.addf %66, %73 : vector<144x64xf32>
    %75 = vector.broadcast %4 : vector<1x64xf32> to vector<144x64xf32>
    %76 = arith.addf %74, %75 : vector<144x64xf32>
    %cst_31 = arith.constant 0.000000e+00 : f32
    %77 = vector.broadcast %cst_31 : f32 to vector<144x64xf32>
    %78 = arith.maximumf %76, %77 : vector<144x64xf32>
    %79 = arith.truncf %78 : vector<144x64xf32> to vector<144x64xbf16>
    %80 = vector.extract_strided_slice %79 {offsets = [0, 0], sizes = [120, 64], strides = [1, 1]} : vector<144x64xbf16> to vector<120x64xbf16>
    %81 = vector.extract_strided_slice %79 {offsets = [1, 0], sizes = [120, 64], strides = [1, 1]} : vector<144x64xbf16> to vector<120x64xbf16>
    %82 = arith.maximumf %80, %81 : vector<120x64xbf16>
    %83 = vector.extract_strided_slice %79 {offsets = [16, 0], sizes = [120, 64], strides = [1, 1]} : vector<144x64xbf16> to vector<120x64xbf16>
    %84 = arith.maximumf %82, %83 : vector<120x64xbf16>
    %85 = vector.extract_strided_slice %79 {offsets = [17, 0], sizes = [120, 64], strides = [1, 1]} : vector<144x64xbf16> to vector<120x64xbf16>
    %86 = arith.maximumf %84, %85 : vector<120x64xbf16>
    %cst_32 = arith.constant 0.000000e+00 : f32
    %87 = vector.broadcast %cst_32 : f32 to vector<48x128xf32>
    %88 = vector.extract_strided_slice %86 {offsets = [0, 0], sizes = [48, 64], strides = [1, 1]} : vector<120x64xbf16> to vector<48x64xbf16>
    %89 = vector.extract_strided_slice %86 {offsets = [2, 0], sizes = [48, 64], strides = [1, 1]} : vector<120x64xbf16> to vector<48x64xbf16>
    %90 = vector.extract_strided_slice %86 {offsets = [4, 0], sizes = [48, 64], strides = [1, 1]} : vector<120x64xbf16> to vector<48x64xbf16>
    %91 = tpu.concatenate %88, %89, %90 in 1 : vector<48x64xbf16>, vector<48x64xbf16>, vector<48x64xbf16> -> vector<48x192xbf16>
    %92 = vector.extract_strided_slice %2 {offsets = [0, 0, 0], sizes = [1, 192, 128], strides = [1, 1, 1]} : vector<3x192x128xbf16> to vector<1x192x128xbf16>
    %93 = vector.shape_cast %92 : vector<1x192x128xbf16> to vector<192x128xbf16>
    %cst_33 = arith.constant dense<0.000000e+00> : vector<48x128xf32>
    %94 = tpu.matmul %91, %93, %cst_33 {dimension_numbers = #tpu.dot_dimension_numbers<[1], [0], [0], [1], [0, 0, 1, 1], [], []>} : vector<48x192xbf16>, vector<192x128xbf16>, vector<48x128xf32> -> vector<48x128xf32>
    %95 = arith.addf %87, %94 : vector<48x128xf32>
    %96 = vector.extract_strided_slice %86 {offsets = [32, 0], sizes = [48, 64], strides = [1, 1]} : vector<120x64xbf16> to vector<48x64xbf16>
    %97 = vector.extract_strided_slice %86 {offsets = [34, 0], sizes = [48, 64], strides = [1, 1]} : vector<120x64xbf16> to vector<48x64xbf16>
    %98 = vector.extract_strided_slice %86 {offsets = [36, 0], sizes = [48, 64], strides = [1, 1]} : vector<120x64xbf16> to vector<48x64xbf16>
    %99 = tpu.concatenate %96, %97, %98 in 1 : vector<48x64xbf16>, vector<48x64xbf16>, vector<48x64xbf16> -> vector<48x192xbf16>
    %100 = vector.extract_strided_slice %2 {offsets = [1, 0, 0], sizes = [1, 192, 128], strides = [1, 1, 1]} : vector<3x192x128xbf16> to vector<1x192x128xbf16>
    %101 = vector.shape_cast %100 : vector<1x192x128xbf16> to vector<192x128xbf16>
    %cst_34 = arith.constant dense<0.000000e+00> : vector<48x128xf32>
    %102 = tpu.matmul %99, %101, %cst_34 {dimension_numbers = #tpu.dot_dimension_numbers<[1], [0], [0], [1], [0, 0, 1, 1], [], []>} : vector<48x192xbf16>, vector<192x128xbf16>, vector<48x128xf32> -> vector<48x128xf32>
    %103 = arith.addf %95, %102 : vector<48x128xf32>
    %104 = vector.extract_strided_slice %86 {offsets = [64, 0], sizes = [48, 64], strides = [1, 1]} : vector<120x64xbf16> to vector<48x64xbf16>
    %105 = vector.extract_strided_slice %86 {offsets = [66, 0], sizes = [48, 64], strides = [1, 1]} : vector<120x64xbf16> to vector<48x64xbf16>
    %106 = vector.extract_strided_slice %86 {offsets = [68, 0], sizes = [48, 64], strides = [1, 1]} : vector<120x64xbf16> to vector<48x64xbf16>
    %107 = tpu.concatenate %104, %105, %106 in 1 : vector<48x64xbf16>, vector<48x64xbf16>, vector<48x64xbf16> -> vector<48x192xbf16>
    %108 = vector.extract_strided_slice %2 {offsets = [2, 0, 0], sizes = [1, 192, 128], strides = [1, 1, 1]} : vector<3x192x128xbf16> to vector<1x192x128xbf16>
    %109 = vector.shape_cast %108 : vector<1x192x128xbf16> to vector<192x128xbf16>
    %cst_35 = arith.constant dense<0.000000e+00> : vector<48x128xf32>
    %110 = tpu.matmul %107, %109, %cst_35 {dimension_numbers = #tpu.dot_dimension_numbers<[1], [0], [0], [1], [0, 0, 1, 1], [], []>} : vector<48x192xbf16>, vector<192x128xbf16>, vector<48x128xf32> -> vector<48x128xf32>
    %111 = arith.addf %103, %110 : vector<48x128xf32>
    %112 = vector.broadcast %5 : vector<1x128xf32> to vector<48x128xf32>
    %113 = arith.addf %111, %112 : vector<48x128xf32>
    %cst_36 = arith.constant 0.000000e+00 : f32
    %114 = vector.broadcast %cst_36 : f32 to vector<48x128xf32>
    %115 = arith.maximumf %113, %114 : vector<48x128xf32>
    %116 = arith.truncf %115 : vector<48x128xf32> to vector<48x128xbf16>
    %117 = vector.extract_strided_slice %116 {offsets = [0, 0], sizes = [8, 128], strides = [1, 1]} : vector<48x128xbf16> to vector<8x128xbf16>
    %118 = vector.extract_strided_slice %116 {offsets = [2, 0], sizes = [8, 128], strides = [1, 1]} : vector<48x128xbf16> to vector<8x128xbf16>
    %119 = arith.maximumf %117, %118 : vector<8x128xbf16>
    %120 = vector.extract_strided_slice %116 {offsets = [32, 0], sizes = [8, 128], strides = [1, 1]} : vector<48x128xbf16> to vector<8x128xbf16>
    %121 = arith.maximumf %119, %120 : vector<8x128xbf16>
    %122 = vector.extract_strided_slice %116 {offsets = [34, 0], sizes = [8, 128], strides = [1, 1]} : vector<48x128xbf16> to vector<8x128xbf16>
    %123 = arith.maximumf %121, %122 : vector<8x128xbf16>
    %cst_37 = arith.constant dense<0.000000e+00> : vector<1x128xf32>
    %124 = tpu.matmul %6, %123, %cst_37 {dimension_numbers = #tpu.dot_dimension_numbers<[1], [0], [0], [1], [0, 0, 1, 1], [], []>} : vector<1x8xbf16>, vector<8x128xbf16>, vector<1x128xf32> -> vector<1x128xf32>
    %cst_38 = arith.constant 1.000000e+00 : f32
    %125 = vector.broadcast %cst_38 : f32 to vector<1x128xf32>
    %126 = arith.mulf %124, %125 : vector<1x128xf32>
    %127 = arith.truncf %126 : vector<1x128xf32> to vector<1x128xbf16>
    %c0_39 = arith.constant 0 : index
    %c0_40 = arith.constant 0 : index
    %128 = vector.load %arg9[%c0_39, %c0_40] : memref<128x128xbf16, #tpu.memory_space<vmem>>, vector<128x128xbf16>
    %cst_41 = arith.constant dense<0.000000e+00> : vector<1x128xf32>
    %129 = tpu.matmul %127, %128, %cst_41 {dimension_numbers = #tpu.dot_dimension_numbers<[1], [0], [0], [1], [0, 0, 1, 1], [], []>} : vector<1x128xbf16>, vector<128x128xbf16>, vector<1x128xf32> -> vector<1x128xf32>
    %c0_42 = arith.constant 0 : index
    %c0_43 = arith.constant 0 : index
    %130 = vector.load %arg10[%c0_42, %c0_43] : memref<1x128xf32, #tpu.memory_space<vmem>>, vector<1x128xf32>
    %131 = arith.addf %129, %130 : vector<1x128xf32>
    %c0_44 = arith.constant 0 : index
    %c0_45 = arith.constant 0 : index
    %c0_46 = arith.constant 0 : index
    %132 = vector.load %arg11[%c0_44, %c0_45, %c0_46] : memref<1x1x128xf32, #tpu.memory_space<vmem>>, vector<1x1x128xf32>
    %133 = vector.shape_cast %132 : vector<1x1x128xf32> to vector<1x128xf32>
    %134 = vector.shape_cast %131 : vector<1x128xf32> to vector<1x1x128xf32>
    tpu.vector_store %arg11[%c0_44, %c0_45, %c0_46], %134 {strides = array<i32>} : memref<1x1x128xf32, #tpu.memory_space<vmem>>, vector<1x1x128xf32>,
    return
  }
  func.func @transform_0(%arg0: i32) -> (i32, i32, i32) {
    %c0_i32 = arith.constant 0 : i32
    %c0_i32_0 = arith.constant 0 : i32
    %c0_i32_1 = arith.constant 0 : i32
    return %arg0, %c0_i32, %c0_i32_0 : i32, i32, i32
  }
  func.func @transform_1(%arg0: i32) -> (i32, i32) {
    %c0_i32 = arith.constant 0 : i32
    %c0_i32_0 = arith.constant 0 : i32
    %c0_i32_1 = arith.constant 0 : i32
    return %c0_i32, %c0_i32_0 : i32, i32
  }
  func.func @transform_2(%arg0: i32) -> (i32, i32, i32) {
    %c0_i32 = arith.constant 0 : i32
    %c0_i32_0 = arith.constant 0 : i32
    %c0_i32_1 = arith.constant 0 : i32
    %c0_i32_2 = arith.constant 0 : i32
    return %c0_i32, %c0_i32_0, %c0_i32_1 : i32, i32, i32
  }
  func.func @transform_3(%arg0: i32) -> (i32, i32) {
    %c0_i32 = arith.constant 0 : i32
    %c0_i32_0 = arith.constant 0 : i32
    %c0_i32_1 = arith.constant 0 : i32
    return %c0_i32, %c0_i32_0 : i32, i32
  }
  func.func @transform_4(%arg0: i32) -> (i32, i32, i32) {
    %c0_i32 = arith.constant 0 : i32
    %c0_i32_0 = arith.constant 0 : i32
    %c0_i32_1 = arith.constant 0 : i32
    %c0_i32_2 = arith.constant 0 : i32
    return %c0_i32, %c0_i32_0, %c0_i32_1 : i32, i32, i32
  }
  func.func @transform_5(%arg0: i32) -> (i32, i32) {
    %c0_i32 = arith.constant 0 : i32
    %c0_i32_0 = arith.constant 0 : i32
    %c0_i32_1 = arith.constant 0 : i32
    return %c0_i32, %c0_i32_0 : i32, i32
  }
  func.func @transform_6(%arg0: i32) -> (i32, i32, i32) {
    %c0_i32 = arith.constant 0 : i32
    %c0_i32_0 = arith.constant 0 : i32
    %c0_i32_1 = arith.constant 0 : i32
    %c0_i32_2 = arith.constant 0 : i32
    return %c0_i32, %c0_i32_0, %c0_i32_1 : i32, i32, i32
  }
  func.func @transform_7(%arg0: i32) -> (i32, i32) {
    %c0_i32 = arith.constant 0 : i32
    %c0_i32_0 = arith.constant 0 : i32
    %c0_i32_1 = arith.constant 0 : i32
    return %c0_i32, %c0_i32_0 : i32, i32
  }
  func.func @transform_8(%arg0: i32) -> (i32, i32) {
    %c0_i32 = arith.constant 0 : i32
    %c0_i32_0 = arith.constant 0 : i32
    %c0_i32_1 = arith.constant 0 : i32
    return %c0_i32, %c0_i32_0 : i32, i32
  }
  func.func @transform_9(%arg0: i32) -> (i32, i32) {
    %c0_i32 = arith.constant 0 : i32
    %c0_i32_0 = arith.constant 0 : i32
    %c0_i32_1 = arith.constant 0 : i32
    return %c0_i32, %c0_i32_0 : i32, i32
  }
  func.func @transform_10(%arg0: i32) -> (i32, i32, i32) {
    %c0_i32 = arith.constant 0 : i32
    %c0_i32_0 = arith.constant 0 : i32
    %c0_i32_1 = arith.constant 0 : i32
    return %arg0, %c0_i32, %c0_i32_0 : i32, i32, i32
  }
}

</mosaic_0001>

<llo_original>
// kernel: base_model_forward.1
$region0: #{base_model_forward.1}
  #allocation0 [shape = 'u32[]', space=smem, size = 0x4, offset = 0x4, fixed_abs, tag = 'smem constant byte address 0x4 - core index']
  #allocation1 [shape = 'u32[144,128]{1,0:T(1,128)}', space=vmem, size = 0x12000, scoped, tag = 'internal scratch']
  %s0 = inlined_call_operand.vmem [shape: bf16[2,280,21], index: 0, kind: input, shape index: {}]
  %s1 = inlined_call_operand.vmem [shape: bf16[1,8], index: 1, kind: input, shape index: {}]
  %s2 = inlined_call_operand.vmem [shape: bf16[7,21,32], index: 2, kind: input, shape index: {}]
  %s3 = inlined_call_operand.vmem [shape: f32[1,32], index: 3, kind: input, shape index: {}]
  %s4 = inlined_call_operand.vmem [shape: bf16[3,96,64], index: 4, kind: input, shape index: {}]
  %s5 = inlined_call_operand.vmem [shape: f32[1,64], index: 5, kind: input, shape index: {}]
  %s6 = inlined_call_operand.vmem [shape: bf16[3,192,128], index: 6, kind: input, shape index: {}]
  %s7 = inlined_call_operand.vmem [shape: f32[1,128], index: 7, kind: input, shape index: {}]
  %s8 = inlined_call_operand.vmem [shape: bf16[128,128], index: 8, kind: input, shape index: {}]
  %s9 = inlined_call_operand.vmem [shape: f32[1,128], index: 9, kind: input, shape index: {}]
  %s10 = inlined_call_operand.hbm [shape: f32[2,1,128], index: 10, kind: output, shape index: {}]
  %s11 = sld [smem:[#allocation0]]
  $region73: #{base_model_forward.1} parent=0
    _
  %s13 = ssub.s32 1, %s11
  %s14 = scalar_select 0, %s13, %s11
  $region1: #{base_model_forward.1} parent=0
    #allocation2 [shape = 'u8[1024]{0}', space=vmem, size = 0x400, scoped, tag = 'output window, operand 0']
    #allocation3 [shape = 's32[2]{0}', space=sflag, size = 0x8, scoped, tag = 'scoped memory for base_model_forward.1']
    %15 = vsyncpa [#allocation3], 0
    %s16 = scalar_lea.sflag [#allocation3], 1
    %17 = vsyncpa %s16, 0
    loop: start=0, step=1, limit=4
    $region2: #{base_model_forward.1} parent=1 // loop_pre_header
      _
    $region3: #{base_model_forward.1} parent=1 // loop_header
      %s19 = sphi 0, %s23
      %p20 = scmp.ge.s32.totalorder %s19, 4
      %s29 = sphi 0, %s31
      %s32 = sphi 0, %s29
      %s33 = sphi 0, %s32
      %s49 = sphi 0, %s33
      %s53 = sphi 0, %s53
      %s55 = sphi 0, %s53
      %s56 = sphi 0, %s55
      %s70 = sphi 0, %s56
      %s74 = sphi 0, %s74
      %s76 = sphi 0, %s74
      %s77 = sphi 0, %s76
      %s91 = sphi 0, %s77
      %s95 = sphi 0, %s95
      %s97 = sphi 0, %s95
      %s98 = sphi 0, %s97
      %s112 = sphi 0, %s98
      %s116 = sphi 0, %s116
      %s118 = sphi 0, %s116
      %s119 = sphi 0, %s118
      %s133 = sphi 0, %s119
      %s137 = sphi 0, %s137
      %s139 = sphi 0, %s137
      %s140 = sphi 0, %s139
      %s154 = sphi 0, %s140
      %s158 = sphi 0, %s158
      %s160 = sphi 0, %s158
      %s161 = sphi 0, %s160
      %s175 = sphi 0, %s161
      %s179 = sphi 0, %s179
      %s181 = sphi 0, %s179
      %s182 = sphi 0, %s181
      %s196 = sphi 0, %s182
      %s200 = sphi 0, %s200
      %s202 = sphi 0, %s200
      %s203 = sphi 0, %s202
      %s217 = sphi 0, %s203
      %s221 = sphi 0, %s221
      %s223 = sphi 0, %s221
      %s224 = sphi 0, %s223
      %s238 = sphi 0, %s224
      %s244 = sphi 0, %s246
      %s247 = sphi 0, %s244
      %s248 = sphi 0, %s247
      %s264 = sphi 0, %s248
    $region4: #{base_model_forward.1} parent=1 // loop_header_branch
      %22 = sbr.rel (%p20) target = $region8
    $region5: #{base_model_forward.1} parent=1 // loop_body
      %s24 = ssub.s32 %s19, 1
      %s25 = ssub.s32 %s19, 2
      %s26 = sadd.s32 %s19, 1
      %s27 = ssub.s32 %s19, %s26
      %p28 = scmp.eq.s32.totalorder %s27, 0
      %s30 = sadd.s32 %s29, 1
      %s31 = scalar_select %p28, %s29, %s30
      %p34 = pneg %p28
      %p35 = scmp.eq.s32.totalorder %s19, 1
      %p36 = por %p34, %p35
      %p37 = scmp.ne.s32.totalorder %s29, %s32
      %p38 = scmp.eq.s32.totalorder %s19, 0
      %p39 = por %p37, %p38
      %p40 = scmp.ne.s32.totalorder %s29, %s32
      %p41 = scmp.eq.s32.totalorder %s24, 1
      %p42 = por %p40, %p41
      %p43 = scmp.ne.s32.totalorder %s32, %s33
      %p44 = scmp.eq.s32.totalorder %s24, 0
      %p45 = por %p43, %p44
      %p46 = scmp.ne.s32.totalorder %s32, %s33
      %p47 = scmp.eq.s32.totalorder %s25, 1
      %p48 = por %p46, %p47
      %p50 = scmp.ne.s32.totalorder %s33, %s49
      %p51 = scmp.eq.s32.totalorder %s25, 0
      %p52 = por %p50, %p51
      %s54 = sadd.s32 %s53, 1
      %p57 = scmp.eq.s32.totalorder %s19, 1
      %p58 = scmp.ne.s32.totalorder %s53, %s55
      %p59 = scmp.eq.s32.totalorder %s19, 0
      %p60 = por %p58, %p59
      %p61 = scmp.ne.s32.totalorder %s53, %s55
      %p62 = scmp.eq.s32.totalorder %s24, 1
      %p63 = por %p61, %p62
      %p64 = scmp.ne.s32.totalorder %s55, %s56
      %p65 = scmp.eq.s32.totalorder %s24, 0
      %p66 = por %p64, %p65
      %p67 = scmp.ne.s32.totalorder %s55, %s56
      %p68 = scmp.eq.s32.totalorder %s25, 1
      %p69 = por %p67, %p68
      %p71 = scmp.ne.s32.totalorder %s56, %s70
      %p72 = scmp.eq.s32.totalorder %s25, 0
      %p73 = por %p71, %p72
      %s75 = sadd.s32 %s74, 1
      %p78 = scmp.eq.s32.totalorder %s19, 1
      %p79 = scmp.ne.s32.totalorder %s74, %s76
      %p80 = scmp.eq.s32.totalorder %s19, 0
      %p81 = por %p79, %p80
      %p82 = scmp.ne.s32.totalorder %s74, %s76
      %p83 = scmp.eq.s32.totalorder %s24, 1
      %p84 = por %p82, %p83
      %p85 = scmp.ne.s32.totalorder %s76, %s77
      %p86 = scmp.eq.s32.totalorder %s24, 0
      %p87 = por %p85, %p86
      %p88 = scmp.ne.s32.totalorder %s76, %s77
      %p89 = scmp.eq.s32.totalorder %s25, 1
      %p90 = por %p88, %p89
      %p92 = scmp.ne.s32.totalorder %s77, %s91
      %p93 = scmp.eq.s32.totalorder %s25, 0
      %p94 = por %p92, %p93
      %s96 = sadd.s32 %s95, 1
      %p99 = scmp.eq.s32.totalorder %s19, 1
      %p100 = scmp.ne.s32.totalorder %s95, %s97
      %p101 = scmp.eq.s32.totalorder %s19, 0
      %p102 = por %p100, %p101
      %p103 = scmp.ne.s32.totalorder %s95, %s97
      %p104 = scmp.eq.s32.totalorder %s24, 1
      %p105 = por %p103, %p104
      %p106 = scmp.ne.s32.totalorder %s97, %s98
      %p107 = scmp.eq.s32.totalorder %s24, 0
      %p108 = por %p106, %p107
      %p109 = scmp.ne.s32.totalorder %s97, %s98
      %p110 = scmp.eq.s32.totalorder %s25, 1
      %p111 = por %p109, %p110
      %p113 = scmp.ne.s32.totalorder %s98, %s112
      %p114 = scmp.eq.s32.totalorder %s25, 0
      %p115 = por %p113, %p114
      %s117 = sadd.s32 %s116, 1
      %p120 = scmp.eq.s32.totalorder %s19, 1
      %p121 = scmp.ne.s32.totalorder %s116, %s118
      %p122 = scmp.eq.s32.totalorder %s19, 0
      %p123 = por %p121, %p122
      %p124 = scmp.ne.s32.totalorder %s116, %s118
      %p125 = scmp.eq.s32.totalorder %s24, 1
      %p126 = por %p124, %p125
      %p127 = scmp.ne.s32.totalorder %s118, %s119
      %p128 = scmp.eq.s32.totalorder %s24, 0
      %p129 = por %p127, %p128
      %p130 = scmp.ne.s32.totalorder %s118, %s119
      %p131 = scmp.eq.s32.totalorder %s25, 1
      %p132 = por %p130, %p131
      %p134 = scmp.ne.s32.totalorder %s119, %s133
      %p135 = scmp.eq.s32.totalorder %s25, 0
      %p136 = por %p134, %p135
      %s138 = sadd.s32 %s137, 1
      %p141 = scmp.eq.s32.totalorder %s19, 1
      %p142 = scmp.ne.s32.totalorder %s137, %s139
      %p143 = scmp.eq.s32.totalorder %s19, 0
      %p144 = por %p142, %p143
      %p145 = scmp.ne.s32.totalorder %s137, %s139
      %p146 = scmp.eq.s32.totalorder %s24, 1
      %p147 = por %p145, %p146
      %p148 = scmp.ne.s32.totalorder %s139, %s140
      %p149 = scmp.eq.s32.totalorder %s24, 0
      %p150 = por %p148, %p149
      %p151 = scmp.ne.s32.totalorder %s139, %s140
      %p152 = scmp.eq.s32.totalorder %s25, 1
      %p153 = por %p151, %p152
      %p155 = scmp.ne.s32.totalorder %s140, %s154
      %p156 = scmp.eq.s32.totalorder %s25, 0
      %p157 = por %p155, %p156
      %s159 = sadd.s32 %s158, 1
      %p162 = scmp.eq.s32.totalorder %s19, 1
      %p163 = scmp.ne.s32.totalorder %s158, %s160
      %p164 = scmp.eq.s32.totalorder %s19, 0
      %p165 = por %p163, %p164
      %p166 = scmp.ne.s32.totalorder %s158, %s160
      %p167 = scmp.eq.s32.totalorder %s24, 1
      %p168 = por %p166, %p167
      %p169 = scmp.ne.s32.totalorder %s160, %s161
      %p170 = scmp.eq.s32.totalorder %s24, 0
      %p171 = por %p169, %p170
      %p172 = scmp.ne.s32.totalorder %s160, %s161
      %p173 = scmp.eq.s32.totalorder %s25, 1
      %p174 = por %p172, %p173
      %p176 = scmp.ne.s32.totalorder %s161, %s175
      %p177 = scmp.eq.s32.totalorder %s25, 0
      %p178 = por %p176, %p177
      %s180 = sadd.s32 %s179, 1
      %p183 = scmp.eq.s32.totalorder %s19, 1
      %p184 = scmp.ne.s32.totalorder %s179, %s181
      %p185 = scmp.eq.s32.totalorder %s19, 0
      %p186 = por %p184, %p185
      %p187 = scmp.ne.s32.totalorder %s179, %s181
      %p188 = scmp.eq.s32.totalorder %s24, 1
      %p189 = por %p187, %p188
      %p190 = scmp.ne.s32.totalorder %s181, %s182
      %p191 = scmp.eq.s32.totalorder %s24, 0
      %p192 = por %p190, %p191
      %p193 = scmp.ne.s32.totalorder %s181, %s182
      %p194 = scmp.eq.s32.totalorder %s25, 1
      %p195 = por %p193, %p194
      %p197 = scmp.ne.s32.totalorder %s182, %s196
      %p198 = scmp.eq.s32.totalorder %s25, 0
      %p199 = por %p197, %p198
      %s201 = sadd.s32 %s200, 1
      %p204 = scmp.eq.s32.totalorder %s19, 1
      %p205 = scmp.ne.s32.totalorder %s200, %s202
      %p206 = scmp.eq.s32.totalorder %s19, 0
      %p207 = por %p205, %p206
      %p208 = scmp.ne.s32.totalorder %s200, %s202
      %p209 = scmp.eq.s32.totalorder %s24, 1
      %p210 = por %p208, %p209
      %p211 = scmp.ne.s32.totalorder %s202, %s203
      %p212 = scmp.eq.s32.totalorder %s24, 0
      %p213 = por %p211, %p212
      %p214 = scmp.ne.s32.totalorder %s202, %s203
      %p215 = scmp.eq.s32.totalorder %s25, 1
      %p216 = por %p214, %p215
      %p218 = scmp.ne.s32.totalorder %s203, %s217
      %p219 = scmp.eq.s32.totalorder %s25, 0
      %p220 = por %p218, %p219
      %s222 = sadd.s32 %s221, 1
      %p225 = scmp.eq.s32.totalorder %s19, 1
      %p226 = scmp.ne.s32.totalorder %s221, %s223
      %p227 = scmp.eq.s32.totalorder %s19, 0
      %p228 = por %p226, %p227
      %p229 = scmp.ne.s32.totalorder %s221, %s223
      %p230 = scmp.eq.s32.totalorder %s24, 1
      %p231 = por %p229, %p230
      %p232 = scmp.ne.s32.totalorder %s223, %s224
      %p233 = scmp.eq.s32.totalorder %s24, 0
      %p234 = por %p232, %p233
      %p235 = scmp.ne.s32.totalorder %s223, %s224
      %p236 = scmp.eq.s32.totalorder %s25, 1
      %p237 = por %p235, %p236
      %p239 = scmp.ne.s32.totalorder %s224, %s238
      %p240 = scmp.eq.s32.totalorder %s25, 0
      %p241 = por %p239, %p240
      %s242 = ssub.s32 %s19, %s26
      %p243 = scmp.eq.s32.totalorder %s242, 0
      %s245 = sadd.s32 %s244, 1
      %s246 = scalar_select %p243, %s244, %s245
      %p249 = pneg %p243
      %p250 = scmp.eq.s32.totalorder %s19, 1
      %p251 = por %p249, %p250
      %p252 = scmp.ne.s32.totalorder %s244, %s247
      %p253 = scmp.eq.s32.totalorder %s19, 0
      %p254 = por %p252, %p253
      %p255 = scmp.ne.s32.totalorder %s244, %s247
      %p256 = scmp.eq.s32.totalorder %s24, 1
      %p257 = por %p255, %p256
      %p258 = scmp.ne.s32.totalorder %s247, %s248
      %p259 = scmp.eq.s32.totalorder %s24, 0
      %p260 = por %p258, %p259
      %p261 = scmp.ne.s32.totalorder %s247, %s248
      %p262 = scmp.eq.s32.totalorder %s25, 1
      %p263 = por %p261, %p262
      %p265 = scmp.ne.s32.totalorder %s248, %s264
      %p266 = scmp.eq.s32.totalorder %s25, 0
      %p267 = por %p265, %p266
      %p268 = scmp.le.s32.totalorder 1, %s19
      %p269 = scmp.lt.s32.totalorder %s19, 3
      %p270 = pnand %p268, %p269
      %p271 = pneg %p270
      // Predicated region
      $region9: #{base_model_forward.1} parent=5 // pred_check
        _
      $region10: #{base_model_forward.1} parent=5 // pred_check_branch
        %273 = sbr.rel (%p270) target = $region12
      $region11: #{base_model_forward.1} parent=5 // pred_region
        %s274 = ssub.s32 %s19, 1
        // Predicated region
        $region13: #{base_model_forward.1} parent=11 // pred_check
          %p275 = pneg %p66
        $region14: #{base_model_forward.1} parent=11 // pred_check_branch
          %277 = sbr.rel (%p275) target = $region16
        $region15: #{base_model_forward.1} parent=11 // pred_region
          _
        $region16: #{base_model_forward.1} parent=11 // pred_fallthru
          _
        // Predicated region
        $region17: #{base_model_forward.1} parent=11 // pred_check
          %p278 = pneg %p87
        $region18: #{base_model_forward.1} parent=11 // pred_check_branch
          %280 = sbr.rel (%p278) target = $region20
        $region19: #{base_model_forward.1} parent=11 // pred_region
          _
        $region20: #{base_model_forward.1} parent=11 // pred_fallthru
          _
        // Predicated region
        $region21: #{base_model_forward.1} parent=11 // pred_check
          %p281 = pneg %p108
        $region22: #{base_model_forward.1} parent=11 // pred_check_branch
          %283 = sbr.rel (%p281) target = $region24
        $region23: #{base_model_forward.1} parent=11 // pred_region
          _
        $region24: #{base_model_forward.1} parent=11 // pred_fallthru
          _
        // Predicated region
        $region25: #{base_model_forward.1} parent=11 // pred_check
          %p284 = pneg %p129
        $region26: #{base_model_forward.1} parent=11 // pred_check_branch
          %286 = sbr.rel (%p284) target = $region28
        $region27: #{base_model_forward.1} parent=11 // pred_region
          _
        $region28: #{base_model_forward.1} parent=11 // pred_fallthru
          _
        // Predicated region
        $region29: #{base_model_forward.1} parent=11 // pred_check
          %p287 = pneg %p150
        $region30: #{base_model_forward.1} parent=11 // pred_check_branch
          %289 = sbr.rel (%p287) target = $region32
        $region31: #{base_model_forward.1} parent=11 // pred_region
          _
        $region32: #{base_model_forward.1} parent=11 // pred_fallthru
          _
        // Predicated region
        $region33: #{base_model_forward.1} parent=11 // pred_check
          %p290 = pneg %p171
        $region34: #{base_model_forward.1} parent=11 // pred_check_branch
          %292 = sbr.rel (%p290) target = $region36
        $region35: #{base_model_forward.1} parent=11 // pred_region
          _
        $region36: #{base_model_forward.1} parent=11 // pred_fallthru
          _
        // Predicated region
        $region37: #{base_model_forward.1} parent=11 // pred_check
          %p293 = pneg %p192
        $region38: #{base_model_forward.1} parent=11 // pred_check_branch
          %295 = sbr.rel (%p293) target = $region40
        $region39: #{base_model_forward.1} parent=11 // pred_region
          _
        $region40: #{base_model_forward.1} parent=11 // pred_fallthru
          _
        // Predicated region
        $region41: #{base_model_forward.1} parent=11 // pred_check
          %p296 = pneg %p213
        $region42: #{base_model_forward.1} parent=11 // pred_check_branch
          %298 = sbr.rel (%p296) target = $region44
        $region43: #{base_model_forward.1} parent=11 // pred_region
          _
        $region44: #{base_model_forward.1} parent=11 // pred_fallthru
          _
        // Predicated region
        $region45: #{base_model_forward.1} parent=11 // pred_check
          %p299 = pneg %p234
        $region46: #{base_model_forward.1} parent=11 // pred_check_branch
          %301 = sbr.rel (%p299) target = $region48
        $region47: #{base_model_forward.1} parent=11 // pred_region
          _
        $region48: #{base_model_forward.1} parent=11 // pred_fallthru
          _
      $region12: #{base_model_forward.1} parent=5 // pred_fallthru
        _
      %p302 = scmp.lt.s32.totalorder %s19, 2
      // Predicated region
      $region49: #{base_model_forward.1} parent=5 // pred_check
        %p303 = pneg %p302
      $region50: #{base_model_forward.1} parent=5 // pred_check_branch
        %305 = sbr.rel (%p303) target = $region52
      $region51: #{base_model_forward.1} parent=5 // pred_region
        // Predicated region
        $region53: #{base_model_forward.1} parent=51 // pred_check
          %p306 = pneg %p39
        $region54: #{base_model_forward.1} parent=51 // pred_check_branch
          %308 = sbr.rel (%p306) target = $region56
        $region55: #{base_model_forward.1} parent=51 // pred_region
          %p309 = scmp.lt.s32.totalorder %s19, 1
          %s310 = scalar_select %p309, %s19, 1
          %s311 = smul.addr %s310, 35
          %s312 = smul.addr %s311, 4
          %s313 = scalar_lea.vmem %s0, %s312
        $region56: #{base_model_forward.1} parent=51 // pred_fallthru
          _
      $region52: #{base_model_forward.1} parent=5 // pred_fallthru
        _
      %p314 = scmp.le.s32.totalorder 1, %s19
      %p315 = scmp.lt.s32.totalorder %s19, 3
      %p316 = pnand %p314, %p315
      %p317 = pneg %p316
      // Predicated region
      $region57: #{base_model_forward.1} parent=5 // pred_check
        _
      $region58: #{base_model_forward.1} parent=5 // pred_check_branch
        %319 = sbr.rel (%p316) target = $region60
      $region59: #{base_model_forward.1} parent=5 // pred_region
        %s320 = ssub.s32 %s19, 1
        %p321 = scmp.lt.s32.totalorder %s24, 1
        %s322 = scalar_select %p321, %s24, 1
        %s323 = smul.addr %s322, 35
        %s324 = smul.addr %s323, 4
        %s325 = scalar_lea.vmem %s0, %s324
        %p326 = pneg %p45
        %p327 = pneg %p42
        %p328 = pneg %p66
        %p329 = pneg %p63
        %p330 = pneg %p87
        %p331 = pneg %p84
        %p332 = pneg %p108
        %p333 = pneg %p105
        %p334 = pneg %p129
        %p335 = pneg %p126
        %p336 = pneg %p150
        %p337 = pneg %p147
        %p338 = pneg %p171
        %p339 = pneg %p168
        %p340 = pneg %p192
        %p341 = pneg %p189
        %p342 = pneg %p213
        %p343 = pneg %p210
        %p344 = pneg %p234
        %p345 = pneg %p231
        %p346 = pneg %p260
        %p347 = pneg %p257
        %s348 = sand.u32 %s247, 1
        %s349 = scalar_lea.sflag [#allocation3], %s348
        %s350 = sand.u32 %s247, 1
        %s351 = scalar_lea.vmem [#allocation2], %s350
        %p352 = scmp.lt.s32.totalorder %s24, 1
        %s353 = scalar_select %p352, %s24, 1
        %s354 = smul.addr %s353, 35
        %s355 = smul.addr %s354, 4
        %s356 = scalar_lea.vmem %s0, %s355
        %v358 = vld [vmem:[%s2] sm:$0xf]
        %v359 = vld [vmem:[%s2 + $0x4] sm:$0xf]
        %v360 = vld [vmem:[%s2 + $0x8] sm:$0x7]
        %v361 = vld [vmem:[%s2 + $0xc] sm:$0xf]
        %v362 = vld [vmem:[%s2 + $0x10] sm:$0xf]
        %v363 = vld [vmem:[%s2 + $0x14] sm:$0x7]
        %v364 = vld [vmem:[%s2 + $0x18] sm:$0xf]
        %v365 = vld [vmem:[%s2 + $0x1c] sm:$0xf]
        %v366 = vld [vmem:[%s2 + $0x20] sm:$0x7]
        %v367 = vld [vmem:[%s2 + $0x24] sm:$0xf]
        %v368 = vld [vmem:[%s2 + $0x28] sm:$0xf]
        %v369 = vld [vmem:[%s2 + $0x2c] sm:$0x7]
        %v370 = vld [vmem:[%s2 + $0x30] sm:$0xf]
        %v371 = vld [vmem:[%s2 + $0x34] sm:$0xf]
        %v372 = vld [vmem:[%s2 + $0x38] sm:$0x7]
        %v373 = vld [vmem:[%s2 + $0x3c] sm:$0xf]
        %v374 = vld [vmem:[%s2 + $0x40] sm:$0xf]
        %v375 = vld [vmem:[%s2 + $0x44] sm:$0x7]
        %v376 = vld [vmem:[%s2 + $0x48] sm:$0xf]
        %v377 = vld [vmem:[%s2 + $0x4c] sm:$0xf]
        %v378 = vld [vmem:[%s2 + $0x50] sm:$0x7]
        %v379 = vld [vmem:[%s4] sm:$0xf]
        %v380 = vld [vmem:[%s4 + $0x4] sm:$0xf]
        %v381 = vld [vmem:[%s4 + $0x8] sm:$0xf]
        %v382 = vld [vmem:[%s4 + $0xc] sm:$0xf]
        %v383 = vld [vmem:[%s4 + $0x10] sm:$0xf]
        %v384 = vld [vmem:[%s4 + $0x14] sm:$0xf]
        %v385 = vld [vmem:[%s4 + $0x18] sm:$0xf]
        %v386 = vld [vmem:[%s4 + $0x1c] sm:$0xf]
        %v387 = vld [vmem:[%s4 + $0x20] sm:$0xf]
        %v388 = vld [vmem:[%s4 + $0x24] sm:$0xf]
        %v389 = vld [vmem:[%s4 + $0x28] sm:$0xf]
        %v390 = vld [vmem:[%s4 + $0x2c] sm:$0xf]
        %v391 = vld [vmem:[%s4 + $0x30] sm:$0xf]
        %v392 = vld [vmem:[%s4 + $0x34] sm:$0xf]
        %v393 = vld [vmem:[%s4 + $0x38] sm:$0xf]
        %v394 = vld [vmem:[%s4 + $0x3c] sm:$0xf]
        %v395 = vld [vmem:[%s4 + $0x40] sm:$0xf]
        %v396 = vld [vmem:[%s4 + $0x44] sm:$0xf]
        %v397 = vld [vmem:[%s4 + $0x48] sm:$0xf]
        %v398 = vld [vmem:[%s4 + $0x4c] sm:$0xf]
        %v399 = vld [vmem:[%s4 + $0x50] sm:$0xf]
        %v400 = vld [vmem:[%s4 + $0x54] sm:$0xf]
        %v401 = vld [vmem:[%s4 + $0x58] sm:$0xf]
        %v402 = vld [vmem:[%s4 + $0x5c] sm:$0xf]
        %v403 = vld [vmem:[%s4 + $0x60] sm:$0xf]
        %v404 = vld [vmem:[%s4 + $0x64] sm:$0xf]
        %v405 = vld [vmem:[%s4 + $0x68] sm:$0xf]
        %v406 = vld [vmem:[%s4 + $0x6c] sm:$0xf]
        %v407 = vld [vmem:[%s4 + $0x70] sm:$0xf]
        %v408 = vld [vmem:[%s4 + $0x74] sm:$0xf]
        %v409 = vld [vmem:[%s4 + $0x78] sm:$0xf]
        %v410 = vld [vmem:[%s4 + $0x7c] sm:$0xf]
        %v411 = vld [vmem:[%s4 + $0x80] sm:$0xf]
        %v412 = vld [vmem:[%s4 + $0x84] sm:$0xf]
        %v413 = vld [vmem:[%s4 + $0x88] sm:$0xf]
        %v414 = vld [vmem:[%s4 + $0x8c] sm:$0xf]
        %v415 = vld [vmem:[%s6] sm:$0xf]
        %v416 = vld [vmem:[%s6 + $0x4] sm:$0xf]
        %v417 = vld [vmem:[%s6 + $0x8] sm:$0xf]
        %v418 = vld [vmem:[%s6 + $0xc] sm:$0xf]
        %v419 = vld [vmem:[%s6 + $0x10] sm:$0xf]
        %v420 = vld [vmem:[%s6 + $0x14] sm:$0xf]
        %v421 = vld [vmem:[%s6 + $0x18] sm:$0xf]
        %v422 = vld [vmem:[%s6 + $0x1c] sm:$0xf]
        %v423 = vld [vmem:[%s6 + $0x20] sm:$0xf]
        %v424 = vld [vmem:[%s6 + $0x24] sm:$0xf]
        %v425 = vld [vmem:[%s6 + $0x28] sm:$0xf]
        %v426 = vld [vmem:[%s6 + $0x2c] sm:$0xf]
        %v427 = vld [vmem:[%s6 + $0x30] sm:$0xf]
        %v428 = vld [vmem:[%s6 + $0x34] sm:$0xf]
        %v429 = vld [vmem:[%s6 + $0x38] sm:$0xf]
        %v430 = vld [vmem:[%s6 + $0x3c] sm:$0xf]
        %v431 = vld [vmem:[%s6 + $0x40] sm:$0xf]
        %v432 = vld [vmem:[%s6 + $0x44] sm:$0xf]
        %v433 = vld [vmem:[%s6 + $0x48] sm:$0xf]
        %v434 = vld [vmem:[%s6 + $0x4c] sm:$0xf]
        %v435 = vld [vmem:[%s6 + $0x50] sm:$0xf]
        %v436 = vld [vmem:[%s6 + $0x54] sm:$0xf]
        %v437 = vld [vmem:[%s6 + $0x58] sm:$0xf]
        %v438 = vld [vmem:[%s6 + $0x5c] sm:$0xf]
        %v439 = vld [vmem:[%s6 + $0x60] sm:$0xf]
        %v440 = vld [vmem:[%s6 + $0x64] sm:$0xf]
        %v441 = vld [vmem:[%s6 + $0x68] sm:$0xf]
        %v442 = vld [vmem:[%s6 + $0x6c] sm:$0xf]
        %v443 = vld [vmem:[%s6 + $0x70] sm:$0xf]
        %v444 = vld [vmem:[%s6 + $0x74] sm:$0xf]
        %v445 = vld [vmem:[%s6 + $0x78] sm:$0xf]
        %v446 = vld [vmem:[%s6 + $0x7c] sm:$0xf]
        %v447 = vld [vmem:[%s6 + $0x80] sm:$0xf]
        %v448 = vld [vmem:[%s6 + $0x84] sm:$0xf]
        %v449 = vld [vmem:[%s6 + $0x88] sm:$0xf]
        %v450 = vld [vmem:[%s6 + $0x8c] sm:$0xf]
        %v451 = vld [vmem:[%s6 + $0x90] sm:$0xf]
        %v452 = vld [vmem:[%s6 + $0x94] sm:$0xf]
        %v453 = vld [vmem:[%s6 + $0x98] sm:$0xf]
        %v454 = vld [vmem:[%s6 + $0x9c] sm:$0xf]
        %v455 = vld [vmem:[%s6 + $0xa0] sm:$0xf]
        %v456 = vld [vmem:[%s6 + $0xa4] sm:$0xf]
        %v457 = vld [vmem:[%s6 + $0xa8] sm:$0xf]
        %v458 = vld [vmem:[%s6 + $0xac] sm:$0xf]
        %v459 = vld [vmem:[%s6 + $0xb0] sm:$0xf]
        %v460 = vld [vmem:[%s6 + $0xb4] sm:$0xf]
        %v461 = vld [vmem:[%s6 + $0xb8] sm:$0xf]
        %v462 = vld [vmem:[%s6 + $0xbc] sm:$0xf]
        %v463 = vld [vmem:[%s6 + $0xc0] sm:$0xf]
        %v464 = vld [vmem:[%s6 + $0xc4] sm:$0xf]
        %v465 = vld [vmem:[%s6 + $0xc8] sm:$0xf]
        %v466 = vld [vmem:[%s6 + $0xcc] sm:$0xf]
        %v467 = vld [vmem:[%s6 + $0xd0] sm:$0xf]
        %v468 = vld [vmem:[%s6 + $0xd4] sm:$0xf]
        %v469 = vld [vmem:[%s6 + $0xd8] sm:$0xf]
        %v470 = vld [vmem:[%s6 + $0xdc] sm:$0xf]
        %v471 = vld [vmem:[%s6 + $0xe0] sm:$0xf]
        %v472 = vld [vmem:[%s6 + $0xe4] sm:$0xf]
        %v473 = vld [vmem:[%s6 + $0xe8] sm:$0xf]
        %v474 = vld [vmem:[%s6 + $0xec] sm:$0xf]
        %v475 = vld [vmem:[%s6 + $0xf0] sm:$0xf]
        %v476 = vld [vmem:[%s6 + $0xf4] sm:$0xf]
        %v477 = vld [vmem:[%s6 + $0xf8] sm:$0xf]
        %v478 = vld [vmem:[%s6 + $0xfc] sm:$0xf]
        %v479 = vld [vmem:[%s6 + $0x100] sm:$0xf]
        %v480 = vld [vmem:[%s6 + $0x104] sm:$0xf]
        %v481 = vld [vmem:[%s6 + $0x108] sm:$0xf]
        %v482 = vld [vmem:[%s6 + $0x10c] sm:$0xf]
        %v483 = vld [vmem:[%s6 + $0x110] sm:$0xf]
        %v484 = vld [vmem:[%s6 + $0x114] sm:$0xf]
        %v485 = vld [vmem:[%s6 + $0x118] sm:$0xf]
        %v486 = vld [vmem:[%s6 + $0x11c] sm:$0xf]
        %v487 = vld [vmem:[%s3] sm:$0x1]
        %v488 = vld [vmem:[%s5] sm:$0x1]
        %v489 = vld [vmem:[%s7] sm:$0x1]
        %v490 = vld [vmem:[%s1] sm:$0x1]
        %v491 = vld [vmem:[%s356] sm:$0xf]
        %v492 = vld [vmem:[%s356 + $0x4] sm:$0xf]
        %v493 = vld [vmem:[%s356 + $0x8] sm:$0xf]
        %v494 = vld [vmem:[%s356 + $0xc] sm:$0xf]
        %v495 = vld [vmem:[%s356 + $0x10] sm:$0xf]
        %v496 = vld [vmem:[%s356 + $0x14] sm:$0xf]
        %v497 = vld [vmem:[%s356 + $0x18] sm:$0xf]
        %v498 = vld [vmem:[%s356 + $0x1c] sm:$0xf]
        %v499 = vld [vmem:[%s356 + $0x20] sm:$0xf]
        %v500 = vld [vmem:[%s356 + $0x24] sm:$0xf]
        %v501 = vld [vmem:[%s356 + $0x28] sm:$0xf]
        %v502 = vld [vmem:[%s356 + $0x2c] sm:$0xf]
        %v503 = vld [vmem:[%s356 + $0x30] sm:$0xf]
        %v504 = vld [vmem:[%s356 + $0x34] sm:$0xf]
        %v505 = vld [vmem:[%s356 + $0x38] sm:$0xf]
        %v506 = vld [vmem:[%s356 + $0x3c] sm:$0xf]
        %v507 = vld [vmem:[%s356 + $0x40] sm:$0xf]
        %v508 = vld [vmem:[%s356 + $0x44] sm:$0xf]
        %v509 = vld [vmem:[%s356 + $0x48] sm:$0xf]
        %v510 = vld [vmem:[%s356 + $0x4c] sm:$0xf]
        %v511 = vld [vmem:[%s356 + $0x50] sm:$0xf]
        %v512 = vld [vmem:[%s356 + $0x54] sm:$0xf]
        %v513 = vld [vmem:[%s356 + $0x58] sm:$0xf]
        %v514 = vld [vmem:[%s356 + $0x5c] sm:$0xf]
        %v515 = vld [vmem:[%s356 + $0x60] sm:$0xf]
        %v516 = vld [vmem:[%s356 + $0x64] sm:$0xf]
        %v517 = vld [vmem:[%s356 + $0x68] sm:$0xf]
        %v518 = vld [vmem:[%s356 + $0x6c] sm:$0xf]
        %v519 = vld [vmem:[%s356 + $0x70] sm:$0xf]
        %v520 = vld [vmem:[%s356 + $0x74] sm:$0xf]
        %v521 = vld [vmem:[%s356 + $0x78] sm:$0xf]
        %v522 = vld [vmem:[%s356 + $0x7c] sm:$0xf]
        %v523 = vld [vmem:[%s356 + $0x80] sm:$0xf]
        %v524 = vld [vmem:[%s356 + $0x84] sm:$0xf]
        %v525 = vld [vmem:[%s356 + $0x88] sm:$0xf]
        %v549 = vunpack.c.l.b16 %v493
        %v550 = vunpack.c.l.b16 %v494
        %v551 = vunpack.c.l.b16 %v495
        %v552 = vunpack.c.l.b16 %v496
        %v553 = vunpack.c.l.b16 %v497
        %v554 = vunpack.c.l.b16 %v498
        %v555 = vunpack.c.l.b16 %v499
        %v556 = vunpack.c.l.b16 %v500
        %v557 = vunpack.c.l.b16 %v501
        %v558 = vunpack.c.l.b16 %v502
        %v559 = vunpack.c.l.b16 %v503
        %v560 = vunpack.c.l.b16 %v504
        %v561 = vunpack.c.l.b16 %v505
        %v562 = vunpack.c.l.b16 %v506
        %v563 = vunpack.c.l.b16 %v507
        %v564 = vunpack.c.l.b16 %v508
        %v565 = vunpack.c.l.b16 %v509
        %v566 = vunpack.c.l.b16 %v510
        %v567 = vunpack.c.l.b16 %v511
        %v568 = vunpack.c.l.b16 %v512
        %v569 = vunpack.c.l.b16 %v513
        %v570 = vunpack.c.l.b16 %v514
        %v571 = vunpack.c.l.b16 %v515
        %v572 = vpack.c.b16 %v550, %v549
        %v573 = vpack.c.b16 %v552, %v551
        %v574 = vpack.c.b16 %v554, %v553
        %v575 = vpack.c.b16 %v556, %v555
        %v576 = vpack.c.b16 %v558, %v557
        %v577 = vpack.c.b16 %v560, %v559
        %v578 = vpack.c.b16 %v562, %v561
        %v579 = vpack.c.b16 %v564, %v563
        %v580 = vpack.c.b16 %v566, %v565
        %v581 = vpack.c.b16 %v568, %v567
        %v582 = vpack.c.b16 %v570, %v569
        %v583 = vpack.c.b16 %v571, %v571
        %v587 = vunpack.c.l.b16 %v361
        %v588 = vunpack.c.l.b16 %v362
        %v589 = vunpack.c.l.b16 %v363
        %v590 = vpack.c.b16 %v588, %v587
        %v591 = vpack.c.b16 %v589, %v589
        %vm593 = vcmask 171008
        %v595 = vsel %vm593, %v572, 0
        %v598 = vsel %vm593, %v573, 0
        %v601 = vsel %vm593, %v574, 0
        %v604 = vsel %vm593, %v575, 0
        %v607 = vsel %vm593, %v576, 0
        %v610 = vsel %vm593, %v577, 0
        %v613 = vsel %vm593, %v578, 0
        %v616 = vsel %vm593, %v579, 0
        %v619 = vsel %vm593, %v580, 0
        %v622 = vsel %vm593, %v581, 0
        %v625 = vsel %vm593, %v582, 0
        %v628 = vsel %vm593, %v583, 0
        %vm630 = vcmask 1041408
        %vm631 = vcmask 1042432
        %v632 = vsel %vm630, 4294967295, 65535
        %v633 = vsel %vm631, %v632, 0
        %v635 = vand.u32 %v591, %v633
        %637 = vmatprep.subr.bf16.mxu0 0
        %638 = vmatpush1.bf16.msra.mxu0 %v590
        %639 = vmatprep.subr.bf16.mxu0 0
        %640 = vmatpush1.bf16.msra.mxu0 %v635
        %641 = vmatprep.subr.bf16.mxu0 0
        %642 = vmatpush1.bf16.msra.mxu0 0
        %643 = vmatprep.subr.bf16.mxu0 0
        %644 = vmatpush1.bf16.msra.mxu0 0
        %645 = vmatprep.subr.bf16.mxu0 0
        %646 = vmatpush1.bf16.msra.mxu0 0
        %647 = vmatprep.subr.bf16.mxu0 0
        %648 = vmatpush1.bf16.msra.mxu0 0
        %649 = vmatprep.subr.bf16.mxu0 0
        %650 = vmatpush1.bf16.msra.mxu0 0
        %651 = vmatprep.subr.bf16.mxu0 0
        %652 = vmatpush1.bf16.msra.mxu0 0
        %653 = vmatprep.subr.bf16.mxu0 0
        %654 = vmatpush1.bf16.msra.mxu0 0
        %655 = vmatprep.subr.bf16.mxu0 0
        %656 = vmatpush1.bf16.msra.mxu0 0
        %657 = vmatprep.subr.bf16.mxu0 0
        %658 = vmatpush1.bf16.msra.mxu0 0
        %659 = vmatprep.subr.bf16.mxu0 0
        %660 = vmatpush1.bf16.msra.mxu0 0
        %661 = vmatprep.subr.bf16.mxu0 0
        %662 = vmatpush1.bf16.msra.mxu0 0
        %663 = vmatprep.subr.bf16.mxu0 0
        %664 = vmatpush1.bf16.msra.mxu0 0
        %665 = vmatprep.subr.bf16.mxu0 0
        %666 = vmatpush1.bf16.msra.mxu0 0
        %667 = vmatprep.subr.bf16.mxu0 0
        %668 = vmatpush1.bf16.msra.mxu0 0
        %669 = vmatprep.mubr.bf16.mxu0 0
        %670 = vmatmul.mubr.bf16.gmra.mrb[0].mxu0 %v595
        %v671 = vpop.f32.mrb[0].mxu0
        %v672 = vadd.f32 0.0, %v671
        %v673 = vpop.f32.mrb[0].mxu0
        %v674 = vpop.f32.mrb[0].mxu0
        %v675 = vadd.f32 0.0, %v674
        %v676 = vpop.f32.mrb[0].mxu0
        %677 = vmatprep.mubr.bf16.mxu0 0
        %678 = vmatmul.mubr.bf16.gmra.mrb[0].mxu0 %v598
        %v679 = vpop.f32.mrb[0].mxu0
        %v680 = vadd.f32 0.0, %v679
        %v681 = vpop.f32.mrb[0].mxu0
        %v682 = vpop.f32.mrb[0].mxu0
        %v683 = vadd.f32 0.0, %v682
        %v684 = vpop.f32.mrb[0].mxu0
        %685 = vmatprep.mubr.bf16.mxu0 0
        %686 = vmatmul.mubr.bf16.gmra.mrb[0].mxu0 %v601
        %v687 = vpop.f32.mrb[0].mxu0
        %v688 = vadd.f32 0.0, %v687
        %v689 = vpop.f32.mrb[0].mxu0
        %v690 = vpop.f32.mrb[0].mxu0
        %v691 = vadd.f32 0.0, %v690
        %v692 = vpop.f32.mrb[0].mxu0
        %693 = vmatprep.mubr.bf16.mxu0 0
        %694 = vmatmul.mubr.bf16.gmra.mrb[0].mxu0 %v604
        %v695 = vpop.f32.mrb[0].mxu0
        %v696 = vadd.f32 0.0, %v695
        %v697 = vpop.f32.mrb[0].mxu0
        %v698 = vpop.f32.mrb[0].mxu0
        %v699 = vadd.f32 0.0, %v698
        %v700 = vpop.f32.mrb[0].mxu0
        %701 = vmatprep.mubr.bf16.mxu0 0
        %702 = vmatmul.mubr.bf16.gmra.mrb[0].mxu0 %v607
        %v703 = vpop.f32.mrb[0].mxu0
        %v704 = vadd.f32 0.0, %v703
        %v705 = vpop.f32.mrb[0].mxu0
        %v706 = vpop.f32.mrb[0].mxu0
        %v707 = vadd.f32 0.0, %v706
        %v708 = vpop.f32.mrb[0].mxu0
        %709 = vmatprep.mubr.bf16.mxu0 0
        %710 = vmatmul.mubr.bf16.gmra.mrb[0].mxu0 %v610
        %v711 = vpop.f32.mrb[0].mxu0
        %v712 = vadd.f32 0.0, %v711
        %v713 = vpop.f32.mrb[0].mxu0
        %v714 = vpop.f32.mrb[0].mxu0
        %v715 = vadd.f32 0.0, %v714
        %v716 = vpop.f32.mrb[0].mxu0
        %717 = vmatprep.mubr.bf16.mxu0 0
        %718 = vmatmul.mubr.bf16.gmra.mrb[0].mxu0 %v613
        %v719 = vpop.f32.mrb[0].mxu0
        %v720 = vadd.f32 0.0, %v719
        %v721 = vpop.f32.mrb[0].mxu0
        %v722 = vpop.f32.mrb[0].mxu0
        %v723 = vadd.f32 0.0, %v722
        %v724 = vpop.f32.mrb[0].mxu0
        %725 = vmatprep.mubr.bf16.mxu0 0
        %726 = vmatmul.mubr.bf16.gmra.mrb[0].mxu0 %v616
        %v727 = vpop.f32.mrb[0].mxu0
        %v728 = vadd.f32 0.0, %v727
        %v729 = vpop.f32.mrb[0].mxu0
        %v730 = vpop.f32.mrb[0].mxu0
        %v731 = vadd.f32 0.0, %v730
        %v732 = vpop.f32.mrb[0].mxu0
        %733 = vmatprep.mubr.bf16.mxu0 0
        %734 = vmatmul.mubr.bf16.gmra.mrb[0].mxu0 %v619
        %v735 = vpop.f32.mrb[0].mxu0
        %v736 = vadd.f32 0.0, %v735
        %v737 = vpop.f32.mrb[0].mxu0
        %v738 = vpop.f32.mrb[0].mxu0
        %v739 = vadd.f32 0.0, %v738
        %v740 = vpop.f32.mrb[0].mxu0
        %741 = vmatprep.mubr.bf16.mxu0 0
        %742 = vmatmul.mubr.bf16.gmra.mrb[0].mxu0 %v622
        %v743 = vpop.f32.mrb[0].mxu0
        %v744 = vadd.f32 0.0, %v743
        %v745 = vpop.f32.mrb[0].mxu0
        %v746 = vpop.f32.mrb[0].mxu0
        %v747 = vadd.f32 0.0, %v746
        %v748 = vpop.f32.mrb[0].mxu0
        %749 = vmatprep.mubr.bf16.mxu0 0
        %750 = vmatmul.mubr.bf16.gmra.mrb[0].mxu0 %v625
        %v751 = vpop.f32.mrb[0].mxu0
        %v752 = vadd.f32 0.0, %v751
        %v753 = vpop.f32.mrb[0].mxu0
        %v754 = vpop.f32.mrb[0].mxu0
        %v755 = vadd.f32 0.0, %v754
        %v756 = vpop.f32.mrb[0].mxu0
        %757 = vmatprep.mubr.bf16.mxu0 0
        %758 = vmatmul.mubr.bf16.gmra.mrb[0].mxu0 %v628
        %v759 = vpop.f32.mrb[0].mxu0
        %v760 = vadd.f32 0.0, %v759
        %v761 = vpop.f32.mrb[0].mxu0
        %v762 = vpop.f32.mrb[0].mxu0
        %v763 = vpop.f32.mrb[0].mxu0
        %764 = vdwg.mxu0
        %v767 = vunpack.c.l.b16 %v491
        %v768 = vunpack.c.l.b16 %v492
        %v769 = vpack.c.b16 %v768, %v767
        %v770 = vpack.c.b16 %v569, %v569
        %v774 = vunpack.c.l.b16 %v358
        %v775 = vunpack.c.l.b16 %v359
        %v776 = vunpack.c.l.b16 %v360
        %v777 = vpack.c.b16 %v775, %v774
        %v778 = vpack.c.b16 %v776, %v776
        %v781 = vsel %vm593, %v769, 0
        %v784 = vsel %vm593, %v770, 0
        %v787 = vand.u32 %v778, %v633
        %789 = vmatprep.subr.bf16.mxu0 0
        %790 = vmatpush1.bf16.msra.mxu0 %v777
        %791 = vmatprep.subr.bf16.mxu0 0
        %792 = vmatpush1.bf16.msra.mxu0 %v787
        %793 = vmatprep.subr.bf16.mxu0 0
        %794 = vmatpush1.bf16.msra.mxu0 0
        %795 = vmatprep.subr.bf16.mxu0 0
        %796 = vmatpush1.bf16.msra.mxu0 0
        %797 = vmatprep.subr.bf16.mxu0 0
        %798 = vmatpush1.bf16.msra.mxu0 0
        %799 = vmatprep.subr.bf16.mxu0 0
        %800 = vmatpush1.bf16.msra.mxu0 0
        %801 = vmatprep.subr.bf16.mxu0 0
        %802 = vmatpush1.bf16.msra.mxu0 0
        %803 = vmatprep.subr.bf16.mxu0 0
        %804 = vmatpush1.bf16.msra.mxu0 0
        %805 = vmatprep.subr.bf16.mxu0 0
        %806 = vmatpush1.bf16.msra.mxu0 0
        %807 = vmatprep.subr.bf16.mxu0 0
        %808 = vmatpush1.bf16.msra.mxu0 0
        %809 = vmatprep.subr.bf16.mxu0 0
        %810 = vmatpush1.bf16.msra.mxu0 0
        %811 = vmatprep.subr.bf16.mxu0 0
        %812 = vmatpush1.bf16.msra.mxu0 0
        %813 = vmatprep.subr.bf16.mxu0 0
        %814 = vmatpush1.bf16.msra.mxu0 0
        %815 = vmatprep.subr.bf16.mxu0 0
        %816 = vmatpush1.bf16.msra.mxu0 0
        %817 = vmatprep.subr.bf16.mxu0 0
        %818 = vmatpush1.bf16.msra.mxu0 0
        %819 = vmatprep.subr.bf16.mxu0 0
        %820 = vmatpush1.bf16.msra.mxu0 0
        %821 = vmatprep.mubr.bf16.mxu0 0
        %822 = vmatmul.mubr.bf16.gmra.mrb[0].mxu0 %v781
        %v823 = vpop.f32.mrb[0].mxu0
        %v824 = vadd.f32 %v672, %v823
        %v825 = vpop.f32.mrb[0].mxu0
        %v826 = vpop.f32.mrb[0].mxu0
        %v827 = vadd.f32 %v675, %v826
        %v828 = vpop.f32.mrb[0].mxu0
        %829 = vmatprep.mubr.bf16.mxu0 0
        %830 = vmatmul.mubr.bf16.gmra.mrb[0].mxu0 %v595
        %v831 = vpop.f32.mrb[0].mxu0
        %v832 = vadd.f32 %v680, %v831
        %v833 = vpop.f32.mrb[0].mxu0
        %v834 = vpop.f32.mrb[0].mxu0
        %v835 = vadd.f32 %v683, %v834
        %v836 = vpop.f32.mrb[0].mxu0
        %837 = vmatprep.mubr.bf16.mxu0 0
        %838 = vmatmul.mubr.bf16.gmra.mrb[0].mxu0 %v598
        %v839 = vpop.f32.mrb[0].mxu0
        %v840 = vadd.f32 %v688, %v839
        %v841 = vpop.f32.mrb[0].mxu0
        %v842 = vpop.f32.mrb[0].mxu0
        %v843 = vadd.f32 %v691, %v842
        %v844 = vpop.f32.mrb[0].mxu0
        %845 = vmatprep.mubr.bf16.mxu0 0
        %846 = vmatmul.mubr.bf16.gmra.mrb[0].mxu0 %v601
        %v847 = vpop.f32.mrb[0].mxu0
        %v848 = vadd.f32 %v696, %v847
        %v849 = vpop.f32.mrb[0].mxu0
        %v850 = vpop.f32.mrb[0].mxu0
        %v851 = vadd.f32 %v699, %v850
        %v852 = vpop.f32.mrb[0].mxu0
        %853 = vmatprep.mubr.bf16.mxu0 0
        %854 = vmatmul.mubr.bf16.gmra.mrb[0].mxu0 %v604
        %v855 = vpop.f32.mrb[0].mxu0
        %v856 = vadd.f32 %v704, %v855
        %v857 = vpop.f32.mrb[0].mxu0
        %v858 = vpop.f32.mrb[0].mxu0
        %v859 = vadd.f32 %v707, %v858
        %v860 = vpop.f32.mrb[0].mxu0
        %861 = vmatprep.mubr.bf16.mxu0 0
        %862 = vmatmul.mubr.bf16.gmra.mrb[0].mxu0 %v607
        %v863 = vpop.f32.mrb[0].mxu0
        %v864 = vadd.f32 %v712, %v863
        %v865 = vpop.f32.mrb[0].mxu0
        %v866 = vpop.f32.mrb[0].mxu0
        %v867 = vadd.f32 %v715, %v866
        %v868 = vpop.f32.mrb[0].mxu0
        %869 = vmatprep.mubr.bf16.mxu0 0
        %870 = vmatmul.mubr.bf16.gmra.mrb[0].mxu0 %v610
        %v871 = vpop.f32.mrb[0].mxu0
        %v872 = vadd.f32 %v720, %v871
        %v873 = vpop.f32.mrb[0].mxu0
        %v874 = vpop.f32.mrb[0].mxu0
        %v875 = vadd.f32 %v723, %v874
        %v876 = vpop.f32.mrb[0].mxu0
        %877 = vmatprep.mubr.bf16.mxu0 0
        %878 = vmatmul.mubr.bf16.gmra.mrb[0].mxu0 %v613
        %v879 = vpop.f32.mrb[0].mxu0
        %v880 = vadd.f32 %v728, %v879
        %v881 = vpop.f32.mrb[0].mxu0
        %v882 = vpop.f32.mrb[0].mxu0
        %v883 = vadd.f32 %v731, %v882
        %v884 = vpop.f32.mrb[0].mxu0
        %885 = vmatprep.mubr.bf16.mxu0 0
        %886 = vmatmul.mubr.bf16.gmra.mrb[0].mxu0 %v616
        %v887 = vpop.f32.mrb[0].mxu0
        %v888 = vadd.f32 %v736, %v887
        %v889 = vpop.f32.mrb[0].mxu0
        %v890 = vpop.f32.mrb[0].mxu0
        %v891 = vadd.f32 %v739, %v890
        %v892 = vpop.f32.mrb[0].mxu0
        %893 = vmatprep.mubr.bf16.mxu0 0
        %894 = vmatmul.mubr.bf16.gmra.mrb[0].mxu0 %v619
        %v895 = vpop.f32.mrb[0].mxu0
        %v896 = vadd.f32 %v744, %v895
        %v897 = vpop.f32.mrb[0].mxu0
        %v898 = vpop.f32.mrb[0].mxu0
        %v899 = vadd.f32 %v747, %v898
        %v900 = vpop.f32.mrb[0].mxu0
        %901 = vmatprep.mubr.bf16.mxu0 0
        %902 = vmatmul.mubr.bf16.gmra.mrb[0].mxu0 %v622
        %v903 = vpop.f32.mrb[0].mxu0
        %v904 = vadd.f32 %v752, %v903
        %v905 = vpop.f32.mrb[0].mxu0
        %v906 = vpop.f32.mrb[0].mxu0
        %v907 = vadd.f32 %v755, %v906
        %v908 = vpop.f32.mrb[0].mxu0
        %909 = vmatprep.mubr.bf16.mxu0 0
        %910 = vmatmul.mubr.bf16.gmra.mrb[0].mxu0 %v784
        %v911 = vpop.f32.mrb[0].mxu0
        %v912 = vadd.f32 %v760, %v911
        %v913 = vpop.f32.mrb[0].mxu0
        %v914 = vpop.f32.mrb[0].mxu0
        %v915 = vpop.f32.mrb[0].mxu0
        %916 = vdwg.mxu0
        %v919 = vunpack.c.l.b16 %v516
        %v920 = vunpack.c.l.b16 %v517
        %v921 = vpack.c.b16 %v919, %v571
        %v922 = vpack.c.b16 %v920, %v920
        %v926 = vunpack.c.l.b16 %v364
        %v927 = vunpack.c.l.b16 %v365
        %v928 = vunpack.c.l.b16 %v366
        %v929 = vpack.c.b16 %v927, %v926
        %v930 = vpack.c.b16 %v928, %v928
        %v933 = vsel %vm593, %v921, 0
        %v936 = vsel %vm593, %v922, 0
        %v939 = vand.u32 %v930, %v633
        %941 = vmatprep.subr.bf16.mxu0 0
        %942 = vmatpush1.bf16.msra.mxu0 %v929
        %943 = vmatprep.subr.bf16.mxu0 0
        %944 = vmatpush1.bf16.msra.mxu0 %v939
        %945 = vmatprep.subr.bf16.mxu0 0
        %946 = vmatpush1.bf16.msra.mxu0 0
        %947 = vmatprep.subr.bf16.mxu0 0
        %948 = vmatpush1.bf16.msra.mxu0 0
        %949 = vmatprep.subr.bf16.mxu0 0
        %950 = vmatpush1.bf16.msra.mxu0 0
        %951 = vmatprep.subr.bf16.mxu0 0
        %952 = vmatpush1.bf16.msra.mxu0 0
        %953 = vmatprep.subr.bf16.mxu0 0
        %954 = vmatpush1.bf16.msra.mxu0 0
        %955 = vmatprep.subr.bf16.mxu0 0
        %956 = vmatpush1.bf16.msra.mxu0 0
        %957 = vmatprep.subr.bf16.mxu0 0
        %958 = vmatpush1.bf16.msra.mxu0 0
        %959 = vmatprep.subr.bf16.mxu0 0
        %960 = vmatpush1.bf16.msra.mxu0 0
        %961 = vmatprep.subr.bf16.mxu0 0
        %962 = vmatpush1.bf16.msra.mxu0 0
        %963 = vmatprep.subr.bf16.mxu0 0
        %964 = vmatpush1.bf16.msra.mxu0 0
        %965 = vmatprep.subr.bf16.mxu0 0
        %966 = vmatpush1.bf16.msra.mxu0 0
        %967 = vmatprep.subr.bf16.mxu0 0
        %968 = vmatpush1.bf16.msra.mxu0 0
        %969 = vmatprep.subr.bf16.mxu0 0
        %970 = vmatpush1.bf16.msra.mxu0 0
        %971 = vmatprep.subr.bf16.mxu0 0
        %972 = vmatpush1.bf16.msra.mxu0 0
        %973 = vmatprep.mubr.bf16.mxu0 0
        %974 = vmatmul.mubr.bf16.gmra.mrb[0].mxu0 %v598
        %v975 = vpop.f32.mrb[0].mxu0
        %v976 = vadd.f32 0.0, %v975
        %v977 = vpop.f32.mrb[0].mxu0
        %v978 = vpop.f32.mrb[0].mxu0
        %v979 = vadd.f32 0.0, %v978
        %v980 = vpop.f32.mrb[0].mxu0
        %981 = vmatprep.mubr.bf16.mxu0 0
        %982 = vmatmul.mubr.bf16.gmra.mrb[0].mxu0 %v601
        %v983 = vpop.f32.mrb[0].mxu0
        %v984 = vadd.f32 0.0, %v983
        %v985 = vpop.f32.mrb[0].mxu0
        %v986 = vpop.f32.mrb[0].mxu0
        %v987 = vadd.f32 0.0, %v986
        %v988 = vpop.f32.mrb[0].mxu0
        %989 = vmatprep.mubr.bf16.mxu0 0
        %990 = vmatmul.mubr.bf16.gmra.mrb[0].mxu0 %v604
        %v991 = vpop.f32.mrb[0].mxu0
        %v992 = vadd.f32 0.0, %v991
        %v993 = vpop.f32.mrb[0].mxu0
        %v994 = vpop.f32.mrb[0].mxu0
        %v995 = vadd.f32 0.0, %v994
        %v996 = vpop.f32.mrb[0].mxu0
        %997 = vmatprep.mubr.bf16.mxu0 0
        %998 = vmatmul.mubr.bf16.gmra.mrb[0].mxu0 %v607
        %v999 = vpop.f32.mrb[0].mxu0
        %v1000 = vadd.f32 0.0, %v999
        %v1001 = vpop.f32.mrb[0].mxu0
        %v1002 = vpop.f32.mrb[0].mxu0
        %v1003 = vadd.f32 0.0, %v1002
        %v1004 = vpop.f32.mrb[0].mxu0
        %1005 = vmatprep.mubr.bf16.mxu0 0
        %1006 = vmatmul.mubr.bf16.gmra.mrb[0].mxu0 %v610
        %v1007 = vpop.f32.mrb[0].mxu0
        %v1008 = vadd.f32 0.0, %v1007
        %v1009 = vpop.f32.mrb[0].mxu0
        %v1010 = vpop.f32.mrb[0].mxu0
        %v1011 = vadd.f32 0.0, %v1010
        %v1012 = vpop.f32.mrb[0].mxu0
        %1013 = vmatprep.mubr.bf16.mxu0 0
        %1014 = vmatmul.mubr.bf16.gmra.mrb[0].mxu0 %v613
        %v1015 = vpop.f32.mrb[0].mxu0
        %v1016 = vadd.f32 0.0, %v1015
        %v1017 = vpop.f32.mrb[0].mxu0
        %v1018 = vpop.f32.mrb[0].mxu0
        %v1019 = vadd.f32 0.0, %v1018
        %v1020 = vpop.f32.mrb[0].mxu0
        %1021 = vmatprep.mubr.bf16.mxu0 0
        %1022 = vmatmul.mubr.bf16.gmra.mrb[0].mxu0 %v616
        %v1023 = vpop.f32.mrb[0].mxu0
        %v1024 = vadd.f32 0.0, %v1023
        %v1025 = vpop.f32.mrb[0].mxu0
        %v1026 = vpop.f32.mrb[0].mxu0
        %v1027 = vadd.f32 0.0, %v1026
        %v1028 = vpop.f32.mrb[0].mxu0
        %1029 = vmatprep.mubr.bf16.mxu0 0
        %1030 = vmatmul.mubr.bf16.gmra.mrb[0].mxu0 %v619
        %v1031 = vpop.f32.mrb[0].mxu0
        %v1032 = vadd.f32 0.0, %v1031
        %v1033 = vpop.f32.mrb[0].mxu0
        %v1034 = vpop.f32.mrb[0].mxu0
        %v1035 = vadd.f32 0.0, %v1034
        %v1036 = vpop.f32.mrb[0].mxu0
        %1037 = vmatprep.mubr.bf16.mxu0 0
        %1038 = vmatmul.mubr.bf16.gmra.mrb[0].mxu0 %v622
        %v1039 = vpop.f32.mrb[0].mxu0
        %v1040 = vadd.f32 0.0, %v1039
        %v1041 = vpop.f32.mrb[0].mxu0
        %v1042 = vpop.f32.mrb[0].mxu0
        %v1043 = vadd.f32 0.0, %v1042
        %v1044 = vpop.f32.mrb[0].mxu0
        %1045 = vmatprep.mubr.bf16.mxu0 0
        %1046 = vmatmul.mubr.bf16.gmra.mrb[0].mxu0 %v625
        %v1047 = vpop.f32.mrb[0].mxu0
        %v1048 = vadd.f32 0.0, %v1047
        %v1049 = vpop.f32.mrb[0].mxu0
        %v1050 = vpop.f32.mrb[0].mxu0
        %v1051 = vadd.f32 0.0, %v1050
        %v1052 = vpop.f32.mrb[0].mxu0
        %1053 = vmatprep.mubr.bf16.mxu0 0
        %1054 = vmatmul.mubr.bf16.gmra.mrb[0].mxu0 %v933
        %v1055 = vpop.f32.mrb[0].mxu0
        %v1056 = vadd.f32 0.0, %v1055
        %v1057 = vpop.f32.mrb[0].mxu0
        %v1058 = vpop.f32.mrb[0].mxu0
        %v1059 = vadd.f32 0.0, %v1058
        %v1060 = vpop.f32.mrb[0].mxu0
        %1061 = vmatprep.mubr.bf16.mxu0 0
        %1062 = vmatmul.mubr.bf16.gmra.mrb[0].mxu0 %v936
        %v1063 = vpop.f32.mrb[0].mxu0
        %v1064 = vadd.f32 0.0, %v1063
        %v1065 = vpop.f32.mrb[0].mxu0
        %v1066 = vpop.f32.mrb[0].mxu0
        %v1067 = vpop.f32.mrb[0].mxu0
        %1068 = vdwg.mxu0
        %v1069 = vadd.f32 %v824, %v976
        %v1070 = vadd.f32 %v827, %v979
        %v1071 = vadd.f32 %v832, %v984
        %v1072 = vadd.f32 %v835, %v987
        %v1073 = vadd.f32 %v840, %v992
        %v1074 = vadd.f32 %v843, %v995
        %v1075 = vadd.f32 %v848, %v1000
        %v1076 = vadd.f32 %v851, %v1003
        %v1077 = vadd.f32 %v856, %v1008
        %v1078 = vadd.f32 %v859, %v1011
        %v1079 = vadd.f32 %v864, %v1016
        %v1080 = vadd.f32 %v867, %v1019
        %v1081 = vadd.f32 %v872, %v1024
        %v1082 = vadd.f32 %v875, %v1027
        %v1083 = vadd.f32 %v880, %v1032
        %v1084 = vadd.f32 %v883, %v1035
        %v1085 = vadd.f32 %v888, %v1040
        %v1086 = vadd.f32 %v891, %v1043
        %v1087 = vadd.f32 %v896, %v1048
        %v1088 = vadd.f32 %v899, %v1051
        %v1089 = vadd.f32 %v904, %v1056
        %v1090 = vadd.f32 %v907, %v1059
        %v1091 = vadd.f32 %v912, %v1064
        %v1094 = vunpack.c.l.b16 %v518
        %v1095 = vunpack.c.l.b16 %v519
        %v1096 = vpack.c.b16 %v1094, %v920
        %v1097 = vpack.c.b16 %v1095, %v1095
        %v1101 = vunpack.c.l.b16 %v367
        %v1102 = vunpack.c.l.b16 %v368
        %v1103 = vunpack.c.l.b16 %v369
        %v1104 = vpack.c.b16 %v1102, %v1101
        %v1105 = vpack.c.b16 %v1103, %v1103
        %v1108 = vsel %vm593, %v1096, 0
        %v1111 = vsel %vm593, %v1097, 0
        %v1114 = vand.u32 %v1105, %v633
        %1116 = vmatprep.subr.bf16.mxu0 0
        %1117 = vmatpush1.bf16.msra.mxu0 %v1104
        %1118 = vmatprep.subr.bf16.mxu0 0
        %1119 = vmatpush1.bf16.msra.mxu0 %v1114
        %1120 = vmatprep.subr.bf16.mxu0 0
        %1121 = vmatpush1.bf16.msra.mxu0 0
        %1122 = vmatprep.subr.bf16.mxu0 0
        %1123 = vmatpush1.bf16.msra.mxu0 0
        %1124 = vmatprep.subr.bf16.mxu0 0
        %1125 = vmatpush1.bf16.msra.mxu0 0
        %1126 = vmatprep.subr.bf16.mxu0 0
        %1127 = vmatpush1.bf16.msra.mxu0 0
        %1128 = vmatprep.subr.bf16.mxu0 0
        %1129 = vmatpush1.bf16.msra.mxu0 0
        %1130 = vmatprep.subr.bf16.mxu0 0
        %1131 = vmatpush1.bf16.msra.mxu0 0
        %1132 = vmatprep.subr.bf16.mxu0 0
        %1133 = vmatpush1.bf16.msra.mxu0 0
        %1134 = vmatprep.subr.bf16.mxu0 0
        %1135 = vmatpush1.bf16.msra.mxu0 0
        %1136 = vmatprep.subr.bf16.mxu0 0
        %1137 = vmatpush1.bf16.msra.mxu0 0
        %1138 = vmatprep.subr.bf16.mxu0 0
        %1139 = vmatpush1.bf16.msra.mxu0 0
        %1140 = vmatprep.subr.bf16.mxu0 0
        %1141 = vmatpush1.bf16.msra.mxu0 0
        %1142 = vmatprep.subr.bf16.mxu0 0
        %1143 = vmatpush1.bf16.msra.mxu0 0
        %1144 = vmatprep.subr.bf16.mxu0 0
        %1145 = vmatpush1.bf16.msra.mxu0 0
        %1146 = vmatprep.subr.bf16.mxu0 0
        %1147 = vmatpush1.bf16.msra.mxu0 0
        %1148 = vmatprep.mubr.bf16.mxu0 0
        %1149 = vmatmul.mubr.bf16.gmra.mrb[0].mxu0 %v601
        %v1150 = vpop.f32.mrb[0].mxu0
        %v1151 = vadd.f32 0.0, %v1150
        %v1152 = vpop.f32.mrb[0].mxu0
        %v1153 = vpop.f32.mrb[0].mxu0
        %v1154 = vadd.f32 0.0, %v1153
        %v1155 = vpop.f32.mrb[0].mxu0
        %1156 = vmatprep.mubr.bf16.mxu0 0
        %1157 = vmatmul.mubr.bf16.gmra.mrb[0].mxu0 %v604
        %v1158 = vpop.f32.mrb[0].mxu0
        %v1159 = vadd.f32 0.0, %v1158
        %v1160 = vpop.f32.mrb[0].mxu0
        %v1161 = vpop.f32.mrb[0].mxu0
        %v1162 = vadd.f32 0.0, %v1161
        %v1163 = vpop.f32.mrb[0].mxu0
        %1164 = vmatprep.mubr.bf16.mxu0 0
        %1165 = vmatmul.mubr.bf16.gmra.mrb[0].mxu0 %v607
        %v1166 = vpop.f32.mrb[0].mxu0
        %v1167 = vadd.f32 0.0, %v1166
        %v1168 = vpop.f32.mrb[0].mxu0
        %v1169 = vpop.f32.mrb[0].mxu0
        %v1170 = vadd.f32 0.0, %v1169
        %v1171 = vpop.f32.mrb[0].mxu0
        %1172 = vmatprep.mubr.bf16.mxu0 0
        %1173 = vmatmul.mubr.bf16.gmra.mrb[0].mxu0 %v610
        %v1174 = vpop.f32.mrb[0].mxu0
        %v1175 = vadd.f32 0.0, %v1174
        %v1176 = vpop.f32.mrb[0].mxu0
        %v1177 = vpop.f32.mrb[0].mxu0
        %v1178 = vadd.f32 0.0, %v1177
        %v1179 = vpop.f32.mrb[0].mxu0
        %1180 = vmatprep.mubr.bf16.mxu0 0
        %1181 = vmatmul.mubr.bf16.gmra.mrb[0].mxu0 %v613
        %v1182 = vpop.f32.mrb[0].mxu0
        %v1183 = vadd.f32 0.0, %v1182
        %v1184 = vpop.f32.mrb[0].mxu0
        %v1185 = vpop.f32.mrb[0].mxu0
        %v1186 = vadd.f32 0.0, %v1185
        %v1187 = vpop.f32.mrb[0].mxu0
        %1188 = vmatprep.mubr.bf16.mxu0 0
        %1189 = vmatmul.mubr.bf16.gmra.mrb[0].mxu0 %v616
        %v1190 = vpop.f32.mrb[0].mxu0
        %v1191 = vadd.f32 0.0, %v1190
        %v1192 = vpop.f32.mrb[0].mxu0
        %v1193 = vpop.f32.mrb[0].mxu0
        %v1194 = vadd.f32 0.0, %v1193
        %v1195 = vpop.f32.mrb[0].mxu0
        %1196 = vmatprep.mubr.bf16.mxu0 0
        %1197 = vmatmul.mubr.bf16.gmra.mrb[0].mxu0 %v619
        %v1198 = vpop.f32.mrb[0].mxu0
        %v1199 = vadd.f32 0.0, %v1198
        %v1200 = vpop.f32.mrb[0].mxu0
        %v1201 = vpop.f32.mrb[0].mxu0
        %v1202 = vadd.f32 0.0, %v1201
        %v1203 = vpop.f32.mrb[0].mxu0
        %1204 = vmatprep.mubr.bf16.mxu0 0
        %1205 = vmatmul.mubr.bf16.gmra.mrb[0].mxu0 %v622
        %v1206 = vpop.f32.mrb[0].mxu0
        %v1207 = vadd.f32 0.0, %v1206
        %v1208 = vpop.f32.mrb[0].mxu0
        %v1209 = vpop.f32.mrb[0].mxu0
        %v1210 = vadd.f32 0.0, %v1209
        %v1211 = vpop.f32.mrb[0].mxu0
        %1212 = vmatprep.mubr.bf16.mxu0 0
        %1213 = vmatmul.mubr.bf16.gmra.mrb[0].mxu0 %v625
        %v1214 = vpop.f32.mrb[0].mxu0
        %v1215 = vadd.f32 0.0, %v1214
        %v1216 = vpop.f32.mrb[0].mxu0
        %v1217 = vpop.f32.mrb[0].mxu0
        %v1218 = vadd.f32 0.0, %v1217
        %v1219 = vpop.f32.mrb[0].mxu0
        %1220 = vmatprep.mubr.bf16.mxu0 0
        %1221 = vmatmul.mubr.bf16.gmra.mrb[0].mxu0 %v933
        %v1222 = vpop.f32.mrb[0].mxu0
        %v1223 = vadd.f32 0.0, %v1222
        %v1224 = vpop.f32.mrb[0].mxu0
        %v1225 = vpop.f32.mrb[0].mxu0
        %v1226 = vadd.f32 0.0, %v1225
        %v1227 = vpop.f32.mrb[0].mxu0
        %1228 = vmatprep.mubr.bf16.mxu0 0
        %1229 = vmatmul.mubr.bf16.gmra.mrb[0].mxu0 %v1108
        %v1230 = vpop.f32.mrb[0].mxu0
        %v1231 = vadd.f32 0.0, %v1230
        %v1232 = vpop.f32.mrb[0].mxu0
        %v1233 = vpop.f32.mrb[0].mxu0
        %v1234 = vadd.f32 0.0, %v1233
        %v1235 = vpop.f32.mrb[0].mxu0
        %1236 = vmatprep.mubr.bf16.mxu0 0
        %1237 = vmatmul.mubr.bf16.gmra.mrb[0].mxu0 %v1111
        %v1238 = vpop.f32.mrb[0].mxu0
        %v1239 = vadd.f32 0.0, %v1238
        %v1240 = vpop.f32.mrb[0].mxu0
        %v1241 = vpop.f32.mrb[0].mxu0
        %v1242 = vpop.f32.mrb[0].mxu0
        %1243 = vdwg.mxu0
        %v1244 = vadd.f32 %v1069, %v1151
        %v1245 = vadd.f32 %v1070, %v1154
        %v1246 = vadd.f32 %v1071, %v1159
        %v1247 = vadd.f32 %v1072, %v1162
        %v1248 = vadd.f32 %v1073, %v1167
        %v1249 = vadd.f32 %v1074, %v1170
        %v1250 = vadd.f32 %v1075, %v1175
        %v1251 = vadd.f32 %v1076, %v1178
        %v1252 = vadd.f32 %v1077, %v1183
        %v1253 = vadd.f32 %v1078, %v1186
        %v1254 = vadd.f32 %v1079, %v1191
        %v1255 = vadd.f32 %v1080, %v1194
        %v1256 = vadd.f32 %v1081, %v1199
        %v1257 = vadd.f32 %v1082, %v1202
        %v1258 = vadd.f32 %v1083, %v1207
        %v1259 = vadd.f32 %v1084, %v1210
        %v1260 = vadd.f32 %v1085, %v1215
        %v1261 = vadd.f32 %v1086, %v1218
        %v1262 = vadd.f32 %v1087, %v1223
        %v1263 = vadd.f32 %v1088, %v1226
        %v1264 = vadd.f32 %v1089, %v1231
        %v1265 = vadd.f32 %v1090, %v1234
        %v1266 = vadd.f32 %v1091, %v1239
        %v1269 = vunpack.c.l.b16 %v520
        %v1270 = vunpack.c.l.b16 %v521
        %v1271 = vpack.c.b16 %v1269, %v1095
        %v1272 = vpack.c.b16 %v1270, %v1270
        %v1276 = vunpack.c.l.b16 %v370
        %v1277 = vunpack.c.l.b16 %v371
        %v1278 = vunpack.c.l.b16 %v372
        %v1279 = vpack.c.b16 %v1277, %v1276
        %v1280 = vpack.c.b16 %v1278, %v1278
        %v1283 = vsel %vm593, %v1271, 0
        %v1286 = vsel %vm593, %v1272, 0
        %v1289 = vand.u32 %v1280, %v633
        %1291 = vmatprep.subr.bf16.mxu0 0
        %1292 = vmatpush1.bf16.msra.mxu0 %v1279
        %1293 = vmatprep.subr.bf16.mxu0 0
        %1294 = vmatpush1.bf16.msra.mxu0 %v1289
        %1295 = vmatprep.subr.bf16.mxu0 0
        %1296 = vmatpush1.bf16.msra.mxu0 0
        %1297 = vmatprep.subr.bf16.mxu0 0
        %1298 = vmatpush1.bf16.msra.mxu0 0
        %1299 = vmatprep.subr.bf16.mxu0 0
        %1300 = vmatpush1.bf16.msra.mxu0 0
        %1301 = vmatprep.subr.bf16.mxu0 0
        %1302 = vmatpush1.bf16.msra.mxu0 0
        %1303 = vmatprep.subr.bf16.mxu0 0
        %1304 = vmatpush1.bf16.msra.mxu0 0
        %1305 = vmatprep.subr.bf16.mxu0 0
        %1306 = vmatpush1.bf16.msra.mxu0 0
        %1307 = vmatprep.subr.bf16.mxu0 0
        %1308 = vmatpush1.bf16.msra.mxu0 0
        %1309 = vmatprep.subr.bf16.mxu0 0
        %1310 = vmatpush1.bf16.msra.mxu0 0
        %1311 = vmatprep.subr.bf16.mxu0 0
        %1312 = vmatpush1.bf16.msra.mxu0 0
        %1313 = vmatprep.subr.bf16.mxu0 0
        %1314 = vmatpush1.bf16.msra.mxu0 0
        %1315 = vmatprep.subr.bf16.mxu0 0
        %1316 = vmatpush1.bf16.msra.mxu0 0
        %1317 = vmatprep.subr.bf16.mxu0 0
        %1318 = vmatpush1.bf16.msra.mxu0 0
        %1319 = vmatprep.subr.bf16.mxu0 0
        %1320 = vmatpush1.bf16.msra.mxu0 0
        %1321 = vmatprep.subr.bf16.mxu0 0
        %1322 = vmatpush1.bf16.msra.mxu0 0
        %1323 = vmatprep.mubr.bf16.mxu0 0
        %1324 = vmatmul.mubr.bf16.gmra.mrb[0].mxu0 %v604
        %v1325 = vpop.f32.mrb[0].mxu0
        %v1326 = vadd.f32 0.0, %v1325
        %v1327 = vpop.f32.mrb[0].mxu0
        %v1328 = vpop.f32.mrb[0].mxu0
        %v1329 = vadd.f32 0.0, %v1328
        %v1330 = vpop.f32.mrb[0].mxu0
        %1331 = vmatprep.mubr.bf16.mxu0 0
        %1332 = vmatmul.mubr.bf16.gmra.mrb[0].mxu0 %v607
        %v1333 = vpop.f32.mrb[0].mxu0
        %v1334 = vadd.f32 0.0, %v1333
        %v1335 = vpop.f32.mrb[0].mxu0
        %v1336 = vpop.f32.mrb[0].mxu0
        %v1337 = vadd.f32 0.0, %v1336
        %v1338 = vpop.f32.mrb[0].mxu0
        %1339 = vmatprep.mubr.bf16.mxu0 0
        %1340 = vmatmul.mubr.bf16.gmra.mrb[0].mxu0 %v610
        %v1341 = vpop.f32.mrb[0].mxu0
        %v1342 = vadd.f32 0.0, %v1341
        %v1343 = vpop.f32.mrb[0].mxu0
        %v1344 = vpop.f32.mrb[0].mxu0
        %v1345 = vadd.f32 0.0, %v1344
        %v1346 = vpop.f32.mrb[0].mxu0
        %1347 = vmatprep.mubr.bf16.mxu0 0
        %1348 = vmatmul.mubr.bf16.gmra.mrb[0].mxu0 %v613
        %v1349 = vpop.f32.mrb[0].mxu0
        %v1350 = vadd.f32 0.0, %v1349
        %v1351 = vpop.f32.mrb[0].mxu0
        %v1352 = vpop.f32.mrb[0].mxu0
        %v1353 = vadd.f32 0.0, %v1352
        %v1354 = vpop.f32.mrb[0].mxu0
        %1355 = vmatprep.mubr.bf16.mxu0 0
        %1356 = vmatmul.mubr.bf16.gmra.mrb[0].mxu0 %v616
        %v1357 = vpop.f32.mrb[0].mxu0
        %v1358 = vadd.f32 0.0, %v1357
        %v1359 = vpop.f32.mrb[0].mxu0
        %v1360 = vpop.f32.mrb[0].mxu0
        %v1361 = vadd.f32 0.0, %v1360
        %v1362 = vpop.f32.mrb[0].mxu0
        %1363 = vmatprep.mubr.bf16.mxu0 0
        %1364 = vmatmul.mubr.bf16.gmra.mrb[0].mxu0 %v619
        %v1365 = vpop.f32.mrb[0].mxu0
        %v1366 = vadd.f32 0.0, %v1365
        %v1367 = vpop.f32.mrb[0].mxu0
        %v1368 = vpop.f32.mrb[0].mxu0
        %v1369 = vadd.f32 0.0, %v1368
        %v1370 = vpop.f32.mrb[0].mxu0
        %1371 = vmatprep.mubr.bf16.mxu0 0
        %1372 = vmatmul.mubr.bf16.gmra.mrb[0].mxu0 %v622
        %v1373 = vpop.f32.mrb[0].mxu0
        %v1374 = vadd.f32 0.0, %v1373
        %v1375 = vpop.f32.mrb[0].mxu0
        %v1376 = vpop.f32.mrb[0].mxu0
        %v1377 = vadd.f32 0.0, %v1376
        %v1378 = vpop.f32.mrb[0].mxu0
        %1379 = vmatprep.mubr.bf16.mxu0 0
        %1380 = vmatmul.mubr.bf16.gmra.mrb[0].mxu0 %v625
        %v1381 = vpop.f32.mrb[0].mxu0
        %v1382 = vadd.f32 0.0, %v1381
        %v1383 = vpop.f32.mrb[0].mxu0
        %v1384 = vpop.f32.mrb[0].mxu0
        %v1385 = vadd.f32 0.0, %v1384
        %v1386 = vpop.f32.mrb[0].mxu0
        %1387 = vmatprep.mubr.bf16.mxu0 0
        %1388 = vmatmul.mubr.bf16.gmra.mrb[0].mxu0 %v933
        %v1389 = vpop.f32.mrb[0].mxu0
        %v1390 = vadd.f32 0.0, %v1389
        %v1391 = vpop.f32.mrb[0].mxu0
        %v1392 = vpop.f32.mrb[0].mxu0
        %v1393 = vadd.f32 0.0, %v1392
        %v1394 = vpop.f32.mrb[0].mxu0
        %1395 = vmatprep.mubr.bf16.mxu0 0
        %1396 = vmatmul.mubr.bf16.gmra.mrb[0].mxu0 %v1108
        %v1397 = vpop.f32.mrb[0].mxu0
        %v1398 = vadd.f32 0.0, %v1397
        %v1399 = vpop.f32.mrb[0].mxu0
        %v1400 = vpop.f32.mrb[0].mxu0
        %v1401 = vadd.f32 0.0, %v1400
        %v1402 = vpop.f32.mrb[0].mxu0
        %1403 = vmatprep.mubr.bf16.mxu0 0
        %1404 = vmatmul.mubr.bf16.gmra.mrb[0].mxu0 %v1283
        %v1405 = vpop.f32.mrb[0].mxu0
        %v1406 = vadd.f32 0.0, %v1405
        %v1407 = vpop.f32.mrb[0].mxu0
        %v1408 = vpop.f32.mrb[0].mxu0
        %v1409 = vadd.f32 0.0, %v1408
        %v1410 = vpop.f32.mrb[0].mxu0
        %1411 = vmatprep.mubr.bf16.mxu0 0
        %1412 = vmatmul.mubr.bf16.gmra.mrb[0].mxu0 %v1286
        %v1413 = vpop.f32.mrb[0].mxu0
        %v1414 = vadd.f32 0.0, %v1413
        %v1415 = vpop.f32.mrb[0].mxu0
        %v1416 = vpop.f32.mrb[0].mxu0
        %v1417 = vpop.f32.mrb[0].mxu0
        %1418 = vdwg.mxu0
        %v1419 = vadd.f32 %v1244, %v1326
        %v1420 = vadd.f32 %v1245, %v1329
        %v1421 = vadd.f32 %v1246, %v1334
        %v1422 = vadd.f32 %v1247, %v1337
        %v1423 = vadd.f32 %v1248, %v1342
        %v1424 = vadd.f32 %v1249, %v1345
        %v1425 = vadd.f32 %v1250, %v1350
        %v1426 = vadd.f32 %v1251, %v1353
        %v1427 = vadd.f32 %v1252, %v1358
        %v1428 = vadd.f32 %v1253, %v1361
        %v1429 = vadd.f32 %v1254, %v1366
        %v1430 = vadd.f32 %v1255, %v1369
        %v1431 = vadd.f32 %v1256, %v1374
        %v1432 = vadd.f32 %v1257, %v1377
        %v1433 = vadd.f32 %v1258, %v1382
        %v1434 = vadd.f32 %v1259, %v1385
        %v1435 = vadd.f32 %v1260, %v1390
        %v1436 = vadd.f32 %v1261, %v1393
        %v1437 = vadd.f32 %v1262, %v1398
        %v1438 = vadd.f32 %v1263, %v1401
        %v1439 = vadd.f32 %v1264, %v1406
        %v1440 = vadd.f32 %v1265, %v1409
        %v1441 = vadd.f32 %v1266, %v1414
        %v1444 = vunpack.c.l.b16 %v522
        %v1445 = vunpack.c.l.b16 %v523
        %v1446 = vpack.c.b16 %v1444, %v1270
        %v1447 = vpack.c.b16 %v1445, %v1445
        %v1451 = vunpack.c.l.b16 %v373
        %v1452 = vunpack.c.l.b16 %v374
        %v1453 = vunpack.c.l.b16 %v375
        %v1454 = vpack.c.b16 %v1452, %v1451
        %v1455 = vpack.c.b16 %v1453, %v1453
        %v1458 = vsel %vm593, %v1446, 0
        %v1461 = vsel %vm593, %v1447, 0
        %v1464 = vand.u32 %v1455, %v633
        %1466 = vmatprep.subr.bf16.mxu0 0
        %1467 = vmatpush1.bf16.msra.mxu0 %v1454
        %1468 = vmatprep.subr.bf16.mxu0 0
        %1469 = vmatpush1.bf16.msra.mxu0 %v1464
        %1470 = vmatprep.subr.bf16.mxu0 0
        %1471 = vmatpush1.bf16.msra.mxu0 0
        %1472 = vmatprep.subr.bf16.mxu0 0
        %1473 = vmatpush1.bf16.msra.mxu0 0
        %1474 = vmatprep.subr.bf16.mxu0 0
        %1475 = vmatpush1.bf16.msra.mxu0 0
        %1476 = vmatprep.subr.bf16.mxu0 0
        %1477 = vmatpush1.bf16.msra.mxu0 0
        %1478 = vmatprep.subr.bf16.mxu0 0
        %1479 = vmatpush1.bf16.msra.mxu0 0
        %1480 = vmatprep.subr.bf16.mxu0 0
        %1481 = vmatpush1.bf16.msra.mxu0 0
        %1482 = vmatprep.subr.bf16.mxu0 0
        %1483 = vmatpush1.bf16.msra.mxu0 0
        %1484 = vmatprep.subr.bf16.mxu0 0
        %1485 = vmatpush1.bf16.msra.mxu0 0
        %1486 = vmatprep.subr.bf16.mxu0 0
        %1487 = vmatpush1.bf16.msra.mxu0 0
        %1488 = vmatprep.subr.bf16.mxu0 0
        %1489 = vmatpush1.bf16.msra.mxu0 0
        %1490 = vmatprep.subr.bf16.mxu0 0
        %1491 = vmatpush1.bf16.msra.mxu0 0
        %1492 = vmatprep.subr.bf16.mxu0 0
        %1493 = vmatpush1.bf16.msra.mxu0 0
        %1494 = vmatprep.subr.bf16.mxu0 0
        %1495 = vmatpush1.bf16.msra.mxu0 0
        %1496 = vmatprep.subr.bf16.mxu0 0
        %1497 = vmatpush1.bf16.msra.mxu0 0
        %1498 = vmatprep.mubr.bf16.mxu0 0
        %1499 = vmatmul.mubr.bf16.gmra.mrb[0].mxu0 %v607
        %v1500 = vpop.f32.mrb[0].mxu0
        %v1501 = vadd.f32 0.0, %v1500
        %v1502 = vpop.f32.mrb[0].mxu0
        %v1503 = vpop.f32.mrb[0].mxu0
        %v1504 = vadd.f32 0.0, %v1503
        %v1505 = vpop.f32.mrb[0].mxu0
        %1506 = vmatprep.mubr.bf16.mxu0 0
        %1507 = vmatmul.mubr.bf16.gmra.mrb[0].mxu0 %v610
        %v1508 = vpop.f32.mrb[0].mxu0
        %v1509 = vadd.f32 0.0, %v1508
        %v1510 = vpop.f32.mrb[0].mxu0
        %v1511 = vpop.f32.mrb[0].mxu0
        %v1512 = vadd.f32 0.0, %v1511
        %v1513 = vpop.f32.mrb[0].mxu0
        %1514 = vmatprep.mubr.bf16.mxu0 0
        %1515 = vmatmul.mubr.bf16.gmra.mrb[0].mxu0 %v613
        %v1516 = vpop.f32.mrb[0].mxu0
        %v1517 = vadd.f32 0.0, %v1516
        %v1518 = vpop.f32.mrb[0].mxu0
        %v1519 = vpop.f32.mrb[0].mxu0
        %v1520 = vadd.f32 0.0, %v1519
        %v1521 = vpop.f32.mrb[0].mxu0
        %1522 = vmatprep.mubr.bf16.mxu0 0
        %1523 = vmatmul.mubr.bf16.gmra.mrb[0].mxu0 %v616
        %v1524 = vpop.f32.mrb[0].mxu0
        %v1525 = vadd.f32 0.0, %v1524
        %v1526 = vpop.f32.mrb[0].mxu0
        %v1527 = vpop.f32.mrb[0].mxu0
        %v1528 = vadd.f32 0.0, %v1527
        %v1529 = vpop.f32.mrb[0].mxu0
        %1530 = vmatprep.mubr.bf16.mxu0 0
        %1531 = vmatmul.mubr.bf16.gmra.mrb[0].mxu0 %v619
        %v1532 = vpop.f32.mrb[0].mxu0
        %v1533 = vadd.f32 0.0, %v1532
        %v1534 = vpop.f32.mrb[0].mxu0
        %v1535 = vpop.f32.mrb[0].mxu0
        %v1536 = vadd.f32 0.0, %v1535
        %v1537 = vpop.f32.mrb[0].mxu0
        %1538 = vmatprep.mubr.bf16.mxu0 0
        %1539 = vmatmul.mubr.bf16.gmra.mrb[0].mxu0 %v622
        %v1540 = vpop.f32.mrb[0].mxu0
        %v1541 = vadd.f32 0.0, %v1540
        %v1542 = vpop.f32.mrb[0].mxu0
        %v1543 = vpop.f32.mrb[0].mxu0
        %v1544 = vadd.f32 0.0, %v1543
        %v1545 = vpop.f32.mrb[0].mxu0
        %1546 = vmatprep.mubr.bf16.mxu0 0
        %1547 = vmatmul.mubr.bf16.gmra.mrb[0].mxu0 %v625
        %v1548 = vpop.f32.mrb[0].mxu0
        %v1549 = vadd.f32 0.0, %v1548
        %v1550 = vpop.f32.mrb[0].mxu0
        %v1551 = vpop.f32.mrb[0].mxu0
        %v1552 = vadd.f32 0.0, %v1551
        %v1553 = vpop.f32.mrb[0].mxu0
        %1554 = vmatprep.mubr.bf16.mxu0 0
        %1555 = vmatmul.mubr.bf16.gmra.mrb[0].mxu0 %v933
        %v1556 = vpop.f32.mrb[0].mxu0
        %v1557 = vadd.f32 0.0, %v1556
        %v1558 = vpop.f32.mrb[0].mxu0
        %v1559 = vpop.f32.mrb[0].mxu0
        %v1560 = vadd.f32 0.0, %v1559
        %v1561 = vpop.f32.mrb[0].mxu0
        %1562 = vmatprep.mubr.bf16.mxu0 0
        %1563 = vmatmul.mubr.bf16.gmra.mrb[0].mxu0 %v1108
        %v1564 = vpop.f32.mrb[0].mxu0
        %v1565 = vadd.f32 0.0, %v1564
        %v1566 = vpop.f32.mrb[0].mxu0
        %v1567 = vpop.f32.mrb[0].mxu0
        %v1568 = vadd.f32 0.0, %v1567
        %v1569 = vpop.f32.mrb[0].mxu0
        %1570 = vmatprep.mubr.bf16.mxu0 0
        %1571 = vmatmul.mubr.bf16.gmra.mrb[0].mxu0 %v1283
        %v1572 = vpop.f32.mrb[0].mxu0
        %v1573 = vadd.f32 0.0, %v1572
        %v1574 = vpop.f32.mrb[0].mxu0
        %v1575 = vpop.f32.mrb[0].mxu0
        %v1576 = vadd.f32 0.0, %v1575
        %v1577 = vpop.f32.mrb[0].mxu0
        %1578 = vmatprep.mubr.bf16.mxu0 0
        %1579 = vmatmul.mubr.bf16.gmra.mrb[0].mxu0 %v1458
        %v1580 = vpop.f32.mrb[0].mxu0
        %v1581 = vadd.f32 0.0, %v1580
        %v1582 = vpop.f32.mrb[0].mxu0
        %v1583 = vpop.f32.mrb[0].mxu0
        %v1584 = vadd.f32 0.0, %v1583
        %v1585 = vpop.f32.mrb[0].mxu0
        %1586 = vmatprep.mubr.bf16.mxu0 0
        %1587 = vmatmul.mubr.bf16.gmra.mrb[0].mxu0 %v1461
        %v1588 = vpop.f32.mrb[0].mxu0
        %v1589 = vadd.f32 0.0, %v1588
        %v1590 = vpop.f32.mrb[0].mxu0
        %v1591 = vpop.f32.mrb[0].mxu0
        %v1592 = vpop.f32.mrb[0].mxu0
        %1593 = vdwg.mxu0
        %v1594 = vadd.f32 %v1419, %v1501
        %v1595 = vadd.f32 %v1420, %v1504
        %v1596 = vadd.f32 %v1421, %v1509
        %v1597 = vadd.f32 %v1422, %v1512
        %v1598 = vadd.f32 %v1423, %v1517
        %v1599 = vadd.f32 %v1424, %v1520
        %v1600 = vadd.f32 %v1425, %v1525
        %v1601 = vadd.f32 %v1426, %v1528
        %v1602 = vadd.f32 %v1427, %v1533
        %v1603 = vadd.f32 %v1428, %v1536
        %v1604 = vadd.f32 %v1429, %v1541
        %v1605 = vadd.f32 %v1430, %v1544
        %v1606 = vadd.f32 %v1431, %v1549
        %v1607 = vadd.f32 %v1432, %v1552
        %v1608 = vadd.f32 %v1433, %v1557
        %v1609 = vadd.f32 %v1434, %v1560
        %v1610 = vadd.f32 %v1435, %v1565
        %v1611 = vadd.f32 %v1436, %v1568
        %v1612 = vadd.f32 %v1437, %v1573
        %v1613 = vadd.f32 %v1438, %v1576
        %v1614 = vadd.f32 %v1439, %v1581
        %v1615 = vadd.f32 %v1440, %v1584
        %v1616 = vadd.f32 %v1441, %v1589
        %v1619 = vunpack.c.l.b16 %v524
        %v1620 = vunpack.c.l.b16 %v525
        %v1621 = vpack.c.b16 %v1619, %v1445
        %v1622 = vpack.c.b16 %v1620, %v1620
        %v1626 = vunpack.c.l.b16 %v376
        %v1627 = vunpack.c.l.b16 %v377
        %v1628 = vunpack.c.l.b16 %v378
        %v1629 = vpack.c.b16 %v1627, %v1626
        %v1630 = vpack.c.b16 %v1628, %v1628
        %v1633 = vsel %vm593, %v1621, 0
        %v1636 = vsel %vm593, %v1622, 0
        %v1639 = vand.u32 %v1630, %v633
        %1641 = vmatprep.subr.bf16.mxu0 0
        %1642 = vmatpush1.bf16.msra.mxu0 %v1629
        %1643 = vmatprep.subr.bf16.mxu0 0
        %1644 = vmatpush1.bf16.msra.mxu0 %v1639
        %1645 = vmatprep.subr.bf16.mxu0 0
        %1646 = vmatpush1.bf16.msra.mxu0 0
        %1647 = vmatprep.subr.bf16.mxu0 0
        %1648 = vmatpush1.bf16.msra.mxu0 0
        %1649 = vmatprep.subr.bf16.mxu0 0
        %1650 = vmatpush1.bf16.msra.mxu0 0
        %1651 = vmatprep.subr.bf16.mxu0 0
        %1652 = vmatpush1.bf16.msra.mxu0 0
        %1653 = vmatprep.subr.bf16.mxu0 0
        %1654 = vmatpush1.bf16.msra.mxu0 0
        %1655 = vmatprep.subr.bf16.mxu0 0
        %1656 = vmatpush1.bf16.msra.mxu0 0
        %1657 = vmatprep.subr.bf16.mxu0 0
        %1658 = vmatpush1.bf16.msra.mxu0 0
        %1659 = vmatprep.subr.bf16.mxu0 0
        %1660 = vmatpush1.bf16.msra.mxu0 0
        %1661 = vmatprep.subr.bf16.mxu0 0
        %1662 = vmatpush1.bf16.msra.mxu0 0
        %1663 = vmatprep.subr.bf16.mxu0 0
        %1664 = vmatpush1.bf16.msra.mxu0 0
        %1665 = vmatprep.subr.bf16.mxu0 0
        %1666 = vmatpush1.bf16.msra.mxu0 0
        %1667 = vmatprep.subr.bf16.mxu0 0
        %1668 = vmatpush1.bf16.msra.mxu0 0
        %1669 = vmatprep.subr.bf16.mxu0 0
        %1670 = vmatpush1.bf16.msra.mxu0 0
        %1671 = vmatprep.subr.bf16.mxu0 0
        %1672 = vmatpush1.bf16.msra.mxu0 0
        %1673 = vmatprep.mubr.bf16.mxu0 0
        %1674 = vmatmul.mubr.bf16.gmra.mrb[0].mxu0 %v610
        %v1675 = vpop.f32.mrb[0].mxu0
        %v1676 = vadd.f32 0.0, %v1675
        %v1677 = vpop.f32.mrb[0].mxu0
        %v1678 = vpop.f32.mrb[0].mxu0
        %v1679 = vadd.f32 0.0, %v1678
        %v1680 = vpop.f32.mrb[0].mxu0
        %1681 = vmatprep.mubr.bf16.mxu0 0
        %1682 = vmatmul.mubr.bf16.gmra.mrb[0].mxu0 %v613
        %v1683 = vpop.f32.mrb[0].mxu0
        %v1684 = vadd.f32 0.0, %v1683
        %v1685 = vpop.f32.mrb[0].mxu0
        %v1686 = vpop.f32.mrb[0].mxu0
        %v1687 = vadd.f32 0.0, %v1686
        %v1688 = vpop.f32.mrb[0].mxu0
        %1689 = vmatprep.mubr.bf16.mxu0 0
        %1690 = vmatmul.mubr.bf16.gmra.mrb[0].mxu0 %v616
        %v1691 = vpop.f32.mrb[0].mxu0
        %v1692 = vadd.f32 0.0, %v1691
        %v1693 = vpop.f32.mrb[0].mxu0
        %v1694 = vpop.f32.mrb[0].mxu0
        %v1695 = vadd.f32 0.0, %v1694
        %v1696 = vpop.f32.mrb[0].mxu0
        %1697 = vmatprep.mubr.bf16.mxu0 0
        %1698 = vmatmul.mubr.bf16.gmra.mrb[0].mxu0 %v619
        %v1699 = vpop.f32.mrb[0].mxu0
        %v1700 = vadd.f32 0.0, %v1699
        %v1701 = vpop.f32.mrb[0].mxu0
        %v1702 = vpop.f32.mrb[0].mxu0
        %v1703 = vadd.f32 0.0, %v1702
        %v1704 = vpop.f32.mrb[0].mxu0
        %1705 = vmatprep.mubr.bf16.mxu0 0
        %1706 = vmatmul.mubr.bf16.gmra.mrb[0].mxu0 %v622
        %v1707 = vpop.f32.mrb[0].mxu0
        %v1708 = vadd.f32 0.0, %v1707
        %v1709 = vpop.f32.mrb[0].mxu0
        %v1710 = vpop.f32.mrb[0].mxu0
        %v1711 = vadd.f32 0.0, %v1710
        %v1712 = vpop.f32.mrb[0].mxu0
        %1713 = vmatprep.mubr.bf16.mxu0 0
        %1714 = vmatmul.mubr.bf16.gmra.mrb[0].mxu0 %v625
        %v1715 = vpop.f32.mrb[0].mxu0
        %v1716 = vadd.f32 0.0, %v1715
        %v1717 = vpop.f32.mrb[0].mxu0
        %v1718 = vpop.f32.mrb[0].mxu0
        %v1719 = vadd.f32 0.0, %v1718
        %v1720 = vpop.f32.mrb[0].mxu0
        %1721 = vmatprep.mubr.bf16.mxu0 0
        %1722 = vmatmul.mubr.bf16.gmra.mrb[0].mxu0 %v933
        %v1723 = vpop.f32.mrb[0].mxu0
        %v1724 = vadd.f32 0.0, %v1723
        %v1725 = vpop.f32.mrb[0].mxu0
        %v1726 = vpop.f32.mrb[0].mxu0
        %v1727 = vadd.f32 0.0, %v1726
        %v1728 = vpop.f32.mrb[0].mxu0
        %1729 = vmatprep.mubr.bf16.mxu0 0
        %1730 = vmatmul.mubr.bf16.gmra.mrb[0].mxu0 %v1108
        %v1731 = vpop.f32.mrb[0].mxu0
        %v1732 = vadd.f32 0.0, %v1731
        %v1733 = vpop.f32.mrb[0].mxu0
        %v1734 = vpop.f32.mrb[0].mxu0
        %v1735 = vadd.f32 0.0, %v1734
        %v1736 = vpop.f32.mrb[0].mxu0
        %1737 = vmatprep.mubr.bf16.mxu0 0
        %1738 = vmatmul.mubr.bf16.gmra.mrb[0].mxu0 %v1283
        %v1739 = vpop.f32.mrb[0].mxu0
        %v1740 = vadd.f32 0.0, %v1739
        %v1741 = vpop.f32.mrb[0].mxu0
        %v1742 = vpop.f32.mrb[0].mxu0
        %v1743 = vadd.f32 0.0, %v1742
        %v1744 = vpop.f32.mrb[0].mxu0
        %1745 = vmatprep.mubr.bf16.mxu0 0
        %1746 = vmatmul.mubr.bf16.gmra.mrb[0].mxu0 %v1458
        %v1747 = vpop.f32.mrb[0].mxu0
        %v1748 = vadd.f32 0.0, %v1747
        %v1749 = vpop.f32.mrb[0].mxu0
        %v1750 = vpop.f32.mrb[0].mxu0
        %v1751 = vadd.f32 0.0, %v1750
        %v1752 = vpop.f32.mrb[0].mxu0
        %1753 = vmatprep.mubr.bf16.mxu0 0
        %1754 = vmatmul.mubr.bf16.gmra.mrb[0].mxu0 %v1633
        %v1755 = vpop.f32.mrb[0].mxu0
        %v1756 = vadd.f32 0.0, %v1755
        %v1757 = vpop.f32.mrb[0].mxu0
        %v1758 = vpop.f32.mrb[0].mxu0
        %v1759 = vadd.f32 0.0, %v1758
        %v1760 = vpop.f32.mrb[0].mxu0
        %1761 = vmatprep.mubr.bf16.mxu0 0
        %1762 = vmatmul.mubr.bf16.gmra.mrb[0].mxu0 %v1636
        %v1763 = vpop.f32.mrb[0].mxu0
        %v1764 = vadd.f32 0.0, %v1763
        %v1765 = vpop.f32.mrb[0].mxu0
        %v1766 = vpop.f32.mrb[0].mxu0
        %v1767 = vpop.f32.mrb[0].mxu0
        %1768 = vdwg.mxu0
        %v1769 = vadd.f32 %v1594, %v1676
        %v1770 = vadd.f32 %v1595, %v1679
        %v1771 = vadd.f32 %v1596, %v1684
        %v1772 = vadd.f32 %v1597, %v1687
        %v1773 = vadd.f32 %v1598, %v1692
        %v1774 = vadd.f32 %v1599, %v1695
        %v1775 = vadd.f32 %v1600, %v1700
        %v1776 = vadd.f32 %v1601, %v1703
        %v1777 = vadd.f32 %v1602, %v1708
        %v1778 = vadd.f32 %v1603, %v1711
        %v1779 = vadd.f32 %v1604, %v1716
        %v1780 = vadd.f32 %v1605, %v1719
        %v1781 = vadd.f32 %v1606, %v1724
        %v1782 = vadd.f32 %v1607, %v1727
        %v1783 = vadd.f32 %v1608, %v1732
        %v1784 = vadd.f32 %v1609, %v1735
        %v1785 = vadd.f32 %v1610, %v1740
        %v1786 = vadd.f32 %v1611, %v1743
        %v1787 = vadd.f32 %v1612, %v1748
        %v1788 = vadd.f32 %v1613, %v1751
        %v1789 = vadd.f32 %v1614, %v1756
        %v1790 = vadd.f32 %v1615, %v1759
        %v1791 = vadd.f32 %v1616, %v1764
        %v1793 = vlaneseq
        %v1794 = vshrl.u32 %v1793, 7
        %v1795 = vsub.s32 0, %v1794
        %v1796 = vrot.slane %v487, %v1795
        %v1798 = vadd.f32 %v1769, %v1796
        %v1799 = vadd.f32 %v1770, %v1796
        %v1800 = vadd.f32 %v1771, %v1796
        %v1801 = vadd.f32 %v1772, %v1796
        %v1802 = vadd.f32 %v1773, %v1796
        %v1803 = vadd.f32 %v1774, %v1796
        %v1804 = vadd.f32 %v1775, %v1796
        %v1805 = vadd.f32 %v1776, %v1796
        %v1806 = vadd.f32 %v1777, %v1796
        %v1807 = vadd.f32 %v1778, %v1796
        %v1808 = vadd.f32 %v1779, %v1796
        %v1809 = vadd.f32 %v1780, %v1796
        %v1810 = vadd.f32 %v1781, %v1796
        %v1811 = vadd.f32 %v1782, %v1796
        %v1812 = vadd.f32 %v1783, %v1796
        %v1813 = vadd.f32 %v1784, %v1796
        %v1814 = vadd.f32 %v1785, %v1796
        %v1815 = vadd.f32 %v1786, %v1796
        %v1816 = vadd.f32 %v1787, %v1796
        %v1817 = vadd.f32 %v1788, %v1796
        %v1818 = vadd.f32 %v1789, %v1796
        %v1819 = vadd.f32 %v1790, %v1796
        %v1820 = vadd.f32 %v1791, %v1796
        %v1821 = vmax.f32 %v1798, 0.0
        %v1822 = vmax.f32 %v1799, 0.0
        %v1823 = vmax.f32 %v1800, 0.0
        %v1824 = vmax.f32 %v1801, 0.0
        %v1825 = vmax.f32 %v1802, 0.0
        %v1826 = vmax.f32 %v1803, 0.0
        %v1827 = vmax.f32 %v1804, 0.0
        %v1828 = vmax.f32 %v1805, 0.0
        %v1829 = vmax.f32 %v1806, 0.0
        %v1830 = vmax.f32 %v1807, 0.0
        %v1831 = vmax.f32 %v1808, 0.0
        %v1832 = vmax.f32 %v1809, 0.0
        %v1833 = vmax.f32 %v1810, 0.0
        %v1834 = vmax.f32 %v1811, 0.0
        %v1835 = vmax.f32 %v1812, 0.0
        %v1836 = vmax.f32 %v1813, 0.0
        %v1837 = vmax.f32 %v1814, 0.0
        %v1838 = vmax.f32 %v1815, 0.0
        %v1839 = vmax.f32 %v1816, 0.0
        %v1840 = vmax.f32 %v1817, 0.0
        %v1841 = vmax.f32 %v1818, 0.0
        %v1842 = vmax.f32 %v1819, 0.0
        %v1843 = vmax.f32 %v1820, 0.0
        %v1844 = vpack.c.bf16 %v1822, %v1821
        %v1845 = vpack.c.bf16 %v1824, %v1823
        %v1846 = vpack.c.bf16 %v1826, %v1825
        %v1847 = vpack.c.bf16 %v1828, %v1827
        %v1848 = vpack.c.bf16 %v1830, %v1829
        %v1849 = vpack.c.bf16 %v1832, %v1831
        %v1850 = vpack.c.bf16 %v1834, %v1833
        %v1851 = vpack.c.bf16 %v1836, %v1835
        %v1852 = vpack.c.bf16 %v1838, %v1837
        %v1853 = vpack.c.bf16 %v1840, %v1839
        %v1854 = vpack.c.bf16 %v1842, %v1841
        %v1855 = vpack.c.bf16 %v1843, %v1843
        %vm1856 = vsmask.f32 7424
        %v1858 = vshrl.u32 %v1844, 16
        %v1860 = vshll.u32 %v1844, 16
        %v1862 = vrot.slane %v1860, 1
        %v1863 = vor.u32 %v1858, %v1862
        %v1865 = vshll.u32 %v1845, 16
        %v1867 = vrot.slane %v1865, 1
        %v1868 = vsel %vm1856, %v1863, %v1867
        %v1869 = vshrl.u32 %v1845, 16
        %v1871 = vor.u32 %v1869, %v1867
        %v1873 = vshll.u32 %v1846, 16
        %v1875 = vrot.slane %v1873, 1
        %v1876 = vsel %vm1856, %v1871, %v1875
        %v1877 = vshrl.u32 %v1846, 16
        %v1879 = vor.u32 %v1877, %v1875
        %v1881 = vshll.u32 %v1847, 16
        %v1883 = vrot.slane %v1881, 1
        %v1884 = vsel %vm1856, %v1879, %v1883
        %v1885 = vshrl.u32 %v1847, 16
        %v1887 = vor.u32 %v1885, %v1883
        %v1889 = vshll.u32 %v1848, 16
        %v1891 = vrot.slane %v1889, 1
        %v1892 = vsel %vm1856, %v1887, %v1891
        %v1893 = vshrl.u32 %v1848, 16
        %v1895 = vor.u32 %v1893, %v1891
        %v1897 = vshll.u32 %v1849, 16
        %v1899 = vrot.slane %v1897, 1
        %v1900 = vsel %vm1856, %v1895, %v1899
        %v1901 = vshrl.u32 %v1849, 16
        %v1903 = vor.u32 %v1901, %v1899
        %v1905 = vshll.u32 %v1850, 16
        %v1907 = vrot.slane %v1905, 1
        %v1908 = vsel %vm1856, %v1903, %v1907
        %v1909 = vshrl.u32 %v1850, 16
        %v1911 = vor.u32 %v1909, %v1907
        %v1913 = vshll.u32 %v1851, 16
        %v1915 = vrot.slane %v1913, 1
        %v1916 = vsel %vm1856, %v1911, %v1915
        %v1917 = vshrl.u32 %v1851, 16
        %v1919 = vor.u32 %v1917, %v1915
        %v1921 = vshll.u32 %v1852, 16
        %v1923 = vrot.slane %v1921, 1
        %v1924 = vsel %vm1856, %v1919, %v1923
        %v1925 = vshrl.u32 %v1852, 16
        %v1927 = vor.u32 %v1925, %v1923
        %v1929 = vshll.u32 %v1853, 16
        %v1931 = vrot.slane %v1929, 1
        %v1932 = vsel %vm1856, %v1927, %v1931
        %1933 = vrot.lane.b32.xlu0 %v1868, 32
        %v1934 = vpop.permute.xlu0 %1933
        %1935 = vrot.lane.b32.xlu0 %v1876, 32
        %v1936 = vpop.permute.xlu0 %1935
        %1937 = vrot.lane.b32.xlu0 %v1884, 32
        %v1938 = vpop.permute.xlu0 %1937
        %1939 = vrot.lane.b32.xlu0 %v1892, 32
        %v1940 = vpop.permute.xlu0 %1939
        %1941 = vrot.lane.b32.xlu0 %v1900, 32
        %v1942 = vpop.permute.xlu0 %1941
        %1943 = vrot.lane.b32.xlu0 %v1908, 32
        %v1944 = vpop.permute.xlu0 %1943
        %1945 = vrot.lane.b32.xlu0 %v1916, 32
        %v1946 = vpop.permute.xlu0 %1945
        %1947 = vrot.lane.b32.xlu0 %v1924, 32
        %v1948 = vpop.permute.xlu0 %1947
        %1949 = vrot.lane.b32.xlu0 %v1932, 32
        %v1950 = vpop.permute.xlu0 %1949
        %vm1961 = vcmask 1046528
        %v1962 = vrot.slane %v1844, 1
        %v1963 = vrot.slane %v1845, 1
        %v1964 = vsel %vm1961, %v1962, %v1963
        %v1965 = vrot.slane %v1846, 1
        %v1966 = vsel %vm1961, %v1963, %v1965
        %v1967 = vrot.slane %v1847, 1
        %v1968 = vsel %vm1961, %v1965, %v1967
        %v1969 = vrot.slane %v1848, 1
        %v1970 = vsel %vm1961, %v1967, %v1969
        %v1971 = vrot.slane %v1849, 1
        %v1972 = vsel %vm1961, %v1969, %v1971
        %v1973 = vrot.slane %v1850, 1
        %v1974 = vsel %vm1961, %v1971, %v1973
        %v1975 = vrot.slane %v1851, 1
        %v1976 = vsel %vm1961, %v1973, %v1975
        %v1977 = vrot.slane %v1852, 1
        %v1978 = vsel %vm1961, %v1975, %v1977
        %v1979 = vrot.slane %v1853, 1
        %v1980 = vsel %vm1961, %v1977, %v1979
        %1981 = vrot.lane.b32.xlu0 %v1964, 64
        %v1982 = vpop.permute.xlu0 %1981
        %1983 = vrot.lane.b32.xlu0 %v1966, 64
        %v1984 = vpop.permute.xlu0 %1983
        %1985 = vrot.lane.b32.xlu0 %v1968, 64
        %v1986 = vpop.permute.xlu0 %1985
        %1987 = vrot.lane.b32.xlu0 %v1970, 64
        %v1988 = vpop.permute.xlu0 %1987
        %1989 = vrot.lane.b32.xlu0 %v1972, 64
        %v1990 = vpop.permute.xlu0 %1989
        %1991 = vrot.lane.b32.xlu0 %v1974, 64
        %v1992 = vpop.permute.xlu0 %1991
        %1993 = vrot.lane.b32.xlu0 %v1976, 64
        %v1994 = vpop.permute.xlu0 %1993
        %1995 = vrot.lane.b32.xlu0 %v1978, 64
        %v1996 = vpop.permute.xlu0 %1995
        %1997 = vrot.lane.b32.xlu0 %v1980, 64
        %v1998 = vpop.permute.xlu0 %1997
        %vm1999 = vcmask 261120
        %v2001 = vsel %vm1999, %v1844, %v1934
        %v2003 = vsel %vm1999, %v1845, %v1936
        %v2005 = vsel %vm1999, %v1846, %v1938
        %v2007 = vsel %vm1999, %v1847, %v1940
        %v2009 = vsel %vm1999, %v1848, %v1942
        %v2011 = vsel %vm1999, %v1849, %v1944
        %v2013 = vsel %vm1999, %v1850, %v1946
        %v2015 = vsel %vm1999, %v1851, %v1948
        %v2017 = vsel %vm1999, %v1852, %v1950
        %vm2018 = vcmask 523264
        %v2020 = vsel %vm2018, %v2001, %v1982
        %v2022 = vsel %vm2018, %v2003, %v1984
        %v2024 = vsel %vm2018, %v2005, %v1986
        %v2026 = vsel %vm2018, %v2007, %v1988
        %v2028 = vsel %vm2018, %v2009, %v1990
        %v2030 = vsel %vm2018, %v2011, %v1992
        %v2032 = vsel %vm2018, %v2013, %v1994
        %v2034 = vsel %vm2018, %v2015, %v1996
        %v2036 = vsel %vm2018, %v2017, %v1998
        %v2037 = vshrl.u32 %v1853, 16
        %v2039 = vor.u32 %v2037, %v1931
        %v2041 = vshll.u32 %v1854, 16
        %v2043 = vrot.slane %v2041, 1
        %v2044 = vsel %vm1856, %v2039, %v2043
        %2045 = vrot.lane.b32.xlu0 %v2044, 32
        %v2046 = vpop.permute.xlu0 %2045
        %v2048 = vrot.slane %v1854, 1
        %v2049 = vsel %vm1961, %v1979, %v2048
        %2050 = vrot.lane.b32.xlu0 %v2049, 64
        %v2051 = vpop.permute.xlu0 %2050
        %v2053 = vsel %vm1999, %v1853, %v2046
        %v2055 = vsel %vm2018, %v2053, %v2051
        %v2068 = vunpack.c.l.b16 %v391
        %v2069 = vunpack.c.l.b16 %v392
        %v2070 = vunpack.c.l.b16 %v393
        %v2071 = vunpack.c.l.b16 %v394
        %v2072 = vunpack.c.l.b16 %v395
        %v2073 = vunpack.c.l.b16 %v396
        %v2074 = vunpack.c.l.b16 %v397
        %v2075 = vunpack.c.l.b16 %v398
        %v2076 = vunpack.c.l.b16 %v399
        %v2077 = vunpack.c.l.b16 %v400
        %v2078 = vunpack.c.l.b16 %v401
        %v2079 = vunpack.c.l.b16 %v402
        %v2080 = vpack.c.b16 %v2069, %v2068
        %v2081 = vpack.c.b16 %v2071, %v2070
        %v2082 = vpack.c.b16 %v2073, %v2072
        %v2083 = vpack.c.b16 %v2075, %v2074
        %v2084 = vpack.c.b16 %v2077, %v2076
        %v2085 = vpack.c.b16 %v2079, %v2078
        %vm2092 = vcmask 785408
        %v2093 = vsel %vm2092, %v2022, 0
        %v2095 = vsel %vm2092, %v2024, 0
        %v2097 = vsel %vm2092, %v2026, 0
        %v2099 = vsel %vm2092, %v2028, 0
        %v2101 = vsel %vm2092, %v2030, 0
        %v2103 = vsel %vm2092, %v2032, 0
        %v2105 = vsel %vm2092, %v2034, 0
        %v2107 = vsel %vm2092, %v2036, 0
        %v2109 = vsel %vm2092, %v2055, 0
        %2111 = vmatprep.subr.bf16.mxu0 0
        %2112 = vmatpush1.bf16.msra.mxu0 %v2080
        %2113 = vmatprep.subr.bf16.mxu0 0
        %2114 = vmatpush1.bf16.msra.mxu0 %v2081
        %2115 = vmatprep.subr.bf16.mxu0 0
        %2116 = vmatpush1.bf16.msra.mxu0 %v2082
        %2117 = vmatprep.subr.bf16.mxu0 0
        %2118 = vmatpush1.bf16.msra.mxu0 %v2083
        %2119 = vmatprep.subr.bf16.mxu0 0
        %2120 = vmatpush1.bf16.msra.mxu0 %v2084
        %2121 = vmatprep.subr.bf16.mxu0 0
        %2122 = vmatpush1.bf16.msra.mxu0 %v2085
        %2123 = vmatprep.subr.bf16.mxu0 0
        %2124 = vmatpush1.bf16.msra.mxu0 0
        %2125 = vmatprep.subr.bf16.mxu0 0
        %2126 = vmatpush1.bf16.msra.mxu0 0
        %2127 = vmatprep.subr.bf16.mxu0 0
        %2128 = vmatpush1.bf16.msra.mxu0 0
        %2129 = vmatprep.subr.bf16.mxu0 0
        %2130 = vmatpush1.bf16.msra.mxu0 0
        %2131 = vmatprep.subr.bf16.mxu0 0
        %2132 = vmatpush1.bf16.msra.mxu0 0
        %2133 = vmatprep.subr.bf16.mxu0 0
        %2134 = vmatpush1.bf16.msra.mxu0 0
        %2135 = vmatprep.subr.bf16.mxu0 0
        %2136 = vmatpush1.bf16.msra.mxu0 0
        %2137 = vmatprep.subr.bf16.mxu0 0
        %2138 = vmatpush1.bf16.msra.mxu0 0
        %2139 = vmatprep.subr.bf16.mxu0 0
        %2140 = vmatpush1.bf16.msra.mxu0 0
        %2141 = vmatprep.subr.bf16.mxu0 0
        %2142 = vmatpush1.bf16.msra.mxu0 0
        %2143 = vmatprep.mubr.bf16.mxu0 0
        %2144 = vmatmul.mubr.bf16.gmra.mrb[0].mxu0 %v2093
        %v2145 = vpop.f32.mrb[0].mxu0
        %v2146 = vadd.f32 0.0, %v2145
        %v2147 = vpop.f32.mrb[0].mxu0
        %v2148 = vpop.f32.mrb[0].mxu0
        %v2149 = vadd.f32 0.0, %v2148
        %v2150 = vpop.f32.mrb[0].mxu0
        %2151 = vmatprep.mubr.bf16.mxu0 0
        %2152 = vmatmul.mubr.bf16.gmra.mrb[0].mxu0 %v2095
        %v2153 = vpop.f32.mrb[0].mxu0
        %v2154 = vadd.f32 0.0, %v2153
        %v2155 = vpop.f32.mrb[0].mxu0
        %v2156 = vpop.f32.mrb[0].mxu0
        %v2157 = vadd.f32 0.0, %v2156
        %v2158 = vpop.f32.mrb[0].mxu0
        %2159 = vmatprep.mubr.bf16.mxu0 0
        %2160 = vmatmul.mubr.bf16.gmra.mrb[0].mxu0 %v2097
        %v2161 = vpop.f32.mrb[0].mxu0
        %v2162 = vadd.f32 0.0, %v2161
        %v2163 = vpop.f32.mrb[0].mxu0
        %v2164 = vpop.f32.mrb[0].mxu0
        %v2165 = vadd.f32 0.0, %v2164
        %v2166 = vpop.f32.mrb[0].mxu0
        %2167 = vmatprep.mubr.bf16.mxu0 0
        %2168 = vmatmul.mubr.bf16.gmra.mrb[0].mxu0 %v2099
        %v2169 = vpop.f32.mrb[0].mxu0
        %v2170 = vadd.f32 0.0, %v2169
        %v2171 = vpop.f32.mrb[0].mxu0
        %v2172 = vpop.f32.mrb[0].mxu0
        %v2173 = vadd.f32 0.0, %v2172
        %v2174 = vpop.f32.mrb[0].mxu0
        %2175 = vmatprep.mubr.bf16.mxu0 0
        %2176 = vmatmul.mubr.bf16.gmra.mrb[0].mxu0 %v2101
        %v2177 = vpop.f32.mrb[0].mxu0
        %v2178 = vadd.f32 0.0, %v2177
        %v2179 = vpop.f32.mrb[0].mxu0
        %v2180 = vpop.f32.mrb[0].mxu0
        %v2181 = vadd.f32 0.0, %v2180
        %v2182 = vpop.f32.mrb[0].mxu0
        %2183 = vmatprep.mubr.bf16.mxu0 0
        %2184 = vmatmul.mubr.bf16.gmra.mrb[0].mxu0 %v2103
        %v2185 = vpop.f32.mrb[0].mxu0
        %v2186 = vadd.f32 0.0, %v2185
        %v2187 = vpop.f32.mrb[0].mxu0
        %v2188 = vpop.f32.mrb[0].mxu0
        %v2189 = vadd.f32 0.0, %v2188
        %v2190 = vpop.f32.mrb[0].mxu0
        %2191 = vmatprep.mubr.bf16.mxu0 0
        %2192 = vmatmul.mubr.bf16.gmra.mrb[0].mxu0 %v2105
        %v2193 = vpop.f32.mrb[0].mxu0
        %v2194 = vadd.f32 0.0, %v2193
        %v2195 = vpop.f32.mrb[0].mxu0
        %v2196 = vpop.f32.mrb[0].mxu0
        %v2197 = vadd.f32 0.0, %v2196
        %v2198 = vpop.f32.mrb[0].mxu0
        %2199 = vmatprep.mubr.bf16.mxu0 0
        %2200 = vmatmul.mubr.bf16.gmra.mrb[0].mxu0 %v2107
        %v2201 = vpop.f32.mrb[0].mxu0
        %v2202 = vadd.f32 0.0, %v2201
        %v2203 = vpop.f32.mrb[0].mxu0
        %v2204 = vpop.f32.mrb[0].mxu0
        %v2205 = vadd.f32 0.0, %v2204
        %v2206 = vpop.f32.mrb[0].mxu0
        %2207 = vmatprep.mubr.bf16.mxu0 0
        %2208 = vmatmul.mubr.bf16.gmra.mrb[0].mxu0 %v2109
        %v2209 = vpop.f32.mrb[0].mxu0
        %v2210 = vadd.f32 0.0, %v2209
        %v2211 = vpop.f32.mrb[0].mxu0
        %v2212 = vpop.f32.mrb[0].mxu0
        %v2213 = vadd.f32 0.0, %v2212
        %v2214 = vpop.f32.mrb[0].mxu0
        %2215 = vdwg.mxu0
        %v2228 = vunpack.c.l.b16 %v379
        %v2229 = vunpack.c.l.b16 %v380
        %v2230 = vunpack.c.l.b16 %v381
        %v2231 = vunpack.c.l.b16 %v382
        %v2232 = vunpack.c.l.b16 %v383
        %v2233 = vunpack.c.l.b16 %v384
        %v2234 = vunpack.c.l.b16 %v385
        %v2235 = vunpack.c.l.b16 %v386
        %v2236 = vunpack.c.l.b16 %v387
        %v2237 = vunpack.c.l.b16 %v388
        %v2238 = vunpack.c.l.b16 %v389
        %v2239 = vunpack.c.l.b16 %v390
        %v2240 = vpack.c.b16 %v2229, %v2228
        %v2241 = vpack.c.b16 %v2231, %v2230
        %v2242 = vpack.c.b16 %v2233, %v2232
        %v2243 = vpack.c.b16 %v2235, %v2234
        %v2244 = vpack.c.b16 %v2237, %v2236
        %v2245 = vpack.c.b16 %v2239, %v2238
        %v2252 = vsel %vm2092, %v2020, 0
        %2254 = vmatprep.subr.bf16.mxu0 0
        %2255 = vmatpush1.bf16.msra.mxu0 %v2240
        %2256 = vmatprep.subr.bf16.mxu0 0
        %2257 = vmatpush1.bf16.msra.mxu0 %v2241
        %2258 = vmatprep.subr.bf16.mxu0 0
        %2259 = vmatpush1.bf16.msra.mxu0 %v2242
        %2260 = vmatprep.subr.bf16.mxu0 0
        %2261 = vmatpush1.bf16.msra.mxu0 %v2243
        %2262 = vmatprep.subr.bf16.mxu0 0
        %2263 = vmatpush1.bf16.msra.mxu0 %v2244
        %2264 = vmatprep.subr.bf16.mxu0 0
        %2265 = vmatpush1.bf16.msra.mxu0 %v2245
        %2266 = vmatprep.subr.bf16.mxu0 0
        %2267 = vmatpush1.bf16.msra.mxu0 0
        %2268 = vmatprep.subr.bf16.mxu0 0
        %2269 = vmatpush1.bf16.msra.mxu0 0
        %2270 = vmatprep.subr.bf16.mxu0 0
        %2271 = vmatpush1.bf16.msra.mxu0 0
        %2272 = vmatprep.subr.bf16.mxu0 0
        %2273 = vmatpush1.bf16.msra.mxu0 0
        %2274 = vmatprep.subr.bf16.mxu0 0
        %2275 = vmatpush1.bf16.msra.mxu0 0
        %2276 = vmatprep.subr.bf16.mxu0 0
        %2277 = vmatpush1.bf16.msra.mxu0 0
        %2278 = vmatprep.subr.bf16.mxu0 0
        %2279 = vmatpush1.bf16.msra.mxu0 0
        %2280 = vmatprep.subr.bf16.mxu0 0
        %2281 = vmatpush1.bf16.msra.mxu0 0
        %2282 = vmatprep.subr.bf16.mxu0 0
        %2283 = vmatpush1.bf16.msra.mxu0 0
        %2284 = vmatprep.subr.bf16.mxu0 0
        %2285 = vmatpush1.bf16.msra.mxu0 0
        %2286 = vmatprep.mubr.bf16.mxu0 0
        %2287 = vmatmul.mubr.bf16.gmra.mrb[0].mxu0 %v2252
        %v2288 = vpop.f32.mrb[0].mxu0
        %v2289 = vadd.f32 %v2146, %v2288
        %v2290 = vpop.f32.mrb[0].mxu0
        %v2291 = vpop.f32.mrb[0].mxu0
        %v2292 = vadd.f32 %v2149, %v2291
        %v2293 = vpop.f32.mrb[0].mxu0
        %2294 = vmatprep.mubr.bf16.mxu0 0
        %2295 = vmatmul.mubr.bf16.gmra.mrb[0].mxu0 %v2093
        %v2296 = vpop.f32.mrb[0].mxu0
        %v2297 = vadd.f32 %v2154, %v2296
        %v2298 = vpop.f32.mrb[0].mxu0
        %v2299 = vpop.f32.mrb[0].mxu0
        %v2300 = vadd.f32 %v2157, %v2299
        %v2301 = vpop.f32.mrb[0].mxu0
        %2302 = vmatprep.mubr.bf16.mxu0 0
        %2303 = vmatmul.mubr.bf16.gmra.mrb[0].mxu0 %v2095
        %v2304 = vpop.f32.mrb[0].mxu0
        %v2305 = vadd.f32 %v2162, %v2304
        %v2306 = vpop.f32.mrb[0].mxu0
        %v2307 = vpop.f32.mrb[0].mxu0
        %v2308 = vadd.f32 %v2165, %v2307
        %v2309 = vpop.f32.mrb[0].mxu0
        %2310 = vmatprep.mubr.bf16.mxu0 0
        %2311 = vmatmul.mubr.bf16.gmra.mrb[0].mxu0 %v2097
        %v2312 = vpop.f32.mrb[0].mxu0
        %v2313 = vadd.f32 %v2170, %v2312
        %v2314 = vpop.f32.mrb[0].mxu0
        %v2315 = vpop.f32.mrb[0].mxu0
        %v2316 = vadd.f32 %v2173, %v2315
        %v2317 = vpop.f32.mrb[0].mxu0
        %2318 = vmatprep.mubr.bf16.mxu0 0
        %2319 = vmatmul.mubr.bf16.gmra.mrb[0].mxu0 %v2099
        %v2320 = vpop.f32.mrb[0].mxu0
        %v2321 = vadd.f32 %v2178, %v2320
        %v2322 = vpop.f32.mrb[0].mxu0
        %v2323 = vpop.f32.mrb[0].mxu0
        %v2324 = vadd.f32 %v2181, %v2323
        %v2325 = vpop.f32.mrb[0].mxu0
        %2326 = vmatprep.mubr.bf16.mxu0 0
        %2327 = vmatmul.mubr.bf16.gmra.mrb[0].mxu0 %v2101
        %v2328 = vpop.f32.mrb[0].mxu0
        %v2329 = vadd.f32 %v2186, %v2328
        %v2330 = vpop.f32.mrb[0].mxu0
        %v2331 = vpop.f32.mrb[0].mxu0
        %v2332 = vadd.f32 %v2189, %v2331
        %v2333 = vpop.f32.mrb[0].mxu0
        %2334 = vmatprep.mubr.bf16.mxu0 0
        %2335 = vmatmul.mubr.bf16.gmra.mrb[0].mxu0 %v2103
        %v2336 = vpop.f32.mrb[0].mxu0
        %v2337 = vadd.f32 %v2194, %v2336
        %v2338 = vpop.f32.mrb[0].mxu0
        %v2339 = vpop.f32.mrb[0].mxu0
        %v2340 = vadd.f32 %v2197, %v2339
        %v2341 = vpop.f32.mrb[0].mxu0
        %2342 = vmatprep.mubr.bf16.mxu0 0
        %2343 = vmatmul.mubr.bf16.gmra.mrb[0].mxu0 %v2105
        %v2344 = vpop.f32.mrb[0].mxu0
        %v2345 = vadd.f32 %v2202, %v2344
        %v2346 = vpop.f32.mrb[0].mxu0
        %v2347 = vpop.f32.mrb[0].mxu0
        %v2348 = vadd.f32 %v2205, %v2347
        %v2349 = vpop.f32.mrb[0].mxu0
        %2350 = vmatprep.mubr.bf16.mxu0 0
        %2351 = vmatmul.mubr.bf16.gmra.mrb[0].mxu0 %v2107
        %v2352 = vpop.f32.mrb[0].mxu0
        %v2353 = vadd.f32 %v2210, %v2352
        %v2354 = vpop.f32.mrb[0].mxu0
        %v2355 = vpop.f32.mrb[0].mxu0
        %v2356 = vadd.f32 %v2213, %v2355
        %v2357 = vpop.f32.mrb[0].mxu0
        %2358 = vdwg.mxu0
        %v2359 = vshrl.u32 %v1854, 16
        %v2361 = vor.u32 %v2359, %v2043
        %v2363 = vshll.u32 %v1855, 16
        %v2365 = vrot.slane %v2363, 1
        %v2366 = vsel %vm1856, %v2361, %v2365
        %2367 = vrot.lane.b32.xlu0 %v2366, 32
        %v2368 = vpop.permute.xlu0 %2367
        %v2370 = vrot.slane %v1855, 1
        %v2371 = vsel %vm1961, %v2048, %v2370
        %2372 = vrot.lane.b32.xlu0 %v2371, 64
        %v2373 = vpop.permute.xlu0 %2372
        %v2375 = vsel %vm1999, %v1854, %v2368
        %v2377 = vsel %vm2018, %v2375, %v2373
        %v2390 = vunpack.c.l.b16 %v403
        %v2391 = vunpack.c.l.b16 %v404
        %v2392 = vunpack.c.l.b16 %v405
        %v2393 = vunpack.c.l.b16 %v406
        %v2394 = vunpack.c.l.b16 %v407
        %v2395 = vunpack.c.l.b16 %v408
        %v2396 = vunpack.c.l.b16 %v409
        %v2397 = vunpack.c.l.b16 %v410
        %v2398 = vunpack.c.l.b16 %v411
        %v2399 = vunpack.c.l.b16 %v412
        %v2400 = vunpack.c.l.b16 %v413
        %v2401 = vunpack.c.l.b16 %v414
        %v2402 = vpack.c.b16 %v2391, %v2390
        %v2403 = vpack.c.b16 %v2393, %v2392
        %v2404 = vpack.c.b16 %v2395, %v2394
        %v2405 = vpack.c.b16 %v2397, %v2396
        %v2406 = vpack.c.b16 %v2399, %v2398
        %v2407 = vpack.c.b16 %v2401, %v2400
        %v2414 = vsel %vm2092, %v2377, 0
        %2416 = vmatprep.subr.bf16.mxu0 0
        %2417 = vmatpush1.bf16.msra.mxu0 %v2402
        %2418 = vmatprep.subr.bf16.mxu0 0
        %2419 = vmatpush1.bf16.msra.mxu0 %v2403
        %2420 = vmatprep.subr.bf16.mxu0 0
        %2421 = vmatpush1.bf16.msra.mxu0 %v2404
        %2422 = vmatprep.subr.bf16.mxu0 0
        %2423 = vmatpush1.bf16.msra.mxu0 %v2405
        %2424 = vmatprep.subr.bf16.mxu0 0
        %2425 = vmatpush1.bf16.msra.mxu0 %v2406
        %2426 = vmatprep.subr.bf16.mxu0 0
        %2427 = vmatpush1.bf16.msra.mxu0 %v2407
        %2428 = vmatprep.subr.bf16.mxu0 0
        %2429 = vmatpush1.bf16.msra.mxu0 0
        %2430 = vmatprep.subr.bf16.mxu0 0
        %2431 = vmatpush1.bf16.msra.mxu0 0
        %2432 = vmatprep.subr.bf16.mxu0 0
        %2433 = vmatpush1.bf16.msra.mxu0 0
        %2434 = vmatprep.subr.bf16.mxu0 0
        %2435 = vmatpush1.bf16.msra.mxu0 0
        %2436 = vmatprep.subr.bf16.mxu0 0
        %2437 = vmatpush1.bf16.msra.mxu0 0
        %2438 = vmatprep.subr.bf16.mxu0 0
        %2439 = vmatpush1.bf16.msra.mxu0 0
        %2440 = vmatprep.subr.bf16.mxu0 0
        %2441 = vmatpush1.bf16.msra.mxu0 0
        %2442 = vmatprep.subr.bf16.mxu0 0
        %2443 = vmatpush1.bf16.msra.mxu0 0
        %2444 = vmatprep.subr.bf16.mxu0 0
        %2445 = vmatpush1.bf16.msra.mxu0 0
        %2446 = vmatprep.subr.bf16.mxu0 0
        %2447 = vmatpush1.bf16.msra.mxu0 0
        %2448 = vmatprep.mubr.bf16.mxu0 0
        %2449 = vmatmul.mubr.bf16.gmra.mrb[0].mxu0 %v2095
        %v2450 = vpop.f32.mrb[0].mxu0
        %v2451 = vadd.f32 0.0, %v2450
        %v2452 = vpop.f32.mrb[0].mxu0
        %v2453 = vpop.f32.mrb[0].mxu0
        %v2454 = vadd.f32 0.0, %v2453
        %v2455 = vpop.f32.mrb[0].mxu0
        %2456 = vmatprep.mubr.bf16.mxu0 0
        %2457 = vmatmul.mubr.bf16.gmra.mrb[0].mxu0 %v2097
        %v2458 = vpop.f32.mrb[0].mxu0
        %v2459 = vadd.f32 0.0, %v2458
        %v2460 = vpop.f32.mrb[0].mxu0
        %v2461 = vpop.f32.mrb[0].mxu0
        %v2462 = vadd.f32 0.0, %v2461
        %v2463 = vpop.f32.mrb[0].mxu0
        %2464 = vmatprep.mubr.bf16.mxu0 0
        %2465 = vmatmul.mubr.bf16.gmra.mrb[0].mxu0 %v2099
        %v2466 = vpop.f32.mrb[0].mxu0
        %v2467 = vadd.f32 0.0, %v2466
        %v2468 = vpop.f32.mrb[0].mxu0
        %v2469 = vpop.f32.mrb[0].mxu0
        %v2470 = vadd.f32 0.0, %v2469
        %v2471 = vpop.f32.mrb[0].mxu0
        %2472 = vmatprep.mubr.bf16.mxu0 0
        %2473 = vmatmul.mubr.bf16.gmra.mrb[0].mxu0 %v2101
        %v2474 = vpop.f32.mrb[0].mxu0
        %v2475 = vadd.f32 0.0, %v2474
        %v2476 = vpop.f32.mrb[0].mxu0
        %v2477 = vpop.f32.mrb[0].mxu0
        %v2478 = vadd.f32 0.0, %v2477
        %v2479 = vpop.f32.mrb[0].mxu0
        %2480 = vmatprep.mubr.bf16.mxu0 0
        %2481 = vmatmul.mubr.bf16.gmra.mrb[0].mxu0 %v2103
        %v2482 = vpop.f32.mrb[0].mxu0
        %v2483 = vadd.f32 0.0, %v2482
        %v2484 = vpop.f32.mrb[0].mxu0
        %v2485 = vpop.f32.mrb[0].mxu0
        %v2486 = vadd.f32 0.0, %v2485
        %v2487 = vpop.f32.mrb[0].mxu0
        %2488 = vmatprep.mubr.bf16.mxu0 0
        %2489 = vmatmul.mubr.bf16.gmra.mrb[0].mxu0 %v2105
        %v2490 = vpop.f32.mrb[0].mxu0
        %v2491 = vadd.f32 0.0, %v2490
        %v2492 = vpop.f32.mrb[0].mxu0
        %v2493 = vpop.f32.mrb[0].mxu0
        %v2494 = vadd.f32 0.0, %v2493
        %v2495 = vpop.f32.mrb[0].mxu0
        %2496 = vmatprep.mubr.bf16.mxu0 0
        %2497 = vmatmul.mubr.bf16.gmra.mrb[0].mxu0 %v2107
        %v2498 = vpop.f32.mrb[0].mxu0
        %v2499 = vadd.f32 0.0, %v2498
        %v2500 = vpop.f32.mrb[0].mxu0
        %v2501 = vpop.f32.mrb[0].mxu0
        %v2502 = vadd.f32 0.0, %v2501
        %v2503 = vpop.f32.mrb[0].mxu0
        %2504 = vmatprep.mubr.bf16.mxu0 0
        %2505 = vmatmul.mubr.bf16.gmra.mrb[0].mxu0 %v2109
        %v2506 = vpop.f32.mrb[0].mxu0
        %v2507 = vadd.f32 0.0, %v2506
        %v2508 = vpop.f32.mrb[0].mxu0
        %v2509 = vpop.f32.mrb[0].mxu0
        %v2510 = vadd.f32 0.0, %v2509
        %v2511 = vpop.f32.mrb[0].mxu0
        %2512 = vmatprep.mubr.bf16.mxu0 0
        %2513 = vmatmul.mubr.bf16.gmra.mrb[0].mxu0 %v2414
        %v2514 = vpop.f32.mrb[0].mxu0
        %v2515 = vadd.f32 0.0, %v2514
        %v2516 = vpop.f32.mrb[0].mxu0
        %v2517 = vpop.f32.mrb[0].mxu0
        %v2518 = vadd.f32 0.0, %v2517
        %v2519 = vpop.f32.mrb[0].mxu0
        %2520 = vdwg.mxu0
        %v2521 = vadd.f32 %v2289, %v2451
        %v2522 = vadd.f32 %v2292, %v2454
        %v2523 = vadd.f32 %v2297, %v2459
        %v2524 = vadd.f32 %v2300, %v2462
        %v2525 = vadd.f32 %v2305, %v2467
        %v2526 = vadd.f32 %v2308, %v2470
        %v2527 = vadd.f32 %v2313, %v2475
        %v2528 = vadd.f32 %v2316, %v2478
        %v2529 = vadd.f32 %v2321, %v2483
        %v2530 = vadd.f32 %v2324, %v2486
        %v2531 = vadd.f32 %v2329, %v2491
        %v2532 = vadd.f32 %v2332, %v2494
        %v2533 = vadd.f32 %v2337, %v2499
        %v2534 = vadd.f32 %v2340, %v2502
        %v2535 = vadd.f32 %v2345, %v2507
        %v2536 = vadd.f32 %v2348, %v2510
        %v2537 = vadd.f32 %v2353, %v2515
        %v2538 = vadd.f32 %v2356, %v2518
        %v2540 = vlaneseq
        %v2541 = vshrl.u32 %v2540, 7
        %v2542 = vsub.s32 0, %v2541
        %v2543 = vrot.slane %v488, %v2542
        %v2545 = vadd.f32 %v2521, %v2543
        %v2546 = vadd.f32 %v2522, %v2543
        %v2547 = vadd.f32 %v2523, %v2543
        %v2548 = vadd.f32 %v2524, %v2543
        %v2549 = vadd.f32 %v2525, %v2543
        %v2550 = vadd.f32 %v2526, %v2543
        %v2551 = vadd.f32 %v2527, %v2543
        %v2552 = vadd.f32 %v2528, %v2543
        %v2553 = vadd.f32 %v2529, %v2543
        %v2554 = vadd.f32 %v2530, %v2543
        %v2555 = vadd.f32 %v2531, %v2543
        %v2556 = vadd.f32 %v2532, %v2543
        %v2557 = vadd.f32 %v2533, %v2543
        %v2558 = vadd.f32 %v2534, %v2543
        %v2559 = vadd.f32 %v2535, %v2543
        %v2560 = vadd.f32 %v2536, %v2543
        %v2561 = vadd.f32 %v2537, %v2543
        %v2562 = vadd.f32 %v2538, %v2543
        %v2563 = vmax.f32 %v2545, 0.0
        %v2564 = vmax.f32 %v2546, 0.0
        %v2565 = vmax.f32 %v2547, 0.0
        %v2566 = vmax.f32 %v2548, 0.0
        %v2567 = vmax.f32 %v2549, 0.0
        %v2568 = vmax.f32 %v2550, 0.0
        %v2569 = vmax.f32 %v2551, 0.0
        %v2570 = vmax.f32 %v2552, 0.0
        %v2571 = vmax.f32 %v2553, 0.0
        %v2572 = vmax.f32 %v2554, 0.0
        %v2573 = vmax.f32 %v2555, 0.0
        %v2574 = vmax.f32 %v2556, 0.0
        %v2575 = vmax.f32 %v2557, 0.0
        %v2576 = vmax.f32 %v2558, 0.0
        %v2577 = vmax.f32 %v2559, 0.0
        %v2578 = vmax.f32 %v2560, 0.0
        %v2579 = vmax.f32 %v2561, 0.0
        %v2580 = vmax.f32 %v2562, 0.0
        %v2581 = vpack.c.bf16 %v2564, %v2563
        %v2582 = vpack.c.bf16 %v2566, %v2565
        %v2583 = vpack.c.bf16 %v2568, %v2567
        %v2584 = vpack.c.bf16 %v2570, %v2569
        %v2585 = vpack.c.bf16 %v2572, %v2571
        %v2586 = vpack.c.bf16 %v2574, %v2573
        %v2587 = vpack.c.bf16 %v2576, %v2575
        %v2588 = vpack.c.bf16 %v2578, %v2577
        %v2589 = vpack.c.bf16 %v2580, %v2579
        %v2591 = vshrl.u32 %v2581, 16
        %v2593 = vshll.u32 %v2581, 16
        %v2595 = vrot.slane %v2593, 1
        %v2596 = vor.u32 %v2591, %v2595
        %v2598 = vshll.u32 %v2582, 16
        %v2600 = vrot.slane %v2598, 1
        %v2601 = vsel %vm1856, %v2596, %v2600
        %v2602 = vshrl.u32 %v2582, 16
        %v2604 = vor.u32 %v2602, %v2600
        %v2606 = vshll.u32 %v2583, 16
        %v2608 = vrot.slane %v2606, 1
        %v2609 = vsel %vm1856, %v2604, %v2608
        %v2610 = vshrl.u32 %v2583, 16
        %v2612 = vor.u32 %v2610, %v2608
        %v2614 = vshll.u32 %v2584, 16
        %v2616 = vrot.slane %v2614, 1
        %v2617 = vsel %vm1856, %v2612, %v2616
        %v2618 = vshrl.u32 %v2584, 16
        %v2620 = vor.u32 %v2618, %v2616
        %v2622 = vshll.u32 %v2585, 16
        %v2624 = vrot.slane %v2622, 1
        %v2625 = vsel %vm1856, %v2620, %v2624
        %v2626 = vshrl.u32 %v2585, 16
        %v2628 = vor.u32 %v2626, %v2624
        %v2630 = vshll.u32 %v2586, 16
        %v2632 = vrot.slane %v2630, 1
        %v2633 = vsel %vm1856, %v2628, %v2632
        %v2634 = vshrl.u32 %v2586, 16
        %v2636 = vor.u32 %v2634, %v2632
        %v2638 = vshll.u32 %v2587, 16
        %v2640 = vrot.slane %v2638, 1
        %v2641 = vsel %vm1856, %v2636, %v2640
        %v2642 = vshrl.u32 %v2587, 16
        %v2644 = vor.u32 %v2642, %v2640
        %v2646 = vshll.u32 %v2588, 16
        %v2648 = vrot.slane %v2646, 1
        %v2649 = vsel %vm1856, %v2644, %v2648
        %v2650 = vshrl.u32 %v2588, 16
        %v2652 = vor.u32 %v2650, %v2648
        %v2661 = vmax.bf16 %v2581, %v2601
        %v2662 = vmax.bf16 %v2582, %v2609
        %v2663 = vmax.bf16 %v2583, %v2617
        %v2664 = vmax.bf16 %v2584, %v2625
        %v2665 = vmax.bf16 %v2585, %v2633
        %v2666 = vmax.bf16 %v2586, %v2641
        %v2667 = vmax.bf16 %v2587, %v2649
        %v2668 = vmax.bf16 %v2588, %v2652
        %v2669 = vmax.bf16 %v2661, %v2582
        %v2670 = vmax.bf16 %v2662, %v2583
        %v2671 = vmax.bf16 %v2663, %v2584
        %v2672 = vmax.bf16 %v2664, %v2585
        %v2673 = vmax.bf16 %v2665, %v2586
        %v2674 = vmax.bf16 %v2666, %v2587
        %v2675 = vmax.bf16 %v2667, %v2588
        %v2676 = vmax.bf16 %v2668, %v2589
        %v2678 = vshll.u32 %v2589, 16
        %v2680 = vrot.slane %v2678, 1
        %v2681 = vsel %vm1856, %v2652, %v2680
        %v2682 = vshrl.u32 %v2589, 16
        %v2684 = vor.u32 %v2682, %v2680
        %v2687 = vmax.bf16 %v2669, %v2609
        %v2688 = vmax.bf16 %v2670, %v2617
        %v2689 = vmax.bf16 %v2671, %v2625
        %v2690 = vmax.bf16 %v2672, %v2633
        %v2691 = vmax.bf16 %v2673, %v2641
        %v2692 = vmax.bf16 %v2674, %v2649
        %v2693 = vmax.bf16 %v2675, %v2681
        %v2694 = vmax.bf16 %v2676, %v2684
        %v2699 = vrot.slane %v2687, 1
        %v2700 = vrot.slane %v2688, 1
        %v2701 = vsel %vm1961, %v2699, %v2700
        %v2702 = vrot.slane %v2689, 1
        %v2703 = vsel %vm1961, %v2700, %v2702
        %v2704 = vrot.slane %v2690, 1
        %v2705 = vsel %vm1961, %v2702, %v2704
        %2706 = vrot.lane.b32.xlu0 %v2701, 64
        %v2707 = vpop.permute.xlu0 %2706
        %2708 = vrot.lane.b32.xlu0 %v2703, 64
        %v2709 = vpop.permute.xlu0 %2708
        %2710 = vrot.lane.b32.xlu0 %v2705, 64
        %v2711 = vpop.permute.xlu0 %2710
        %vm2712 = vcmask 1045504
        %v2713 = vrot.slane %v2687, 2
        %v2714 = vrot.slane %v2688, 2
        %v2715 = vsel %vm2712, %v2713, %v2714
        %v2716 = vrot.slane %v2689, 2
        %v2717 = vsel %vm2712, %v2714, %v2716
        %v2718 = vrot.slane %v2690, 2
        %v2719 = vsel %vm2712, %v2716, %v2718
        %v2722 = vsel %vm2018, %v2687, %v2707
        %v2726 = vsel %vm2018, %v2688, %v2709
        %v2730 = vsel %vm2018, %v2689, %v2711
        %v2734 = vrot.slane %v2691, 1
        %v2735 = vsel %vm1961, %v2704, %v2734
        %v2736 = vrot.slane %v2692, 1
        %v2737 = vsel %vm1961, %v2734, %v2736
        %2738 = vrot.lane.b32.xlu0 %v2735, 64
        %v2739 = vpop.permute.xlu0 %2738
        %2740 = vrot.lane.b32.xlu0 %v2737, 64
        %v2741 = vpop.permute.xlu0 %2740
        %v2742 = vrot.slane %v2691, 2
        %v2743 = vsel %vm2712, %v2718, %v2742
        %v2744 = vrot.slane %v2692, 2
        %v2745 = vsel %vm2712, %v2742, %v2744
        %v2748 = vsel %vm2018, %v2690, %v2739
        %v2752 = vsel %vm2018, %v2691, %v2741
        %v2778 = vunpack.c.l.b16 %v439
        %v2779 = vunpack.c.l.b16 %v440
        %v2780 = vunpack.c.l.b16 %v441
        %v2781 = vunpack.c.l.b16 %v442
        %v2782 = vunpack.c.l.b16 %v443
        %v2783 = vunpack.c.l.b16 %v444
        %v2784 = vunpack.c.l.b16 %v445
        %v2785 = vunpack.c.l.b16 %v446
        %v2786 = vunpack.c.l.b16 %v447
        %v2787 = vunpack.c.l.b16 %v448
        %v2788 = vunpack.c.l.b16 %v449
        %v2789 = vunpack.c.l.b16 %v450
        %v2790 = vunpack.c.l.b16 %v451
        %v2791 = vunpack.c.l.b16 %v452
        %v2792 = vunpack.c.l.b16 %v453
        %v2793 = vunpack.c.l.b16 %v454
        %v2794 = vunpack.c.l.b16 %v455
        %v2795 = vunpack.c.l.b16 %v456
        %v2796 = vunpack.c.l.b16 %v457
        %v2797 = vunpack.c.l.b16 %v458
        %v2798 = vunpack.c.l.b16 %v459
        %v2799 = vunpack.c.l.b16 %v460
        %v2800 = vunpack.c.l.b16 %v461
        %v2801 = vunpack.c.l.b16 %v462
        %v2802 = vpack.c.b16 %v2779, %v2778
        %v2803 = vpack.c.b16 %v2781, %v2780
        %v2804 = vpack.c.b16 %v2783, %v2782
        %v2805 = vpack.c.b16 %v2785, %v2784
        %v2806 = vpack.c.b16 %v2787, %v2786
        %v2807 = vpack.c.b16 %v2789, %v2788
        %v2808 = vpack.c.b16 %v2791, %v2790
        %v2809 = vpack.c.b16 %v2793, %v2792
        %v2810 = vpack.c.b16 %v2795, %v2794
        %v2811 = vpack.c.b16 %v2797, %v2796
        %v2812 = vpack.c.b16 %v2799, %v2798
        %v2813 = vpack.c.b16 %v2801, %v2800
        %v2827 = vsel %vm2018, %v2719, 0
        %v2830 = vsel %vm2018, %v2743, 0
        %v2833 = vsel %vm2018, %v2745, 0
        %2835 = vmatprep.subr.bf16.mxu0 0
        %2836 = vmatpush1.bf16.msra.mxu0 %v2802
        %2837 = vmatprep.subr.bf16.mxu0 0
        %2838 = vmatpush1.bf16.msra.mxu0 %v2803
        %2839 = vmatprep.subr.bf16.mxu0 0
        %2840 = vmatpush1.bf16.msra.mxu0 %v2804
        %2841 = vmatprep.subr.bf16.mxu0 0
        %2842 = vmatpush1.bf16.msra.mxu0 %v2805
        %2843 = vmatprep.subr.bf16.mxu0 0
        %2844 = vmatpush1.bf16.msra.mxu0 %v2806
        %2845 = vmatprep.subr.bf16.mxu0 0
        %2846 = vmatpush1.bf16.msra.mxu0 %v2807
        %2847 = vmatprep.subr.bf16.mxu0 0
        %2848 = vmatpush1.bf16.msra.mxu0 %v2808
        %2849 = vmatprep.subr.bf16.mxu0 0
        %2850 = vmatpush1.bf16.msra.mxu0 %v2809
        %2851 = vmatprep.subr.bf16.mxu0 0
        %2852 = vmatpush1.bf16.msra.mxu0 %v2810
        %2853 = vmatprep.subr.bf16.mxu0 0
        %2854 = vmatpush1.bf16.msra.mxu0 %v2811
        %2855 = vmatprep.subr.bf16.mxu0 0
        %2856 = vmatpush1.bf16.msra.mxu0 %v2812
        %2857 = vmatprep.subr.bf16.mxu0 0
        %2858 = vmatpush1.bf16.msra.mxu0 %v2813
        %2859 = vmatprep.subr.bf16.mxu0 0
        %2860 = vmatpush1.bf16.msra.mxu0 0
        %2861 = vmatprep.subr.bf16.mxu0 0
        %2862 = vmatpush1.bf16.msra.mxu0 0
        %2863 = vmatprep.subr.bf16.mxu0 0
        %2864 = vmatpush1.bf16.msra.mxu0 0
        %2865 = vmatprep.subr.bf16.mxu0 0
        %2866 = vmatpush1.bf16.msra.mxu0 0
        %2867 = vmatprep.mubr.bf16.mxu0 %v2827
        %2868 = vmatmul.mubr.bf16.gmra.mrb[0].mxu0 %v2730
        %v2869 = vpop.f32.mrb[0].mxu0
        %v2870 = vadd.f32 0.0, %v2869
        %v2871 = vpop.f32.mrb[0].mxu0
        %v2872 = vpop.f32.mrb[0].mxu0
        %v2873 = vadd.f32 0.0, %v2872
        %v2874 = vpop.f32.mrb[0].mxu0
        %2875 = vmatprep.mubr.bf16.mxu0 %v2830
        %2876 = vmatmul.mubr.bf16.gmra.mrb[0].mxu0 %v2748
        %v2877 = vpop.f32.mrb[0].mxu0
        %v2878 = vpop.f32.mrb[0].mxu0
        %v2879 = vpop.f32.mrb[0].mxu0
        %v2880 = vpop.f32.mrb[0].mxu0
        %2881 = vmatprep.mubr.bf16.mxu0 %v2833
        %2882 = vmatmul.mubr.bf16.gmra.mrb[0].mxu0 %v2752
        %v2883 = vpop.f32.mrb[0].mxu0
        %v2884 = vadd.f32 0.0, %v2883
        %v2885 = vpop.f32.mrb[0].mxu0
        %v2886 = vpop.f32.mrb[0].mxu0
        %v2887 = vadd.f32 0.0, %v2886
        %v2888 = vpop.f32.mrb[0].mxu0
        %2889 = vdwg.mxu0
        %v2914 = vunpack.c.l.b16 %v415
        %v2915 = vunpack.c.l.b16 %v416
        %v2916 = vunpack.c.l.b16 %v417
        %v2917 = vunpack.c.l.b16 %v418
        %v2918 = vunpack.c.l.b16 %v419
        %v2919 = vunpack.c.l.b16 %v420
        %v2920 = vunpack.c.l.b16 %v421
        %v2921 = vunpack.c.l.b16 %v422
        %v2922 = vunpack.c.l.b16 %v423
        %v2923 = vunpack.c.l.b16 %v424
        %v2924 = vunpack.c.l.b16 %v425
        %v2925 = vunpack.c.l.b16 %v426
        %v2926 = vunpack.c.l.b16 %v427
        %v2927 = vunpack.c.l.b16 %v428
        %v2928 = vunpack.c.l.b16 %v429
        %v2929 = vunpack.c.l.b16 %v430
        %v2930 = vunpack.c.l.b16 %v431
        %v2931 = vunpack.c.l.b16 %v432
        %v2932 = vunpack.c.l.b16 %v433
        %v2933 = vunpack.c.l.b16 %v434
        %v2934 = vunpack.c.l.b16 %v435
        %v2935 = vunpack.c.l.b16 %v436
        %v2936 = vunpack.c.l.b16 %v437
        %v2937 = vunpack.c.l.b16 %v438
        %v2938 = vpack.c.b16 %v2915, %v2914
        %v2939 = vpack.c.b16 %v2917, %v2916
        %v2940 = vpack.c.b16 %v2919, %v2918
        %v2941 = vpack.c.b16 %v2921, %v2920
        %v2942 = vpack.c.b16 %v2923, %v2922
        %v2943 = vpack.c.b16 %v2925, %v2924
        %v2944 = vpack.c.b16 %v2927, %v2926
        %v2945 = vpack.c.b16 %v2929, %v2928
        %v2946 = vpack.c.b16 %v2931, %v2930
        %v2947 = vpack.c.b16 %v2933, %v2932
        %v2948 = vpack.c.b16 %v2935, %v2934
        %v2949 = vpack.c.b16 %v2937, %v2936
        %v2963 = vsel %vm2018, %v2715, 0
        %v2966 = vsel %vm2018, %v2717, 0
        %2968 = vmatprep.subr.bf16.mxu0 0
        %2969 = vmatpush1.bf16.msra.mxu0 %v2938
        %2970 = vmatprep.subr.bf16.mxu0 0
        %2971 = vmatpush1.bf16.msra.mxu0 %v2939
        %2972 = vmatprep.subr.bf16.mxu0 0
        %2973 = vmatpush1.bf16.msra.mxu0 %v2940
        %2974 = vmatprep.subr.bf16.mxu0 0
        %2975 = vmatpush1.bf16.msra.mxu0 %v2941
        %2976 = vmatprep.subr.bf16.mxu0 0
        %2977 = vmatpush1.bf16.msra.mxu0 %v2942
        %2978 = vmatprep.subr.bf16.mxu0 0
        %2979 = vmatpush1.bf16.msra.mxu0 %v2943
        %2980 = vmatprep.subr.bf16.mxu0 0
        %2981 = vmatpush1.bf16.msra.mxu0 %v2944
        %2982 = vmatprep.subr.bf16.mxu0 0
        %2983 = vmatpush1.bf16.msra.mxu0 %v2945
        %2984 = vmatprep.subr.bf16.mxu0 0
        %2985 = vmatpush1.bf16.msra.mxu0 %v2946
        %2986 = vmatprep.subr.bf16.mxu0 0
        %2987 = vmatpush1.bf16.msra.mxu0 %v2947
        %2988 = vmatprep.subr.bf16.mxu0 0
        %2989 = vmatpush1.bf16.msra.mxu0 %v2948
        %2990 = vmatprep.subr.bf16.mxu0 0
        %2991 = vmatpush1.bf16.msra.mxu0 %v2949
        %2992 = vmatprep.subr.bf16.mxu0 0
        %2993 = vmatpush1.bf16.msra.mxu0 0
        %2994 = vmatprep.subr.bf16.mxu0 0
        %2995 = vmatpush1.bf16.msra.mxu0 0
        %2996 = vmatprep.subr.bf16.mxu0 0
        %2997 = vmatpush1.bf16.msra.mxu0 0
        %2998 = vmatprep.subr.bf16.mxu0 0
        %2999 = vmatpush1.bf16.msra.mxu0 0
        %3000 = vmatprep.mubr.bf16.mxu0 %v2963
        %3001 = vmatmul.mubr.bf16.gmra.mrb[0].mxu0 %v2722
        %v3002 = vpop.f32.mrb[0].mxu0
        %v3003 = vadd.f32 %v2870, %v3002
        %v3004 = vpop.f32.mrb[0].mxu0
        %v3005 = vpop.f32.mrb[0].mxu0
        %v3006 = vadd.f32 %v2873, %v3005
        %v3007 = vpop.f32.mrb[0].mxu0
        %3008 = vmatprep.mubr.bf16.mxu0 %v2966
        %3009 = vmatmul.mubr.bf16.gmra.mrb[0].mxu0 %v2726
        %v3010 = vpop.f32.mrb[0].mxu0
        %v3011 = vpop.f32.mrb[0].mxu0
        %v3012 = vpop.f32.mrb[0].mxu0
        %v3013 = vpop.f32.mrb[0].mxu0
        %3014 = vmatprep.mubr.bf16.mxu0 %v2827
        %3015 = vmatmul.mubr.bf16.gmra.mrb[0].mxu0 %v2730
        %v3016 = vpop.f32.mrb[0].mxu0
        %v3017 = vadd.f32 %v2884, %v3016
        %v3018 = vpop.f32.mrb[0].mxu0
        %v3019 = vpop.f32.mrb[0].mxu0
        %v3020 = vadd.f32 %v2887, %v3019
        %v3021 = vpop.f32.mrb[0].mxu0
        %3022 = vdwg.mxu0
        %v3025 = vrot.slane %v2693, 1
        %v3026 = vsel %vm1961, %v2736, %v3025
        %v3027 = vrot.slane %v2694, 1
        %v3028 = vsel %vm1961, %v3025, %v3027
        %3029 = vrot.lane.b32.xlu0 %v3026, 64
        %v3030 = vpop.permute.xlu0 %3029
        %3031 = vrot.lane.b32.xlu0 %v3028, 64
        %v3032 = vpop.permute.xlu0 %3031
        %v3033 = vrot.slane %v2693, 2
        %v3034 = vsel %vm2712, %v2744, %v3033
        %v3035 = vrot.slane %v2694, 2
        %v3036 = vsel %vm2712, %v3033, %v3035
        %v3039 = vsel %vm2018, %v2692, %v3030
        %v3043 = vsel %vm2018, %v2693, %v3032
        %v3069 = vunpack.c.l.b16 %v463
        %v3070 = vunpack.c.l.b16 %v464
        %v3071 = vunpack.c.l.b16 %v465
        %v3072 = vunpack.c.l.b16 %v466
        %v3073 = vunpack.c.l.b16 %v467
        %v3074 = vunpack.c.l.b16 %v468
        %v3075 = vunpack.c.l.b16 %v469
        %v3076 = vunpack.c.l.b16 %v470
        %v3077 = vunpack.c.l.b16 %v471
        %v3078 = vunpack.c.l.b16 %v472
        %v3079 = vunpack.c.l.b16 %v473
        %v3080 = vunpack.c.l.b16 %v474
        %v3081 = vunpack.c.l.b16 %v475
        %v3082 = vunpack.c.l.b16 %v476
        %v3083 = vunpack.c.l.b16 %v477
        %v3084 = vunpack.c.l.b16 %v478
        %v3085 = vunpack.c.l.b16 %v479
        %v3086 = vunpack.c.l.b16 %v480
        %v3087 = vunpack.c.l.b16 %v481
        %v3088 = vunpack.c.l.b16 %v482
        %v3089 = vunpack.c.l.b16 %v483
        %v3090 = vunpack.c.l.b16 %v484
        %v3091 = vunpack.c.l.b16 %v485
        %v3092 = vunpack.c.l.b16 %v486
        %v3093 = vpack.c.b16 %v3070, %v3069
        %v3094 = vpack.c.b16 %v3072, %v3071
        %v3095 = vpack.c.b16 %v3074, %v3073
        %v3096 = vpack.c.b16 %v3076, %v3075
        %v3097 = vpack.c.b16 %v3078, %v3077
        %v3098 = vpack.c.b16 %v3080, %v3079
        %v3099 = vpack.c.b16 %v3082, %v3081
        %v3100 = vpack.c.b16 %v3084, %v3083
        %v3101 = vpack.c.b16 %v3086, %v3085
        %v3102 = vpack.c.b16 %v3088, %v3087
        %v3103 = vpack.c.b16 %v3090, %v3089
        %v3104 = vpack.c.b16 %v3092, %v3091
        %v3118 = vsel %vm2018, %v3034, 0
        %v3121 = vsel %vm2018, %v3036, 0
        %3123 = vmatprep.subr.bf16.mxu0 0
        %3124 = vmatpush1.bf16.msra.mxu0 %v3093
        %3125 = vmatprep.subr.bf16.mxu0 0
        %3126 = vmatpush1.bf16.msra.mxu0 %v3094
        %3127 = vmatprep.subr.bf16.mxu0 0
        %3128 = vmatpush1.bf16.msra.mxu0 %v3095
        %3129 = vmatprep.subr.bf16.mxu0 0
        %3130 = vmatpush1.bf16.msra.mxu0 %v3096
        %3131 = vmatprep.subr.bf16.mxu0 0
        %3132 = vmatpush1.bf16.msra.mxu0 %v3097
        %3133 = vmatprep.subr.bf16.mxu0 0
        %3134 = vmatpush1.bf16.msra.mxu0 %v3098
        %3135 = vmatprep.subr.bf16.mxu0 0
        %3136 = vmatpush1.bf16.msra.mxu0 %v3099
        %3137 = vmatprep.subr.bf16.mxu0 0
        %3138 = vmatpush1.bf16.msra.mxu0 %v3100
        %3139 = vmatprep.subr.bf16.mxu0 0
        %3140 = vmatpush1.bf16.msra.mxu0 %v3101
        %3141 = vmatprep.subr.bf16.mxu0 0
        %3142 = vmatpush1.bf16.msra.mxu0 %v3102
        %3143 = vmatprep.subr.bf16.mxu0 0
        %3144 = vmatpush1.bf16.msra.mxu0 %v3103
        %3145 = vmatprep.subr.bf16.mxu0 0
        %3146 = vmatpush1.bf16.msra.mxu0 %v3104
        %3147 = vmatprep.subr.bf16.mxu0 0
        %3148 = vmatpush1.bf16.msra.mxu0 0
        %3149 = vmatprep.subr.bf16.mxu0 0
        %3150 = vmatpush1.bf16.msra.mxu0 0
        %3151 = vmatprep.subr.bf16.mxu0 0
        %3152 = vmatpush1.bf16.msra.mxu0 0
        %3153 = vmatprep.subr.bf16.mxu0 0
        %3154 = vmatpush1.bf16.msra.mxu0 0
        %3155 = vmatprep.mubr.bf16.mxu0 %v2833
        %3156 = vmatmul.mubr.bf16.gmra.mrb[0].mxu0 %v2752
        %v3157 = vpop.f32.mrb[0].mxu0
        %v3158 = vadd.f32 0.0, %v3157
        %v3159 = vpop.f32.mrb[0].mxu0
        %v3160 = vpop.f32.mrb[0].mxu0
        %v3161 = vadd.f32 0.0, %v3160
        %v3162 = vpop.f32.mrb[0].mxu0
        %3163 = vmatprep.mubr.bf16.mxu0 %v3118
        %3164 = vmatmul.mubr.bf16.gmra.mrb[0].mxu0 %v3039
        %v3165 = vpop.f32.mrb[0].mxu0
        %v3166 = vpop.f32.mrb[0].mxu0
        %v3167 = vpop.f32.mrb[0].mxu0
        %v3168 = vpop.f32.mrb[0].mxu0
        %3169 = vmatprep.mubr.bf16.mxu0 %v3121
        %3170 = vmatmul.mubr.bf16.gmra.mrb[0].mxu0 %v3043
        %v3171 = vpop.f32.mrb[0].mxu0
        %v3172 = vadd.f32 0.0, %v3171
        %v3173 = vpop.f32.mrb[0].mxu0
        %v3174 = vpop.f32.mrb[0].mxu0
        %v3175 = vadd.f32 0.0, %v3174
        %v3176 = vpop.f32.mrb[0].mxu0
        %3177 = vdwg.mxu0
        %v3178 = vadd.f32 %v3003, %v3158
        %v3179 = vadd.f32 %v3006, %v3161
        %v3180 = vadd.f32 %v3017, %v3172
        %v3181 = vadd.f32 %v3020, %v3175
        %v3183 = vlaneseq
        %v3184 = vshrl.u32 %v3183, 7
        %v3185 = vsub.s32 0, %v3184
        %v3186 = vrot.slane %v489, %v3185
        %v3188 = vadd.f32 %v3178, %v3186
        %v3189 = vadd.f32 %v3179, %v3186
        %v3190 = vadd.f32 %v3180, %v3186
        %v3191 = vadd.f32 %v3181, %v3186
        %v3192 = vmax.f32 %v3188, 0.0
        %v3193 = vmax.f32 %v3189, 0.0
        %v3194 = vmax.f32 %v3190, 0.0
        %v3195 = vmax.f32 %v3191, 0.0
        %v3196 = vpack.c.bf16 %v3193, %v3192
        %v3197 = vpack.c.bf16 %v3195, %v3194
        %v3199 = vrot.slane %v3196, 1
        %v3201 = vmax.bf16 %v3196, %v3199
        %v3202 = vmax.bf16 %v3201, %v3197
        %v3204 = vrot.slane %v3197, 1
        %v3206 = vmax.bf16 %v3202, %v3204
        %vm3207 = vcmask 64512
        %v3209 = vsel %vm3207, %v490, 0
        %vm3211 = vcmask 1043456
        %v3213 = vsel %vm3211, %v3206, 0
        %3215 = vmatprep.subr.bf16.mxu0 0
        %3216 = vmatpush1.bf16.msra.mxu0 %v3213
        %3217 = vmatprep.subr.bf16.mxu0 0
        %3218 = vmatpush1.bf16.msra.mxu0 0
        %3219 = vmatprep.subr.bf16.mxu0 0
        %3220 = vmatpush1.bf16.msra.mxu0 0
        %3221 = vmatprep.subr.bf16.mxu0 0
        %3222 = vmatpush1.bf16.msra.mxu0 0
        %3223 = vmatprep.subr.bf16.mxu0 0
        %3224 = vmatpush1.bf16.msra.mxu0 0
        %3225 = vmatprep.subr.bf16.mxu0 0
        %3226 = vmatpush1.bf16.msra.mxu0 0
        %3227 = vmatprep.subr.bf16.mxu0 0
        %3228 = vmatpush1.bf16.msra.mxu0 0
        %3229 = vmatprep.subr.bf16.mxu0 0
        %3230 = vmatpush1.bf16.msra.mxu0 0
        %3231 = vmatprep.subr.bf16.mxu0 0
        %3232 = vmatpush1.bf16.msra.mxu0 0
        %3233 = vmatprep.subr.bf16.mxu0 0
        %3234 = vmatpush1.bf16.msra.mxu0 0
        %3235 = vmatprep.subr.bf16.mxu0 0
        %3236 = vmatpush1.bf16.msra.mxu0 0
        %3237 = vmatprep.subr.bf16.mxu0 0
        %3238 = vmatpush1.bf16.msra.mxu0 0
        %3239 = vmatprep.subr.bf16.mxu0 0
        %3240 = vmatpush1.bf16.msra.mxu0 0
        %3241 = vmatprep.subr.bf16.mxu0 0
        %3242 = vmatpush1.bf16.msra.mxu0 0
        %3243 = vmatprep.subr.bf16.mxu0 0
        %3244 = vmatpush1.bf16.msra.mxu0 0
        %3245 = vmatprep.subr.bf16.mxu0 0
        %3246 = vmatpush1.bf16.msra.mxu0 0
        %3247 = vmatprep.mubr.bf16.mxu0 0
        %3248 = vmatmul.mubr.bf16.gmra.mrb[0].mxu0 %v3209
        %v3249 = vpop.f32.mrb[0].mxu0
        %v3250 = vadd.f32 0.0, %v3249
        %v3251 = vpop.f32.mrb[0].mxu0
        %v3252 = vpop.f32.mrb[0].mxu0
        %v3253 = vpop.f32.mrb[0].mxu0
        %3254 = vdwg.mxu0
        %v3255 = vpack.c.bf16 %v3250, %v3250
        %v3256 = vld [vmem:[%s8] sm:$0xf]
        %v3257 = vld [vmem:[%s8 + $0x4] sm:$0xf]
        %v3258 = vld [vmem:[%s8 + $0x8] sm:$0xf]
        %v3259 = vld [vmem:[%s8 + $0xc] sm:$0xf]
        %v3260 = vld [vmem:[%s8 + $0x10] sm:$0xf]
        %v3261 = vld [vmem:[%s8 + $0x14] sm:$0xf]
        %v3262 = vld [vmem:[%s8 + $0x18] sm:$0xf]
        %v3263 = vld [vmem:[%s8 + $0x1c] sm:$0xf]
        %v3264 = vld [vmem:[%s8 + $0x20] sm:$0xf]
        %v3265 = vld [vmem:[%s8 + $0x24] sm:$0xf]
        %v3266 = vld [vmem:[%s8 + $0x28] sm:$0xf]
        %v3267 = vld [vmem:[%s8 + $0x2c] sm:$0xf]
        %v3268 = vld [vmem:[%s8 + $0x30] sm:$0xf]
        %v3269 = vld [vmem:[%s8 + $0x34] sm:$0xf]
        %v3270 = vld [vmem:[%s8 + $0x38] sm:$0xf]
        %v3271 = vld [vmem:[%s8 + $0x3c] sm:$0xf]
        %v3272 = vld [vmem:[%s9] sm:$0x1]
        %v3289 = vunpack.c.l.b16 %v3256
        %v3290 = vunpack.c.l.b16 %v3257
        %v3291 = vunpack.c.l.b16 %v3258
        %v3292 = vunpack.c.l.b16 %v3259
        %v3293 = vunpack.c.l.b16 %v3260
        %v3294 = vunpack.c.l.b16 %v3261
        %v3295 = vunpack.c.l.b16 %v3262
        %v3296 = vunpack.c.l.b16 %v3263
        %v3297 = vunpack.c.l.b16 %v3264
        %v3298 = vunpack.c.l.b16 %v3265
        %v3299 = vunpack.c.l.b16 %v3266
        %v3300 = vunpack.c.l.b16 %v3267
        %v3301 = vunpack.c.l.b16 %v3268
        %v3302 = vunpack.c.l.b16 %v3269
        %v3303 = vunpack.c.l.b16 %v3270
        %v3304 = vunpack.c.l.b16 %v3271
        %v3305 = vpack.c.b16 %v3290, %v3289
        %v3306 = vpack.c.b16 %v3292, %v3291
        %v3307 = vpack.c.b16 %v3294, %v3293
        %v3308 = vpack.c.b16 %v3296, %v3295
        %v3309 = vpack.c.b16 %v3298, %v3297
        %v3310 = vpack.c.b16 %v3300, %v3299
        %v3311 = vpack.c.b16 %v3302, %v3301
        %v3312 = vpack.c.b16 %v3304, %v3303
        %3321 = vmatprep.subr.bf16.mxu0 0
        %3322 = vmatpush1.bf16.msra.mxu0 %v3305
        %3323 = vmatprep.subr.bf16.mxu0 0
        %3324 = vmatpush1.bf16.msra.mxu0 %v3306
        %3325 = vmatprep.subr.bf16.mxu0 0
        %3326 = vmatpush1.bf16.msra.mxu0 %v3307
        %3327 = vmatprep.subr.bf16.mxu0 0
        %3328 = vmatpush1.bf16.msra.mxu0 %v3308
        %3329 = vmatprep.subr.bf16.mxu0 0
        %3330 = vmatpush1.bf16.msra.mxu0 %v3309
        %3331 = vmatprep.subr.bf16.mxu0 0
        %3332 = vmatpush1.bf16.msra.mxu0 %v3310
        %3333 = vmatprep.subr.bf16.mxu0 0
        %3334 = vmatpush1.bf16.msra.mxu0 %v3311
        %3335 = vmatprep.subr.bf16.mxu0 0
        %3336 = vmatpush1.bf16.msra.mxu0 %v3312
        %3337 = vmatprep.subr.bf16.mxu0 0
        %3338 = vmatpush1.bf16.msra.mxu0 0
        %3339 = vmatprep.subr.bf16.mxu0 0
        %3340 = vmatpush1.bf16.msra.mxu0 0
        %3341 = vmatprep.subr.bf16.mxu0 0
        %3342 = vmatpush1.bf16.msra.mxu0 0
        %3343 = vmatprep.subr.bf16.mxu0 0
        %3344 = vmatpush1.bf16.msra.mxu0 0
        %3345 = vmatprep.subr.bf16.mxu0 0
        %3346 = vmatpush1.bf16.msra.mxu0 0
        %3347 = vmatprep.subr.bf16.mxu0 0
        %3348 = vmatpush1.bf16.msra.mxu0 0
        %3349 = vmatprep.subr.bf16.mxu0 0
        %3350 = vmatpush1.bf16.msra.mxu0 0
        %3351 = vmatprep.subr.bf16.mxu0 0
        %3352 = vmatpush1.bf16.msra.mxu0 0
        %3353 = vmatprep.mubr.bf16.mxu0 0
        %3354 = vmatmul.mubr.bf16.gmra.mrb[0].mxu0 %v3255
        %v3355 = vpop.f32.mrb[0].mxu0
        %v3356 = vadd.f32 %v3272, %v3355
        %v3357 = vpop.f32.mrb[0].mxu0
        %v3358 = vpop.f32.mrb[0].mxu0
        %v3359 = vpop.f32.mrb[0].mxu0
        %3360 = vdwg.mxu0
        %3361 = vst [vmem:[%s351] sm:$0x1] %v3356
        %s3362 = sand.u32 %s247, 1
        %s3363 = scalar_lea.sflag [#allocation3], %s3362
        %s3364 = sand.u32 %s247, 1
        %s3365 = scalar_lea.vmem [#allocation2], %s3364
        // Predicated region
        $region61: #{base_model_forward.1} parent=59 // pred_check
          %p3366 = pneg %p257
        $region62: #{base_model_forward.1} parent=59 // pred_check_branch
          %3368 = sbr.rel (%p3366) target = $region64
        $region63: #{base_model_forward.1} parent=59 // pred_region
          %s3370 = ssub.s32 16, 16
          %3371 = vsyncadd %s3363, %s3370
          %s3372 = smul.addr %s24, 16
          %s3373 = scalar_lea.hbm %s10, %s3372
          %s3375 = sshll.u32 %s3365, 4
          %s3376 = int_to_ptr.vmem [resolvable:$true] %s3375
          %3378 = dma.vmem_to_hbm [thread:$0]  %s3376, 16, %s3373, %s3363
        $region64: #{base_model_forward.1} parent=59 // pred_fallthru
          _
      $region60: #{base_model_forward.1} parent=5 // pred_fallthru
        _
      %p3379 = scmp.le.s32.totalorder 2, %s19
      // Predicated region
      $region65: #{base_model_forward.1} parent=5 // pred_check
        %p3380 = pneg %p3379
      $region66: #{base_model_forward.1} parent=5 // pred_check_branch
        %3382 = sbr.rel (%p3380) target = $region68
      $region67: #{base_model_forward.1} parent=5 // pred_region
        %s3383 = ssub.s32 %s19, 2
        // Predicated region
        $region69: #{base_model_forward.1} parent=67 // pred_check
          %p3384 = pneg %p263
        $region70: #{base_model_forward.1} parent=67 // pred_check_branch
          %3386 = sbr.rel (%p3384) target = $region72
        $region71: #{base_model_forward.1} parent=67 // pred_region
          %s3387 = sand.u32 %s248, 1
          %s3388 = scalar_lea.sflag [#allocation3], %s3387
          %s3389 = sand.u32 %s248, 1
          %s3390 = scalar_lea.vmem [#allocation2], %s3389
          %3391 = dma.done %s3388, 16
        $region72: #{base_model_forward.1} parent=67 // pred_fallthru
          _
      $region68: #{base_model_forward.1} parent=5 // pred_fallthru
        _
    $region6: #{base_model_forward.1} parent=1 // loop_footer
      %s23 = sadd.s32 1, %s19
    $region7: #{base_model_forward.1} parent=1 // loop_footer_branch
      %18 = sbr.rel target = $region3
    $region8: #{base_model_forward.1} parent=1 // loop_exit
      _
    %3392 = vsyncpa [#allocation3], 1
    %s3393 = scalar_lea.sflag [#allocation3], 1
    %3394 = vsyncpa %s3393, 1

</llo_original>
